<compile_context>
chip_gen: v6e
topology: v6e:2x2x1
jax: 0.10.0
libtpu: 0.0.40
codegen_flags: <defaults>
</compile_context>

<pallas_src>
import functools

import jax
import jax.numpy as jnp
from jax import lax
from jax.experimental import pallas as pl
from jax.experimental.pallas import tpu as pltpu


# ----------------------------------------------------------------------------
# Fused kernel: LSTM stack (both layers, both directions) + classifier head.
# ----------------------------------------------------------------------------
def _char_lstm_kernel(*refs, n_layers):
    n_in = 3 * n_layers + 3
    x_ref = refs[0]                                    # (T*B, 2*In0) doubled input
    layer_refs = refs[1:1 + 3 * n_layers]              # per layer: w2, w_hh, bias
    w_out_ref = refs[n_in - 2]                         # (2H, O)
    b_out_ref = refs[n_in - 1]                         # (1, O)
    logp_ref, hn_ref, cn_ref, proj_buf, out_buf = refs[n_in:]

    B = hn_ref.shape[1]                                # padded batch (multiple of 8)
    H = hn_ref.shape[2]
    H2, H4, H6, H8 = 2 * H, 4 * H, 6 * H, 8 * H
    T = x_ref.shape[0] // B
    f32 = jnp.float32

    layer_in = x_ref[...]                              # rows: t-major, b-minor
    pool = jnp.full((B, H2), -jnp.inf, f32)            # running max of tanh(out)
    for l in range(n_layers):
        w2 = layer_refs[3 * l][...]                    # (2*In_l, 8H) block-sparse
        w_hh = layer_refs[3 * l + 1][...]              # (2H, 8H) block-diag by dir
        bias = layer_refs[3 * l + 2][...]              # (1, 8H)
        is_last = l == n_layers - 1

        # Hoisted input projection: one MXU matmul for all steps & both dirs.
        # Row block t already holds fwd gates at time t and rev gates at time
        # T-1-t (time reversal is baked into the doubled LHS + W2 packing), so
        # the recurrent loop needs no per-step select.
        proj_buf[...] = (jnp.dot(layer_in, w2, preferred_element_type=f32)
                         + bias)

        h = jnp.zeros((B, H2), f32)                    # [h_fwd | h_rev]
        c = jnp.zeros((B, H2), f32)
        # Fully unrolled (T=16, static slice offsets; B is a multiple of 8 so
        # every row block is sublane-aligned).  Switch to a bounded-unroll
        # fori_loop only if the bundle dump shows vreg spills.
        for s in range(T):
            pre = (proj_buf[s * B:(s + 1) * B, :]
                   + jnp.dot(h, w_hh, preferred_element_type=f32))
            # Gate layout [i_f,i_r,f_f,f_r,o_f,o_r | g_f,g_r]:
            # sigmoid on a single contiguous 6H block, tanh on 2H (half the
            # EUP lanes of the previous full-width sigmoid+tanh pair).
            sig = jax.nn.sigmoid(pre[:, 0:H6])
            g_g = jnp.tanh(pre[:, H6:H8])
            i_g = sig[:, 0:H2]
            f_g = sig[:, H2:H4]
            o_g = sig[:, H4:H6]
            c = f_g * c + i_g * g_g
            h = o_g * jnp.tanh(c)
            if is_last:
                # Head max-pool folded in: running max of tanh(lstm output).
                pool = jnp.maximum(pool, jnp.tanh(h))
            else:
                # Store the full (B, 2H) output twice - once per time order -
                # so out_buf row block t = [y_t-ish | y_{T-1-t}-ish] is exactly
                # the next layer's doubled LHS (no masked half-width scatter,
                # no interlayer flip pass).
                out_buf[s * B:(s + 1) * B, 0:H2] = h
                out_buf[(T - 1 - s) * B:(T - s) * B, H2:H4] = h

        # Final states: fwd finished at t=T-1, rev at t=0 (PyTorch ordering).
        hn_ref[2 * l + 0] = h[:, 0:H]
        hn_ref[2 * l + 1] = h[:, H:H2]
        cn_ref[2 * l + 0] = c[:, 0:H]
        cn_ref[2 * l + 1] = c[:, H:H2]

        if not is_last:
            layer_in = out_buf[...]                    # (T*B, 4H)
            # TODO(synk): inter-layer LSTM dropout (p=0.5) is identity in eval.

    # Classifier head: tanh -> max-pool over time (folded above) -> tanh ->
    # linear -> log_softmax(dim=1).  nn.Dropout(0.5) is identity in eval mode.
    pooled = jnp.tanh(pool)                            # (B, 2H)
    logits = (jnp.dot(pooled, w_out_ref[...], preferred_element_type=f32)
              + b_out_ref[...])                        # (B, O)
    m = jnp.max(logits, axis=1, keepdims=True)
    lse = jnp.log(jnp.sum(jnp.exp(logits - m), axis=1, keepdims=True)) + m
    logp_ref[...] = logits - lse


# ----------------------------------------------------------------------------
# Wrapper.
# ----------------------------------------------------------------------------
def char_lstm_forward(tokens, params, *, n_layers):
    # Embedding lookup + the reference transposes stay in XLA (tiny
    # data-dependent gather); everything downstream runs in one Pallas kernel.
    # TODO(synk): fold the gather in via an in-kernel one-hot MXU matmul.
    emb = params["embedding"][tokens]                  # (B, S, E)
    x = jnp.transpose(emb, (2, 0, 1))                  # time-major (T=E, B, F=S)
    T, B, S = x.shape

    in0 = params["lstm"][0][0].shape[0] // 2           # first-layer feature size
    if in0 != S:
        raise ValueError(
            f"CharLSTM transpose/pack trick requires max_sequence == "
            f"embedding_size (got feature size {S}, weights expect {in0}).")

    # Pad batch to the f32 sublane minimum (8) so all row blocks are aligned.
    B_pad = max(8, ((B + 7) // 8) * 8)
    if B_pad != B:
        x = jnp.pad(x, ((0, 0), (0, B_pad - B), (0, 0)))
    # Doubled LHS [x_t | x_{T-1-t}] so the kernel never selects per step.
    x2 = jnp.concatenate([x, x[::-1]], axis=-1)        # (T, B_pad, 2S)
    x2_flat = x2.reshape(T * B_pad, 2 * S)

    inputs = [x2_flat]
    for w2, w_hh, b in params["lstm"]:
        inputs += [w2, w_hh, b]
    inputs += [params["w_out_t"], params["b_out"]]

    H = params["lstm"][0][1].shape[0] // 2             # w_hh is (2H, 8H)
    O = params["w_out_t"].shape[1]
    out_shape = (
        jax.ShapeDtypeStruct((B_pad, O), jnp.float32),
        jax.ShapeDtypeStruct((2 * n_layers, B_pad, H), jnp.float32),
        jax.ShapeDtypeStruct((2 * n_layers, B_pad, H), jnp.float32),
    )
    kernel = functools.partial(_char_lstm_kernel, n_layers=n_layers)
    logp, h_n, c_n = pl.pallas_call(
        kernel,
        out_shape=out_shape,
        scratch_shapes=[
            pltpu.VMEM((T * B_pad, 8 * H), jnp.float32),   # hoisted projection
            pltpu.VMEM((T * B_pad, 4 * H), jnp.float32),   # inter-layer doubled LHS
        ],
        compiler_params=pltpu.CompilerParams(
            # Explicit guard: stays well under the 64 MiB physical VMEM of v7x
            # even if B/H/T are scaled up moderately.
            vmem_limit_bytes=32 * 1024 * 1024,
        ),
    )(*inputs)
    return logp[:B], (h_n[:, :B], c_n[:, :B])


# ----------------------------------------------------------------------------
# Parameters (deterministic, synthetic).  Raw PyTorch-shaped weights are kept
# for the pure-JAX reference; packed copies feed the kernel.
# ----------------------------------------------------------------------------
def _pack_gate_cols(cf, cr, H):
    """Per-direction [i,f,g,o] column blocks -> [i_f,i_r,f_f,f_r,o_f,o_r,g_f,g_r]."""
    def blk(c, g):
        return c[..., g * H:(g + 1) * H]
    return jnp.concatenate(
        [blk(cf, 0), blk(cr, 0),      # i   (sigmoid)
         blk(cf, 1), blk(cr, 1),      # f   (sigmoid)
         blk(cf, 3), blk(cr, 3),      # o   (sigmoid)
         blk(cf, 2), blk(cr, 2)],     # g   (tanh)
        axis=-1)


def init_params(key, *, input_size, output_size, embedding_size, n_layers,
                hidden_size):
    H = hidden_size
    params = {}
    key, k_emb = jax.random.split(key)
    params["embedding"] = 0.1 * jax.random.normal(
        k_emb, (input_size, embedding_size), jnp.float32)

    raw, packed = [], []
    for l in range(n_layers):
        in_size = embedding_size if l == 0 else 2 * H
        per_dir = []
        for _d in range(2):                            # 0 = forward, 1 = reverse
            key, k1, k2, k3, k4 = jax.random.split(key, 5)
            w_ih = 0.1 * jax.random.normal(k1, (4 * H, in_size), jnp.float32)
            w_hh = 0.1 * jax.random.normal(k2, (4 * H, H), jnp.float32)
            b_ih = 0.1 * jax.random.normal(k3, (4 * H,), jnp.float32)
            b_hh = 0.1 * jax.random.normal(k4, (4 * H,), jnp.float32)
            per_dir.append((w_ih, w_hh, b_ih, b_hh))
        raw.append(per_dir)

        (wf, hf, bif, bhf), (wr, hr, bir, bhr) = per_dir
        zH = jnp.zeros((H, 4 * H), jnp.float32)

        # Doubled-input projection weight W2.  The LHS row layout differs per
        # layer, the column layout is always the gate layout above, and each
        # gate column only reads the copy of the input that carries the right
        # time index for its direction.
        if l == 0:
            # LHS row block t = [x_t (In) | x_{T-1-t} (In)].
            zI = jnp.zeros((in_size, 4 * H), jnp.float32)
            cf = jnp.concatenate([wf.T, zI], axis=0)               # (2In, 4H)
            cr = jnp.concatenate([zI, wr.T], axis=0)
        else:
            # LHS row block t = [f(t) | r(T-1-t) | f(T-1-t) | r(t)] (H each),
            # i.e. the kernel's out_buf written in both time orders.
            wfT, wrT = wf.T, wr.T                                  # (2H, 4H)
            cf = jnp.concatenate([wfT[:H], zH, zH, wfT[H:]], axis=0)   # (4H, 4H)
            cr = jnp.concatenate([zH, wrT[H:], wrT[:H], zH], axis=0)   # (4H, 4H)
        w2_cat = _pack_gate_cols(cf, cr, H)                        # (2In_l, 8H)

        # Recurrent weight: block-diagonal by direction, gate-layout columns.
        w_hh_cat = _pack_gate_cols(
            jnp.concatenate([hf.T, zH], axis=0),                   # fwd rows
            jnp.concatenate([zH, hr.T], axis=0), H)                # rev rows
        b_cat = _pack_gate_cols((bif + bhf)[None, :],
                                (bir + bhr)[None, :], H)           # (1, 8H)
        packed.append((w2_cat, w_hh_cat, b_cat))

    params["lstm_raw"] = raw
    params["lstm"] = packed

    key, k_w, k_b = jax.random.split(key, 3)
    w_out = 0.1 * jax.random.normal(k_w, (output_size, 2 * H), jnp.float32)
    b_out = 0.1 * jax.random.normal(k_b, (output_size,), jnp.float32)
    params["w_out_t"] = jnp.transpose(w_out)                       # (2H, O)
    params["b_out"] = b_out[None, :]                               # (1, O)
    return params


# ----------------------------------------------------------------------------
# Pure-JAX reference of the PyTorch forward (for a numerical cross-check).
# ----------------------------------------------------------------------------
def _lstm_dir_ref(x_seq, w_ih, w_hh, b, reverse):
    H = w_hh.shape[1]
    B = x_seq.shape[1]

    def cell(carry, x_t):
        h, c = carry
        g = x_t @ w_ih.T + h @ w_hh.T + b
        i = jax.nn.sigmoid(g[:, 0 * H:1 * H])
        f = jax.nn.sigmoid(g[:, 1 * H:2 * H])
        gg = jnp.tanh(g[:, 2 * H:3 * H])
        o = jax.nn.sigmoid(g[:, 3 * H:4 * H])
        c = f * c + i * gg
        h = o * jnp.tanh(c)
        return (h, c), h

    init = (jnp.zeros((B, H), jnp.float32), jnp.zeros((B, H), jnp.float32))
    (h, c), ys = lax.scan(cell, init, x_seq, reverse=reverse)
    return ys, h, c


def char_lstm_reference(tokens, params, *, n_layers):
    emb = params["embedding"][tokens]
    layer_in = jnp.transpose(emb, (2, 0, 1))           # (T, B, S)
    h_list, c_list = [], []
    for l in range(n_layers):
        outs = []
        for _d, reverse in enumerate((False, True)):
            w_ih, w_hh, b_ih, b_hh = params["lstm_raw"][l][_d]
            ys, h, c = _lstm_dir_ref(layer_in, w_ih, w_hh, b_ih + b_hh, reverse)
            outs.append(ys)
            h_list.append(h)
            c_list.append(c)
        layer_in = jnp.concatenate(outs, axis=-1)      # (T, B, 2H)
    pooled = jnp.tanh(jnp.max(jnp.tanh(layer_in), axis=0))
    logits = pooled @ params["w_out_t"] + params["b_out"]
    logp = jax.nn.log_softmax(logits, axis=1)
    return logp, (jnp.stack(h_list), jnp.stack(c_list))


if __name__ == "__main__":
    INPUT_SIZE = 20        # alphabet
    OUTPUT_SIZE = 10
    EMBEDDING_SIZE = 16
    N_LAYERS = 2
    HIDDEN_SIZE = 32
    BATCH_SIZE = 2
    MAX_SEQUENCE = EMBEDDING_SIZE   # S must equal E (see header comment)

    key = jax.random.PRNGKey(0)
    key, k_tok, k_par = jax.random.split(key, 3)
    tokens = jax.random.randint(
        k_tok, (BATCH_SIZE, MAX_SEQUENCE), 0, INPUT_SIZE, dtype=jnp.int32)
    params = init_params(
        k_par, input_size=INPUT_SIZE, output_size=OUTPUT_SIZE,
        embedding_size=EMBEDDING_SIZE, n_layers=N_LAYERS,
        hidden_size=HIDDEN_SIZE)

    fwd = jax.jit(functools.partial(char_lstm_forward, n_layers=N_LAYERS))
    logprobs, (h_n, c_n) = fwd(tokens, params)
    jax.block_until_ready((logprobs, h_n, c_n))

    assert logprobs.shape == (BATCH_SIZE, OUTPUT_SIZE)
    assert h_n.shape == (N_LAYERS * 2, BATCH_SIZE, HIDDEN_SIZE)
    assert c_n.shape == (N_LAYERS * 2, BATCH_SIZE, HIDDEN_SIZE)

    # Numerical cross-check against a pure-JAX implementation of the module.
    with jax.default_matmul_precision("float32"):
        ref_logp, (ref_h, ref_c) = char_lstm_reference(
            tokens, params, n_layers=N_LAYERS)
    ok = (jnp.allclose(logprobs, ref_logp, rtol=2e-3, atol=2e-3)
          and jnp.allclose(h_n, ref_h, rtol=2e-3, atol=2e-3)
          and jnp.allclose(c_n, ref_c, rtol=2e-3, atol=2e-3))
    assert bool(ok), "Pallas kernel does not match the pure-JAX reference"

    print("KERNEL_OK")
</pallas_src>

<mosaic_0001>
module attributes {stable_mosaic.version = 11 : i64} {
  func.func @_char_lstm_kernel(%arg0: memref<128x32xf32, #tpu.memory_space<vmem>>, %arg1: memref<32x256xf32, #tpu.memory_space<vmem>>, %arg2: memref<64x256xf32, #tpu.memory_space<vmem>>, %arg3: memref<1x256xf32, #tpu.memory_space<vmem>>, %arg4: memref<128x256xf32, #tpu.memory_space<vmem>>, %arg5: memref<64x256xf32, #tpu.memory_space<vmem>>, %arg6: memref<1x256xf32, #tpu.memory_space<vmem>>, %arg7: memref<64x10xf32, #tpu.memory_space<vmem>>, %arg8: memref<1x10xf32, #tpu.memory_space<vmem>>, %arg9: memref<8x10xf32, #tpu.memory_space<vmem>>, %arg10: memref<4x8x32xf32, #tpu.memory_space<vmem>>, %arg11: memref<4x8x32xf32, #tpu.memory_space<vmem>>, %arg12: memref<128x256xf32, #tpu.memory_space<vmem>>, %arg13: memref<128x128xf32, #tpu.memory_space<vmem>>) attributes {dimension_semantics = [], scalar_prefetch = 0 : i64, scratch_operands = 2 : i64, tpu.core_type = #tpu.core_type<tc>} {
    %c0 = arith.constant 0 : index
    %c0_0 = arith.constant 0 : index
    %0 = vector.load %arg0[%c0, %c0_0] : memref<128x32xf32, #tpu.memory_space<vmem>>, vector<128x32xf32>
    %cst = arith.constant 0xFF800000 : f32
    %1 = vector.broadcast %cst : f32 to vector<8x64xf32>
    %c0_1 = arith.constant 0 : index
    %c0_2 = arith.constant 0 : index
    %2 = vector.load %arg1[%c0_1, %c0_2] : memref<32x256xf32, #tpu.memory_space<vmem>>, vector<32x256xf32>
    %c0_3 = arith.constant 0 : index
    %c0_4 = arith.constant 0 : index
    %3 = vector.load %arg2[%c0_3, %c0_4] : memref<64x256xf32, #tpu.memory_space<vmem>>, vector<64x256xf32>
    %c0_5 = arith.constant 0 : index
    %c0_6 = arith.constant 0 : index
    %4 = vector.load %arg3[%c0_5, %c0_6] : memref<1x256xf32, #tpu.memory_space<vmem>>, vector<1x256xf32>
    %cst_7 = arith.constant dense<0.000000e+00> : vector<128x256xf32>
    %5 = tpu.matmul %0, %2, %cst_7 {dimension_numbers = #tpu.dot_dimension_numbers<[1], [0], [0], [1], [0, 0, 1, 1], [], []>} : vector<128x32xf32>, vector<32x256xf32>, vector<128x256xf32> -> vector<128x256xf32>
    %6 = vector.broadcast %4 : vector<1x256xf32> to vector<128x256xf32>
    %7 = arith.addf %5, %6 : vector<128x256xf32>
    %c0_8 = arith.constant 0 : index
    %c0_9 = arith.constant 0 : index
    %8 = vector.load %arg12[%c0_8, %c0_9] : memref<128x256xf32, #tpu.memory_space<vmem>>, vector<128x256xf32>
    tpu.vector_store %arg12[%c0_8, %c0_9], %7 {strides = array<i32>} : memref<128x256xf32, #tpu.memory_space<vmem>>, vector<128x256xf32>,
    %cst_10 = arith.constant 0.000000e+00 : f32
    %9 = vector.broadcast %cst_10 : f32 to vector<8x64xf32>
    %cst_11 = arith.constant 0.000000e+00 : f32
    %10 = vector.broadcast %cst_11 : f32 to vector<8x64xf32>
    %c0_12 = arith.constant 0 : index
    %c0_13 = arith.constant 0 : index
    %11 = vector.load %arg12[%c0_12, %c0_13] : memref<128x256xf32, #tpu.memory_space<vmem>>, vector<8x256xf32>
    %cst_14 = arith.constant dense<0.000000e+00> : vector<8x256xf32>
    %12 = tpu.matmul %9, %3, %cst_14 {dimension_numbers = #tpu.dot_dimension_numbers<[1], [0], [0], [1], [0, 0, 1, 1], [], []>} : vector<8x64xf32>, vector<64x256xf32>, vector<8x256xf32> -> vector<8x256xf32>
    %13 = arith.addf %11, %12 : vector<8x256xf32>
    %14 = vector.extract_strided_slice %13 {offsets = [0, 0], sizes = [8, 192], strides = [1, 1]} : vector<8x256xf32> to vector<8x192xf32>
    %15 = arith.negf %14 : vector<8x192xf32>
    %16 = math.exp %15 : vector<8x192xf32>
    %cst_15 = arith.constant 1.000000e+00 : f32
    %17 = vector.broadcast %cst_15 : f32 to vector<8x192xf32>
    %18 = arith.addf %17, %16 : vector<8x192xf32>
    %19 = arith.divf %17, %18 : vector<8x192xf32>
    %20 = vector.extract_strided_slice %13 {offsets = [0, 192], sizes = [8, 64], strides = [1, 1]} : vector<8x256xf32> to vector<8x64xf32>
    %21 = math.tanh %20 : vector<8x64xf32>
    %22 = vector.extract_strided_slice %19 {offsets = [0, 0], sizes = [8, 64], strides = [1, 1]} : vector<8x192xf32> to vector<8x64xf32>
    %23 = vector.extract_strided_slice %19 {offsets = [0, 64], sizes = [8, 64], strides = [1, 1]} : vector<8x192xf32> to vector<8x64xf32>
    %24 = vector.extract_strided_slice %19 {offsets = [0, 128], sizes = [8, 64], strides = [1, 1]} : vector<8x192xf32> to vector<8x64xf32>
    %25 = arith.mulf %23, %10 : vector<8x64xf32>
    %26 = arith.mulf %22, %21 : vector<8x64xf32>
    %27 = arith.addf %25, %26 : vector<8x64xf32>
    %28 = math.tanh %27 : vector<8x64xf32>
    %29 = arith.mulf %24, %28 : vector<8x64xf32>
    %c0_16 = arith.constant 0 : index
    %c0_17 = arith.constant 0 : index
    %30 = vector.load %arg13[%c0_16, %c0_17] : memref<128x128xf32, #tpu.memory_space<vmem>>, vector<8x64xf32>
    tpu.vector_store %arg13[%c0_16, %c0_17], %29 {strides = array<i32>} : memref<128x128xf32, #tpu.memory_space<vmem>>, vector<8x64xf32>,
    %c120 = arith.constant 120 : index
    %c64 = arith.constant 64 : index
    %31 = vector.load %arg13[%c120, %c64] : memref<128x128xf32, #tpu.memory_space<vmem>>, vector<8x64xf32>
    tpu.vector_store %arg13[%c120, %c64], %29 {strides = array<i32>} : memref<128x128xf32, #tpu.memory_space<vmem>>, vector<8x64xf32>,
    %c8 = arith.constant 8 : index
    %c0_18 = arith.constant 0 : index
    %32 = vector.load %arg12[%c8, %c0_18] : memref<128x256xf32, #tpu.memory_space<vmem>>, vector<8x256xf32>
    %cst_19 = arith.constant dense<0.000000e+00> : vector<8x256xf32>
    %33 = tpu.matmul %29, %3, %cst_19 {dimension_numbers = #tpu.dot_dimension_numbers<[1], [0], [0], [1], [0, 0, 1, 1], [], []>} : vector<8x64xf32>, vector<64x256xf32>, vector<8x256xf32> -> vector<8x256xf32>
    %34 = arith.addf %32, %33 : vector<8x256xf32>
    %35 = vector.extract_strided_slice %34 {offsets = [0, 0], sizes = [8, 192], strides = [1, 1]} : vector<8x256xf32> to vector<8x192xf32>
    %36 = arith.negf %35 : vector<8x192xf32>
    %37 = math.exp %36 : vector<8x192xf32>
    %cst_20 = arith.constant 1.000000e+00 : f32
    %38 = vector.broadcast %cst_20 : f32 to vector<8x192xf32>
    %39 = arith.addf %38, %37 : vector<8x192xf32>
    %40 = arith.divf %38, %39 : vector<8x192xf32>
    %41 = vector.extract_strided_slice %34 {offsets = [0, 192], sizes = [8, 64], strides = [1, 1]} : vector<8x256xf32> to vector<8x64xf32>
    %42 = math.tanh %41 : vector<8x64xf32>
    %43 = vector.extract_strided_slice %40 {offsets = [0, 0], sizes = [8, 64], strides = [1, 1]} : vector<8x192xf32> to vector<8x64xf32>
    %44 = vector.extract_strided_slice %40 {offsets = [0, 64], sizes = [8, 64], strides = [1, 1]} : vector<8x192xf32> to vector<8x64xf32>
    %45 = vector.extract_strided_slice %40 {offsets = [0, 128], sizes = [8, 64], strides = [1, 1]} : vector<8x192xf32> to vector<8x64xf32>
    %46 = arith.mulf %44, %27 : vector<8x64xf32>
    %47 = arith.mulf %43, %42 : vector<8x64xf32>
    %48 = arith.addf %46, %47 : vector<8x64xf32>
    %49 = math.tanh %48 : vector<8x64xf32>
    %50 = arith.mulf %45, %49 : vector<8x64xf32>
    %c8_21 = arith.constant 8 : index
    %c0_22 = arith.constant 0 : index
    %51 = vector.load %arg13[%c8_21, %c0_22] : memref<128x128xf32, #tpu.memory_space<vmem>>, vector<8x64xf32>
    tpu.vector_store %arg13[%c8_21, %c0_22], %50 {strides = array<i32>} : memref<128x128xf32, #tpu.memory_space<vmem>>, vector<8x64xf32>,
    %c112 = arith.constant 112 : index
    %c64_23 = arith.constant 64 : index
    %52 = vector.load %arg13[%c112, %c64_23] : memref<128x128xf32, #tpu.memory_space<vmem>>, vector<8x64xf32>
    tpu.vector_store %arg13[%c112, %c64_23], %50 {strides = array<i32>} : memref<128x128xf32, #tpu.memory_space<vmem>>, vector<8x64xf32>,
    %c16 = arith.constant 16 : index
    %c0_24 = arith.constant 0 : index
    %53 = vector.load %arg12[%c16, %c0_24] : memref<128x256xf32, #tpu.memory_space<vmem>>, vector<8x256xf32>
    %cst_25 = arith.constant dense<0.000000e+00> : vector<8x256xf32>
    %54 = tpu.matmul %50, %3, %cst_25 {dimension_numbers = #tpu.dot_dimension_numbers<[1], [0], [0], [1], [0, 0, 1, 1], [], []>} : vector<8x64xf32>, vector<64x256xf32>, vector<8x256xf32> -> vector<8x256xf32>
    %55 = arith.addf %53, %54 : vector<8x256xf32>
    %56 = vector.extract_strided_slice %55 {offsets = [0, 0], sizes = [8, 192], strides = [1, 1]} : vector<8x256xf32> to vector<8x192xf32>
    %57 = arith.negf %56 : vector<8x192xf32>
    %58 = math.exp %57 : vector<8x192xf32>
    %cst_26 = arith.constant 1.000000e+00 : f32
    %59 = vector.broadcast %cst_26 : f32 to vector<8x192xf32>
    %60 = arith.addf %59, %58 : vector<8x192xf32>
    %61 = arith.divf %59, %60 : vector<8x192xf32>
    %62 = vector.extract_strided_slice %55 {offsets = [0, 192], sizes = [8, 64], strides = [1, 1]} : vector<8x256xf32> to vector<8x64xf32>
    %63 = math.tanh %62 : vector<8x64xf32>
    %64 = vector.extract_strided_slice %61 {offsets = [0, 0], sizes = [8, 64], strides = [1, 1]} : vector<8x192xf32> to vector<8x64xf32>
    %65 = vector.extract_strided_slice %61 {offsets = [0, 64], sizes = [8, 64], strides = [1, 1]} : vector<8x192xf32> to vector<8x64xf32>
    %66 = vector.extract_strided_slice %61 {offsets = [0, 128], sizes = [8, 64], strides = [1, 1]} : vector<8x192xf32> to vector<8x64xf32>
    %67 = arith.mulf %65, %48 : vector<8x64xf32>
    %68 = arith.mulf %64, %63 : vector<8x64xf32>
    %69 = arith.addf %67, %68 : vector<8x64xf32>
    %70 = math.tanh %69 : vector<8x64xf32>
    %71 = arith.mulf %66, %70 : vector<8x64xf32>
    %c16_27 = arith.constant 16 : index
    %c0_28 = arith.constant 0 : index
    %72 = vector.load %arg13[%c16_27, %c0_28] : memref<128x128xf32, #tpu.memory_space<vmem>>, vector<8x64xf32>
    tpu.vector_store %arg13[%c16_27, %c0_28], %71 {strides = array<i32>} : memref<128x128xf32, #tpu.memory_space<vmem>>, vector<8x64xf32>,
    %c104 = arith.constant 104 : index
    %c64_29 = arith.constant 64 : index
    %73 = vector.load %arg13[%c104, %c64_29] : memref<128x128xf32, #tpu.memory_space<vmem>>, vector<8x64xf32>
    tpu.vector_store %arg13[%c104, %c64_29], %71 {strides = array<i32>} : memref<128x128xf32, #tpu.memory_space<vmem>>, vector<8x64xf32>,
    %c24 = arith.constant 24 : index
    %c0_30 = arith.constant 0 : index
    %74 = vector.load %arg12[%c24, %c0_30] : memref<128x256xf32, #tpu.memory_space<vmem>>, vector<8x256xf32>
    %cst_31 = arith.constant dense<0.000000e+00> : vector<8x256xf32>
    %75 = tpu.matmul %71, %3, %cst_31 {dimension_numbers = #tpu.dot_dimension_numbers<[1], [0], [0], [1], [0, 0, 1, 1], [], []>} : vector<8x64xf32>, vector<64x256xf32>, vector<8x256xf32> -> vector<8x256xf32>
    %76 = arith.addf %74, %75 : vector<8x256xf32>
    %77 = vector.extract_strided_slice %76 {offsets = [0, 0], sizes = [8, 192], strides = [1, 1]} : vector<8x256xf32> to vector<8x192xf32>
    %78 = arith.negf %77 : vector<8x192xf32>
    %79 = math.exp %78 : vector<8x192xf32>
    %cst_32 = arith.constant 1.000000e+00 : f32
    %80 = vector.broadcast %cst_32 : f32 to vector<8x192xf32>
    %81 = arith.addf %80, %79 : vector<8x192xf32>
    %82 = arith.divf %80, %81 : vector<8x192xf32>
    %83 = vector.extract_strided_slice %76 {offsets = [0, 192], sizes = [8, 64], strides = [1, 1]} : vector<8x256xf32> to vector<8x64xf32>
    %84 = math.tanh %83 : vector<8x64xf32>
    %85 = vector.extract_strided_slice %82 {offsets = [0, 0], sizes = [8, 64], strides = [1, 1]} : vector<8x192xf32> to vector<8x64xf32>
    %86 = vector.extract_strided_slice %82 {offsets = [0, 64], sizes = [8, 64], strides = [1, 1]} : vector<8x192xf32> to vector<8x64xf32>
    %87 = vector.extract_strided_slice %82 {offsets = [0, 128], sizes = [8, 64], strides = [1, 1]} : vector<8x192xf32> to vector<8x64xf32>
    %88 = arith.mulf %86, %69 : vector<8x64xf32>
    %89 = arith.mulf %85, %84 : vector<8x64xf32>
    %90 = arith.addf %88, %89 : vector<8x64xf32>
    %91 = math.tanh %90 : vector<8x64xf32>
    %92 = arith.mulf %87, %91 : vector<8x64xf32>
    %c24_33 = arith.constant 24 : index
    %c0_34 = arith.constant 0 : index
    %93 = vector.load %arg13[%c24_33, %c0_34] : memref<128x128xf32, #tpu.memory_space<vmem>>, vector<8x64xf32>
    tpu.vector_store %arg13[%c24_33, %c0_34], %92 {strides = array<i32>} : memref<128x128xf32, #tpu.memory_space<vmem>>, vector<8x64xf32>,
    %c96 = arith.constant 96 : index
    %c64_35 = arith.constant 64 : index
    %94 = vector.load %arg13[%c96, %c64_35] : memref<128x128xf32, #tpu.memory_space<vmem>>, vector<8x64xf32>
    tpu.vector_store %arg13[%c96, %c64_35], %92 {strides = array<i32>} : memref<128x128xf32, #tpu.memory_space<vmem>>, vector<8x64xf32>,
    %c32 = arith.constant 32 : index
    %c0_36 = arith.constant 0 : index
    %95 = vector.load %arg12[%c32, %c0_36] : memref<128x256xf32, #tpu.memory_space<vmem>>, vector<8x256xf32>
    %cst_37 = arith.constant dense<0.000000e+00> : vector<8x256xf32>
    %96 = tpu.matmul %92, %3, %cst_37 {dimension_numbers = #tpu.dot_dimension_numbers<[1], [0], [0], [1], [0, 0, 1, 1], [], []>} : vector<8x64xf32>, vector<64x256xf32>, vector<8x256xf32> -> vector<8x256xf32>
    %97 = arith.addf %95, %96 : vector<8x256xf32>
    %98 = vector.extract_strided_slice %97 {offsets = [0, 0], sizes = [8, 192], strides = [1, 1]} : vector<8x256xf32> to vector<8x192xf32>
    %99 = arith.negf %98 : vector<8x192xf32>
    %100 = math.exp %99 : vector<8x192xf32>
    %cst_38 = arith.constant 1.000000e+00 : f32
    %101 = vector.broadcast %cst_38 : f32 to vector<8x192xf32>
    %102 = arith.addf %101, %100 : vector<8x192xf32>
    %103 = arith.divf %101, %102 : vector<8x192xf32>
    %104 = vector.extract_strided_slice %97 {offsets = [0, 192], sizes = [8, 64], strides = [1, 1]} : vector<8x256xf32> to vector<8x64xf32>
    %105 = math.tanh %104 : vector<8x64xf32>
    %106 = vector.extract_strided_slice %103 {offsets = [0, 0], sizes = [8, 64], strides = [1, 1]} : vector<8x192xf32> to vector<8x64xf32>
    %107 = vector.extract_strided_slice %103 {offsets = [0, 64], sizes = [8, 64], strides = [1, 1]} : vector<8x192xf32> to vector<8x64xf32>
    %108 = vector.extract_strided_slice %103 {offsets = [0, 128], sizes = [8, 64], strides = [1, 1]} : vector<8x192xf32> to vector<8x64xf32>
    %109 = arith.mulf %107, %90 : vector<8x64xf32>
    %110 = arith.mulf %106, %105 : vector<8x64xf32>
    %111 = arith.addf %109, %110 : vector<8x64xf32>
    %112 = math.tanh %111 : vector<8x64xf32>
    %113 = arith.mulf %108, %112 : vector<8x64xf32>
    %c32_39 = arith.constant 32 : index
    %c0_40 = arith.constant 0 : index
    %114 = vector.load %arg13[%c32_39, %c0_40] : memref<128x128xf32, #tpu.memory_space<vmem>>, vector<8x64xf32>
    tpu.vector_store %arg13[%c32_39, %c0_40], %113 {strides = array<i32>} : memref<128x128xf32, #tpu.memory_space<vmem>>, vector<8x64xf32>,
    %c88 = arith.constant 88 : index
    %c64_41 = arith.constant 64 : index
    %115 = vector.load %arg13[%c88, %c64_41] : memref<128x128xf32, #tpu.memory_space<vmem>>, vector<8x64xf32>
    tpu.vector_store %arg13[%c88, %c64_41], %113 {strides = array<i32>} : memref<128x128xf32, #tpu.memory_space<vmem>>, vector<8x64xf32>,
    %c40 = arith.constant 40 : index
    %c0_42 = arith.constant 0 : index
    %116 = vector.load %arg12[%c40, %c0_42] : memref<128x256xf32, #tpu.memory_space<vmem>>, vector<8x256xf32>
    %cst_43 = arith.constant dense<0.000000e+00> : vector<8x256xf32>
    %117 = tpu.matmul %113, %3, %cst_43 {dimension_numbers = #tpu.dot_dimension_numbers<[1], [0], [0], [1], [0, 0, 1, 1], [], []>} : vector<8x64xf32>, vector<64x256xf32>, vector<8x256xf32> -> vector<8x256xf32>
    %118 = arith.addf %116, %117 : vector<8x256xf32>
    %119 = vector.extract_strided_slice %118 {offsets = [0, 0], sizes = [8, 192], strides = [1, 1]} : vector<8x256xf32> to vector<8x192xf32>
    %120 = arith.negf %119 : vector<8x192xf32>
    %121 = math.exp %120 : vector<8x192xf32>
    %cst_44 = arith.constant 1.000000e+00 : f32
    %122 = vector.broadcast %cst_44 : f32 to vector<8x192xf32>
    %123 = arith.addf %122, %121 : vector<8x192xf32>
    %124 = arith.divf %122, %123 : vector<8x192xf32>
    %125 = vector.extract_strided_slice %118 {offsets = [0, 192], sizes = [8, 64], strides = [1, 1]} : vector<8x256xf32> to vector<8x64xf32>
    %126 = math.tanh %125 : vector<8x64xf32>
    %127 = vector.extract_strided_slice %124 {offsets = [0, 0], sizes = [8, 64], strides = [1, 1]} : vector<8x192xf32> to vector<8x64xf32>
    %128 = vector.extract_strided_slice %124 {offsets = [0, 64], sizes = [8, 64], strides = [1, 1]} : vector<8x192xf32> to vector<8x64xf32>
    %129 = vector.extract_strided_slice %124 {offsets = [0, 128], sizes = [8, 64], strides = [1, 1]} : vector<8x192xf32> to vector<8x64xf32>
    %130 = arith.mulf %128, %111 : vector<8x64xf32>
    %131 = arith.mulf %127, %126 : vector<8x64xf32>
    %132 = arith.addf %130, %131 : vector<8x64xf32>
    %133 = math.tanh %132 : vector<8x64xf32>
    %134 = arith.mulf %129, %133 : vector<8x64xf32>
    %c40_45 = arith.constant 40 : index
    %c0_46 = arith.constant 0 : index
    %135 = vector.load %arg13[%c40_45, %c0_46] : memref<128x128xf32, #tpu.memory_space<vmem>>, vector<8x64xf32>
    tpu.vector_store %arg13[%c40_45, %c0_46], %134 {strides = array<i32>} : memref<128x128xf32, #tpu.memory_space<vmem>>, vector<8x64xf32>,
    %c80 = arith.constant 80 : index
    %c64_47 = arith.constant 64 : index
    %136 = vector.load %arg13[%c80, %c64_47] : memref<128x128xf32, #tpu.memory_space<vmem>>, vector<8x64xf32>
    tpu.vector_store %arg13[%c80, %c64_47], %134 {strides = array<i32>} : memref<128x128xf32, #tpu.memory_space<vmem>>, vector<8x64xf32>,
    %c48 = arith.constant 48 : index
    %c0_48 = arith.constant 0 : index
    %137 = vector.load %arg12[%c48, %c0_48] : memref<128x256xf32, #tpu.memory_space<vmem>>, vector<8x256xf32>
    %cst_49 = arith.constant dense<0.000000e+00> : vector<8x256xf32>
    %138 = tpu.matmul %134, %3, %cst_49 {dimension_numbers = #tpu.dot_dimension_numbers<[1], [0], [0], [1], [0, 0, 1, 1], [], []>} : vector<8x64xf32>, vector<64x256xf32>, vector<8x256xf32> -> vector<8x256xf32>
    %139 = arith.addf %137, %138 : vector<8x256xf32>
    %140 = vector.extract_strided_slice %139 {offsets = [0, 0], sizes = [8, 192], strides = [1, 1]} : vector<8x256xf32> to vector<8x192xf32>
    %141 = arith.negf %140 : vector<8x192xf32>
    %142 = math.exp %141 : vector<8x192xf32>
    %cst_50 = arith.constant 1.000000e+00 : f32
    %143 = vector.broadcast %cst_50 : f32 to vector<8x192xf32>
    %144 = arith.addf %143, %142 : vector<8x192xf32>
    %145 = arith.divf %143, %144 : vector<8x192xf32>
    %146 = vector.extract_strided_slice %139 {offsets = [0, 192], sizes = [8, 64], strides = [1, 1]} : vector<8x256xf32> to vector<8x64xf32>
    %147 = math.tanh %146 : vector<8x64xf32>
    %148 = vector.extract_strided_slice %145 {offsets = [0, 0], sizes = [8, 64], strides = [1, 1]} : vector<8x192xf32> to vector<8x64xf32>
    %149 = vector.extract_strided_slice %145 {offsets = [0, 64], sizes = [8, 64], strides = [1, 1]} : vector<8x192xf32> to vector<8x64xf32>
    %150 = vector.extract_strided_slice %145 {offsets = [0, 128], sizes = [8, 64], strides = [1, 1]} : vector<8x192xf32> to vector<8x64xf32>
    %151 = arith.mulf %149, %132 : vector<8x64xf32>
    %152 = arith.mulf %148, %147 : vector<8x64xf32>
    %153 = arith.addf %151, %152 : vector<8x64xf32>
    %154 = math.tanh %153 : vector<8x64xf32>
    %155 = arith.mulf %150, %154 : vector<8x64xf32>
    %c48_51 = arith.constant 48 : index
    %c0_52 = arith.constant 0 : index
    %156 = vector.load %arg13[%c48_51, %c0_52] : memref<128x128xf32, #tpu.memory_space<vmem>>, vector<8x64xf32>
    tpu.vector_store %arg13[%c48_51, %c0_52], %155 {strides = array<i32>} : memref<128x128xf32, #tpu.memory_space<vmem>>, vector<8x64xf32>,
    %c72 = arith.constant 72 : index
    %c64_53 = arith.constant 64 : index
    %157 = vector.load %arg13[%c72, %c64_53] : memref<128x128xf32, #tpu.memory_space<vmem>>, vector<8x64xf32>
    tpu.vector_store %arg13[%c72, %c64_53], %155 {strides = array<i32>} : memref<128x128xf32, #tpu.memory_space<vmem>>, vector<8x64xf32>,
    %c56 = arith.constant 56 : index
    %c0_54 = arith.constant 0 : index
    %158 = vector.load %arg12[%c56, %c0_54] : memref<128x256xf32, #tpu.memory_space<vmem>>, vector<8x256xf32>
    %cst_55 = arith.constant dense<0.000000e+00> : vector<8x256xf32>
    %159 = tpu.matmul %155, %3, %cst_55 {dimension_numbers = #tpu.dot_dimension_numbers<[1], [0], [0], [1], [0, 0, 1, 1], [], []>} : vector<8x64xf32>, vector<64x256xf32>, vector<8x256xf32> -> vector<8x256xf32>
    %160 = arith.addf %158, %159 : vector<8x256xf32>
    %161 = vector.extract_strided_slice %160 {offsets = [0, 0], sizes = [8, 192], strides = [1, 1]} : vector<8x256xf32> to vector<8x192xf32>
    %162 = arith.negf %161 : vector<8x192xf32>
    %163 = math.exp %162 : vector<8x192xf32>
    %cst_56 = arith.constant 1.000000e+00 : f32
    %164 = vector.broadcast %cst_56 : f32 to vector<8x192xf32>
    %165 = arith.addf %164, %163 : vector<8x192xf32>
    %166 = arith.divf %164, %165 : vector<8x192xf32>
    %167 = vector.extract_strided_slice %160 {offsets = [0, 192], sizes = [8, 64], strides = [1, 1]} : vector<8x256xf32> to vector<8x64xf32>
    %168 = math.tanh %167 : vector<8x64xf32>
    %169 = vector.extract_strided_slice %166 {offsets = [0, 0], sizes = [8, 64], strides = [1, 1]} : vector<8x192xf32> to vector<8x64xf32>
    %170 = vector.extract_strided_slice %166 {offsets = [0, 64], sizes = [8, 64], strides = [1, 1]} : vector<8x192xf32> to vector<8x64xf32>
    %171 = vector.extract_strided_slice %166 {offsets = [0, 128], sizes = [8, 64], strides = [1, 1]} : vector<8x192xf32> to vector<8x64xf32>
    %172 = arith.mulf %170, %153 : vector<8x64xf32>
    %173 = arith.mulf %169, %168 : vector<8x64xf32>
    %174 = arith.addf %172, %173 : vector<8x64xf32>
    %175 = math.tanh %174 : vector<8x64xf32>
    %176 = arith.mulf %171, %175 : vector<8x64xf32>
    %c56_57 = arith.constant 56 : index
    %c0_58 = arith.constant 0 : index
    %177 = vector.load %arg13[%c56_57, %c0_58] : memref<128x128xf32, #tpu.memory_space<vmem>>, vector<8x64xf32>
    tpu.vector_store %arg13[%c56_57, %c0_58], %176 {strides = array<i32>} : memref<128x128xf32, #tpu.memory_space<vmem>>, vector<8x64xf32>,
    %c64_59 = arith.constant 64 : index
    %c64_60 = arith.constant 64 : index
    %178 = vector.load %arg13[%c64_59, %c64_60] : memref<128x128xf32, #tpu.memory_space<vmem>>, vector<8x64xf32>
    tpu.vector_store %arg13[%c64_59, %c64_60], %176 {strides = array<i32>} : memref<128x128xf32, #tpu.memory_space<vmem>>, vector<8x64xf32>,
    %c64_61 = arith.constant 64 : index
    %c0_62 = arith.constant 0 : index
    %179 = vector.load %arg12[%c64_61, %c0_62] : memref<128x256xf32, #tpu.memory_space<vmem>>, vector<8x256xf32>
    %cst_63 = arith.constant dense<0.000000e+00> : vector<8x256xf32>
    %180 = tpu.matmul %176, %3, %cst_63 {dimension_numbers = #tpu.dot_dimension_numbers<[1], [0], [0], [1], [0, 0, 1, 1], [], []>} : vector<8x64xf32>, vector<64x256xf32>, vector<8x256xf32> -> vector<8x256xf32>
    %181 = arith.addf %179, %180 : vector<8x256xf32>
    %182 = vector.extract_strided_slice %181 {offsets = [0, 0], sizes = [8, 192], strides = [1, 1]} : vector<8x256xf32> to vector<8x192xf32>
    %183 = arith.negf %182 : vector<8x192xf32>
    %184 = math.exp %183 : vector<8x192xf32>
    %cst_64 = arith.constant 1.000000e+00 : f32
    %185 = vector.broadcast %cst_64 : f32 to vector<8x192xf32>
    %186 = arith.addf %185, %184 : vector<8x192xf32>
    %187 = arith.divf %185, %186 : vector<8x192xf32>
    %188 = vector.extract_strided_slice %181 {offsets = [0, 192], sizes = [8, 64], strides = [1, 1]} : vector<8x256xf32> to vector<8x64xf32>
    %189 = math.tanh %188 : vector<8x64xf32>
    %190 = vector.extract_strided_slice %187 {offsets = [0, 0], sizes = [8, 64], strides = [1, 1]} : vector<8x192xf32> to vector<8x64xf32>
    %191 = vector.extract_strided_slice %187 {offsets = [0, 64], sizes = [8, 64], strides = [1, 1]} : vector<8x192xf32> to vector<8x64xf32>
    %192 = vector.extract_strided_slice %187 {offsets = [0, 128], sizes = [8, 64], strides = [1, 1]} : vector<8x192xf32> to vector<8x64xf32>
    %193 = arith.mulf %191, %174 : vector<8x64xf32>
    %194 = arith.mulf %190, %189 : vector<8x64xf32>
    %195 = arith.addf %193, %194 : vector<8x64xf32>
    %196 = math.tanh %195 : vector<8x64xf32>
    %197 = arith.mulf %192, %196 : vector<8x64xf32>
    %c64_65 = arith.constant 64 : index
    %c0_66 = arith.constant 0 : index
    %198 = vector.load %arg13[%c64_65, %c0_66] : memref<128x128xf32, #tpu.memory_space<vmem>>, vector<8x64xf32>
    tpu.vector_store %arg13[%c64_65, %c0_66], %197 {strides = array<i32>} : memref<128x128xf32, #tpu.memory_space<vmem>>, vector<8x64xf32>,
    %c56_67 = arith.constant 56 : index
    %c64_68 = arith.constant 64 : index
    %199 = vector.load %arg13[%c56_67, %c64_68] : memref<128x128xf32, #tpu.memory_space<vmem>>, vector<8x64xf32>
    tpu.vector_store %arg13[%c56_67, %c64_68], %197 {strides = array<i32>} : memref<128x128xf32, #tpu.memory_space<vmem>>, vector<8x64xf32>,
    %c72_69 = arith.constant 72 : index
    %c0_70 = arith.constant 0 : index
    %200 = vector.load %arg12[%c72_69, %c0_70] : memref<128x256xf32, #tpu.memory_space<vmem>>, vector<8x256xf32>
    %cst_71 = arith.constant dense<0.000000e+00> : vector<8x256xf32>
    %201 = tpu.matmul %197, %3, %cst_71 {dimension_numbers = #tpu.dot_dimension_numbers<[1], [0], [0], [1], [0, 0, 1, 1], [], []>} : vector<8x64xf32>, vector<64x256xf32>, vector<8x256xf32> -> vector<8x256xf32>
    %202 = arith.addf %200, %201 : vector<8x256xf32>
    %203 = vector.extract_strided_slice %202 {offsets = [0, 0], sizes = [8, 192], strides = [1, 1]} : vector<8x256xf32> to vector<8x192xf32>
    %204 = arith.negf %203 : vector<8x192xf32>
    %205 = math.exp %204 : vector<8x192xf32>
    %cst_72 = arith.constant 1.000000e+00 : f32
    %206 = vector.broadcast %cst_72 : f32 to vector<8x192xf32>
    %207 = arith.addf %206, %205 : vector<8x192xf32>
    %208 = arith.divf %206, %207 : vector<8x192xf32>
    %209 = vector.extract_strided_slice %202 {offsets = [0, 192], sizes = [8, 64], strides = [1, 1]} : vector<8x256xf32> to vector<8x64xf32>
    %210 = math.tanh %209 : vector<8x64xf32>
    %211 = vector.extract_strided_slice %208 {offsets = [0, 0], sizes = [8, 64], strides = [1, 1]} : vector<8x192xf32> to vector<8x64xf32>
    %212 = vector.extract_strided_slice %208 {offsets = [0, 64], sizes = [8, 64], strides = [1, 1]} : vector<8x192xf32> to vector<8x64xf32>
    %213 = vector.extract_strided_slice %208 {offsets = [0, 128], sizes = [8, 64], strides = [1, 1]} : vector<8x192xf32> to vector<8x64xf32>
    %214 = arith.mulf %212, %195 : vector<8x64xf32>
    %215 = arith.mulf %211, %210 : vector<8x64xf32>
    %216 = arith.addf %214, %215 : vector<8x64xf32>
    %217 = math.tanh %216 : vector<8x64xf32>
    %218 = arith.mulf %213, %217 : vector<8x64xf32>
    %c72_73 = arith.constant 72 : index
    %c0_74 = arith.constant 0 : index
    %219 = vector.load %arg13[%c72_73, %c0_74] : memref<128x128xf32, #tpu.memory_space<vmem>>, vector<8x64xf32>
    tpu.vector_store %arg13[%c72_73, %c0_74], %218 {strides = array<i32>} : memref<128x128xf32, #tpu.memory_space<vmem>>, vector<8x64xf32>,
    %c48_75 = arith.constant 48 : index
    %c64_76 = arith.constant 64 : index
    %220 = vector.load %arg13[%c48_75, %c64_76] : memref<128x128xf32, #tpu.memory_space<vmem>>, vector<8x64xf32>
    tpu.vector_store %arg13[%c48_75, %c64_76], %218 {strides = array<i32>} : memref<128x128xf32, #tpu.memory_space<vmem>>, vector<8x64xf32>,
    %c80_77 = arith.constant 80 : index
    %c0_78 = arith.constant 0 : index
    %221 = vector.load %arg12[%c80_77, %c0_78] : memref<128x256xf32, #tpu.memory_space<vmem>>, vector<8x256xf32>
    %cst_79 = arith.constant dense<0.000000e+00> : vector<8x256xf32>
    %222 = tpu.matmul %218, %3, %cst_79 {dimension_numbers = #tpu.dot_dimension_numbers<[1], [0], [0], [1], [0, 0, 1, 1], [], []>} : vector<8x64xf32>, vector<64x256xf32>, vector<8x256xf32> -> vector<8x256xf32>
    %223 = arith.addf %221, %222 : vector<8x256xf32>
    %224 = vector.extract_strided_slice %223 {offsets = [0, 0], sizes = [8, 192], strides = [1, 1]} : vector<8x256xf32> to vector<8x192xf32>
    %225 = arith.negf %224 : vector<8x192xf32>
    %226 = math.exp %225 : vector<8x192xf32>
    %cst_80 = arith.constant 1.000000e+00 : f32
    %227 = vector.broadcast %cst_80 : f32 to vector<8x192xf32>
    %228 = arith.addf %227, %226 : vector<8x192xf32>
    %229 = arith.divf %227, %228 : vector<8x192xf32>
    %230 = vector.extract_strided_slice %223 {offsets = [0, 192], sizes = [8, 64], strides = [1, 1]} : vector<8x256xf32> to vector<8x64xf32>
    %231 = math.tanh %230 : vector<8x64xf32>
    %232 = vector.extract_strided_slice %229 {offsets = [0, 0], sizes = [8, 64], strides = [1, 1]} : vector<8x192xf32> to vector<8x64xf32>
    %233 = vector.extract_strided_slice %229 {offsets = [0, 64], sizes = [8, 64], strides = [1, 1]} : vector<8x192xf32> to vector<8x64xf32>
    %234 = vector.extract_strided_slice %229 {offsets = [0, 128], sizes = [8, 64], strides = [1, 1]} : vector<8x192xf32> to vector<8x64xf32>
    %235 = arith.mulf %233, %216 : vector<8x64xf32>
    %236 = arith.mulf %232, %231 : vector<8x64xf32>
    %237 = arith.addf %235, %236 : vector<8x64xf32>
    %238 = math.tanh %237 : vector<8x64xf32>
    %239 = arith.mulf %234, %238 : vector<8x64xf32>
    %c80_81 = arith.constant 80 : index
    %c0_82 = arith.constant 0 : index
    %240 = vector.load %arg13[%c80_81, %c0_82] : memref<128x128xf32, #tpu.memory_space<vmem>>, vector<8x64xf32>
    tpu.vector_store %arg13[%c80_81, %c0_82], %239 {strides = array<i32>} : memref<128x128xf32, #tpu.memory_space<vmem>>, vector<8x64xf32>,
    %c40_83 = arith.constant 40 : index
    %c64_84 = arith.constant 64 : index
    %241 = vector.load %arg13[%c40_83, %c64_84] : memref<128x128xf32, #tpu.memory_space<vmem>>, vector<8x64xf32>
    tpu.vector_store %arg13[%c40_83, %c64_84], %239 {strides = array<i32>} : memref<128x128xf32, #tpu.memory_space<vmem>>, vector<8x64xf32>,
    %c88_85 = arith.constant 88 : index
    %c0_86 = arith.constant 0 : index
    %242 = vector.load %arg12[%c88_85, %c0_86] : memref<128x256xf32, #tpu.memory_space<vmem>>, vector<8x256xf32>
    %cst_87 = arith.constant dense<0.000000e+00> : vector<8x256xf32>
    %243 = tpu.matmul %239, %3, %cst_87 {dimension_numbers = #tpu.dot_dimension_numbers<[1], [0], [0], [1], [0, 0, 1, 1], [], []>} : vector<8x64xf32>, vector<64x256xf32>, vector<8x256xf32> -> vector<8x256xf32>
    %244 = arith.addf %242, %243 : vector<8x256xf32>
    %245 = vector.extract_strided_slice %244 {offsets = [0, 0], sizes = [8, 192], strides = [1, 1]} : vector<8x256xf32> to vector<8x192xf32>
    %246 = arith.negf %245 : vector<8x192xf32>
    %247 = math.exp %246 : vector<8x192xf32>
    %cst_88 = arith.constant 1.000000e+00 : f32
    %248 = vector.broadcast %cst_88 : f32 to vector<8x192xf32>
    %249 = arith.addf %248, %247 : vector<8x192xf32>
    %250 = arith.divf %248, %249 : vector<8x192xf32>
    %251 = vector.extract_strided_slice %244 {offsets = [0, 192], sizes = [8, 64], strides = [1, 1]} : vector<8x256xf32> to vector<8x64xf32>
    %252 = math.tanh %251 : vector<8x64xf32>
    %253 = vector.extract_strided_slice %250 {offsets = [0, 0], sizes = [8, 64], strides = [1, 1]} : vector<8x192xf32> to vector<8x64xf32>
    %254 = vector.extract_strided_slice %250 {offsets = [0, 64], sizes = [8, 64], strides = [1, 1]} : vector<8x192xf32> to vector<8x64xf32>
    %255 = vector.extract_strided_slice %250 {offsets = [0, 128], sizes = [8, 64], strides = [1, 1]} : vector<8x192xf32> to vector<8x64xf32>
    %256 = arith.mulf %254, %237 : vector<8x64xf32>
    %257 = arith.mulf %253, %252 : vector<8x64xf32>
    %258 = arith.addf %256, %257 : vector<8x64xf32>
    %259 = math.tanh %258 : vector<8x64xf32>
    %260 = arith.mulf %255, %259 : vector<8x64xf32>
    %c88_89 = arith.constant 88 : index
    %c0_90 = arith.constant 0 : index
    %261 = vector.load %arg13[%c88_89, %c0_90] : memref<128x128xf32, #tpu.memory_space<vmem>>, vector<8x64xf32>
    tpu.vector_store %arg13[%c88_89, %c0_90], %260 {strides = array<i32>} : memref<128x128xf32, #tpu.memory_space<vmem>>, vector<8x64xf32>,
    %c32_91 = arith.constant 32 : index
    %c64_92 = arith.constant 64 : index
    %262 = vector.load %arg13[%c32_91, %c64_92] : memref<128x128xf32, #tpu.memory_space<vmem>>, vector<8x64xf32>
    tpu.vector_store %arg13[%c32_91, %c64_92], %260 {strides = array<i32>} : memref<128x128xf32, #tpu.memory_space<vmem>>, vector<8x64xf32>,
    %c96_93 = arith.constant 96 : index
    %c0_94 = arith.constant 0 : index
    %263 = vector.load %arg12[%c96_93, %c0_94] : memref<128x256xf32, #tpu.memory_space<vmem>>, vector<8x256xf32>
    %cst_95 = arith.constant dense<0.000000e+00> : vector<8x256xf32>
    %264 = tpu.matmul %260, %3, %cst_95 {dimension_numbers = #tpu.dot_dimension_numbers<[1], [0], [0], [1], [0, 0, 1, 1], [], []>} : vector<8x64xf32>, vector<64x256xf32>, vector<8x256xf32> -> vector<8x256xf32>
    %265 = arith.addf %263, %264 : vector<8x256xf32>
    %266 = vector.extract_strided_slice %265 {offsets = [0, 0], sizes = [8, 192], strides = [1, 1]} : vector<8x256xf32> to vector<8x192xf32>
    %267 = arith.negf %266 : vector<8x192xf32>
    %268 = math.exp %267 : vector<8x192xf32>
    %cst_96 = arith.constant 1.000000e+00 : f32
    %269 = vector.broadcast %cst_96 : f32 to vector<8x192xf32>
    %270 = arith.addf %269, %268 : vector<8x192xf32>
    %271 = arith.divf %269, %270 : vector<8x192xf32>
    %272 = vector.extract_strided_slice %265 {offsets = [0, 192], sizes = [8, 64], strides = [1, 1]} : vector<8x256xf32> to vector<8x64xf32>
    %273 = math.tanh %272 : vector<8x64xf32>
    %274 = vector.extract_strided_slice %271 {offsets = [0, 0], sizes = [8, 64], strides = [1, 1]} : vector<8x192xf32> to vector<8x64xf32>
    %275 = vector.extract_strided_slice %271 {offsets = [0, 64], sizes = [8, 64], strides = [1, 1]} : vector<8x192xf32> to vector<8x64xf32>
    %276 = vector.extract_strided_slice %271 {offsets = [0, 128], sizes = [8, 64], strides = [1, 1]} : vector<8x192xf32> to vector<8x64xf32>
    %277 = arith.mulf %275, %258 : vector<8x64xf32>
    %278 = arith.mulf %274, %273 : vector<8x64xf32>
    %279 = arith.addf %277, %278 : vector<8x64xf32>
    %280 = math.tanh %279 : vector<8x64xf32>
    %281 = arith.mulf %276, %280 : vector<8x64xf32>
    %c96_97 = arith.constant 96 : index
    %c0_98 = arith.constant 0 : index
    %282 = vector.load %arg13[%c96_97, %c0_98] : memref<128x128xf32, #tpu.memory_space<vmem>>, vector<8x64xf32>
    tpu.vector_store %arg13[%c96_97, %c0_98], %281 {strides = array<i32>} : memref<128x128xf32, #tpu.memory_space<vmem>>, vector<8x64xf32>,
    %c24_99 = arith.constant 24 : index
    %c64_100 = arith.constant 64 : index
    %283 = vector.load %arg13[%c24_99, %c64_100] : memref<128x128xf32, #tpu.memory_space<vmem>>, vector<8x64xf32>
    tpu.vector_store %arg13[%c24_99, %c64_100], %281 {strides = array<i32>} : memref<128x128xf32, #tpu.memory_space<vmem>>, vector<8x64xf32>,
    %c104_101 = arith.constant 104 : index
    %c0_102 = arith.constant 0 : index
    %284 = vector.load %arg12[%c104_101, %c0_102] : memref<128x256xf32, #tpu.memory_space<vmem>>, vector<8x256xf32>
    %cst_103 = arith.constant dense<0.000000e+00> : vector<8x256xf32>
    %285 = tpu.matmul %281, %3, %cst_103 {dimension_numbers = #tpu.dot_dimension_numbers<[1], [0], [0], [1], [0, 0, 1, 1], [], []>} : vector<8x64xf32>, vector<64x256xf32>, vector<8x256xf32> -> vector<8x256xf32>
    %286 = arith.addf %284, %285 : vector<8x256xf32>
    %287 = vector.extract_strided_slice %286 {offsets = [0, 0], sizes = [8, 192], strides = [1, 1]} : vector<8x256xf32> to vector<8x192xf32>
    %288 = arith.negf %287 : vector<8x192xf32>
    %289 = math.exp %288 : vector<8x192xf32>
    %cst_104 = arith.constant 1.000000e+00 : f32
    %290 = vector.broadcast %cst_104 : f32 to vector<8x192xf32>
    %291 = arith.addf %290, %289 : vector<8x192xf32>
    %292 = arith.divf %290, %291 : vector<8x192xf32>
    %293 = vector.extract_strided_slice %286 {offsets = [0, 192], sizes = [8, 64], strides = [1, 1]} : vector<8x256xf32> to vector<8x64xf32>
    %294 = math.tanh %293 : vector<8x64xf32>
    %295 = vector.extract_strided_slice %292 {offsets = [0, 0], sizes = [8, 64], strides = [1, 1]} : vector<8x192xf32> to vector<8x64xf32>
    %296 = vector.extract_strided_slice %292 {offsets = [0, 64], sizes = [8, 64], strides = [1, 1]} : vector<8x192xf32> to vector<8x64xf32>
    %297 = vector.extract_strided_slice %292 {offsets = [0, 128], sizes = [8, 64], strides = [1, 1]} : vector<8x192xf32> to vector<8x64xf32>
    %298 = arith.mulf %296, %279 : vector<8x64xf32>
    %299 = arith.mulf %295, %294 : vector<8x64xf32>
    %300 = arith.addf %298, %299 : vector<8x64xf32>
    %301 = math.tanh %300 : vector<8x64xf32>
    %302 = arith.mulf %297, %301 : vector<8x64xf32>
    %c104_105 = arith.constant 104 : index
    %c0_106 = arith.constant 0 : index
    %303 = vector.load %arg13[%c104_105, %c0_106] : memref<128x128xf32, #tpu.memory_space<vmem>>, vector<8x64xf32>
    tpu.vector_store %arg13[%c104_105, %c0_106], %302 {strides = array<i32>} : memref<128x128xf32, #tpu.memory_space<vmem>>, vector<8x64xf32>,
    %c16_107 = arith.constant 16 : index
    %c64_108 = arith.constant 64 : index
    %304 = vector.load %arg13[%c16_107, %c64_108] : memref<128x128xf32, #tpu.memory_space<vmem>>, vector<8x64xf32>
    tpu.vector_store %arg13[%c16_107, %c64_108], %302 {strides = array<i32>} : memref<128x128xf32, #tpu.memory_space<vmem>>, vector<8x64xf32>,
    %c112_109 = arith.constant 112 : index
    %c0_110 = arith.constant 0 : index
    %305 = vector.load %arg12[%c112_109, %c0_110] : memref<128x256xf32, #tpu.memory_space<vmem>>, vector<8x256xf32>
    %cst_111 = arith.constant dense<0.000000e+00> : vector<8x256xf32>
    %306 = tpu.matmul %302, %3, %cst_111 {dimension_numbers = #tpu.dot_dimension_numbers<[1], [0], [0], [1], [0, 0, 1, 1], [], []>} : vector<8x64xf32>, vector<64x256xf32>, vector<8x256xf32> -> vector<8x256xf32>
    %307 = arith.addf %305, %306 : vector<8x256xf32>
    %308 = vector.extract_strided_slice %307 {offsets = [0, 0], sizes = [8, 192], strides = [1, 1]} : vector<8x256xf32> to vector<8x192xf32>
    %309 = arith.negf %308 : vector<8x192xf32>
    %310 = math.exp %309 : vector<8x192xf32>
    %cst_112 = arith.constant 1.000000e+00 : f32
    %311 = vector.broadcast %cst_112 : f32 to vector<8x192xf32>
    %312 = arith.addf %311, %310 : vector<8x192xf32>
    %313 = arith.divf %311, %312 : vector<8x192xf32>
    %314 = vector.extract_strided_slice %307 {offsets = [0, 192], sizes = [8, 64], strides = [1, 1]} : vector<8x256xf32> to vector<8x64xf32>
    %315 = math.tanh %314 : vector<8x64xf32>
    %316 = vector.extract_strided_slice %313 {offsets = [0, 0], sizes = [8, 64], strides = [1, 1]} : vector<8x192xf32> to vector<8x64xf32>
    %317 = vector.extract_strided_slice %313 {offsets = [0, 64], sizes = [8, 64], strides = [1, 1]} : vector<8x192xf32> to vector<8x64xf32>
    %318 = vector.extract_strided_slice %313 {offsets = [0, 128], sizes = [8, 64], strides = [1, 1]} : vector<8x192xf32> to vector<8x64xf32>
    %319 = arith.mulf %317, %300 : vector<8x64xf32>
    %320 = arith.mulf %316, %315 : vector<8x64xf32>
    %321 = arith.addf %319, %320 : vector<8x64xf32>
    %322 = math.tanh %321 : vector<8x64xf32>
    %323 = arith.mulf %318, %322 : vector<8x64xf32>
    %c112_113 = arith.constant 112 : index
    %c0_114 = arith.constant 0 : index
    %324 = vector.load %arg13[%c112_113, %c0_114] : memref<128x128xf32, #tpu.memory_space<vmem>>, vector<8x64xf32>
    tpu.vector_store %arg13[%c112_113, %c0_114], %323 {strides = array<i32>} : memref<128x128xf32, #tpu.memory_space<vmem>>, vector<8x64xf32>,
    %c8_115 = arith.constant 8 : index
    %c64_116 = arith.constant 64 : index
    %325 = vector.load %arg13[%c8_115, %c64_116] : memref<128x128xf32, #tpu.memory_space<vmem>>, vector<8x64xf32>
    tpu.vector_store %arg13[%c8_115, %c64_116], %323 {strides = array<i32>} : memref<128x128xf32, #tpu.memory_space<vmem>>, vector<8x64xf32>,
    %c120_117 = arith.constant 120 : index
    %c0_118 = arith.constant 0 : index
    %326 = vector.load %arg12[%c120_117, %c0_118] : memref<128x256xf32, #tpu.memory_space<vmem>>, vector<8x256xf32>
    %cst_119 = arith.constant dense<0.000000e+00> : vector<8x256xf32>
    %327 = tpu.matmul %323, %3, %cst_119 {dimension_numbers = #tpu.dot_dimension_numbers<[1], [0], [0], [1], [0, 0, 1, 1], [], []>} : vector<8x64xf32>, vector<64x256xf32>, vector<8x256xf32> -> vector<8x256xf32>
    %328 = arith.addf %326, %327 : vector<8x256xf32>
    %329 = vector.extract_strided_slice %328 {offsets = [0, 0], sizes = [8, 192], strides = [1, 1]} : vector<8x256xf32> to vector<8x192xf32>
    %330 = arith.negf %329 : vector<8x192xf32>
    %331 = math.exp %330 : vector<8x192xf32>
    %cst_120 = arith.constant 1.000000e+00 : f32
    %332 = vector.broadcast %cst_120 : f32 to vector<8x192xf32>
    %333 = arith.addf %332, %331 : vector<8x192xf32>
    %334 = arith.divf %332, %333 : vector<8x192xf32>
    %335 = vector.extract_strided_slice %328 {offsets = [0, 192], sizes = [8, 64], strides = [1, 1]} : vector<8x256xf32> to vector<8x64xf32>
    %336 = math.tanh %335 : vector<8x64xf32>
    %337 = vector.extract_strided_slice %334 {offsets = [0, 0], sizes = [8, 64], strides = [1, 1]} : vector<8x192xf32> to vector<8x64xf32>
    %338 = vector.extract_strided_slice %334 {offsets = [0, 64], sizes = [8, 64], strides = [1, 1]} : vector<8x192xf32> to vector<8x64xf32>
    %339 = vector.extract_strided_slice %334 {offsets = [0, 128], sizes = [8, 64], strides = [1, 1]} : vector<8x192xf32> to vector<8x64xf32>
    %340 = arith.mulf %338, %321 : vector<8x64xf32>
    %341 = arith.mulf %337, %336 : vector<8x64xf32>
    %342 = arith.addf %340, %341 : vector<8x64xf32>
    %343 = math.tanh %342 : vector<8x64xf32>
    %344 = arith.mulf %339, %343 : vector<8x64xf32>
    %c120_121 = arith.constant 120 : index
    %c0_122 = arith.constant 0 : index
    %345 = vector.load %arg13[%c120_121, %c0_122] : memref<128x128xf32, #tpu.memory_space<vmem>>, vector<8x64xf32>
    tpu.vector_store %arg13[%c120_121, %c0_122], %344 {strides = array<i32>} : memref<128x128xf32, #tpu.memory_space<vmem>>, vector<8x64xf32>,
    %c0_123 = arith.constant 0 : index
    %c64_124 = arith.constant 64 : index
    %346 = vector.load %arg13[%c0_123, %c64_124] : memref<128x128xf32, #tpu.memory_space<vmem>>, vector<8x64xf32>
    tpu.vector_store %arg13[%c0_123, %c64_124], %344 {strides = array<i32>} : memref<128x128xf32, #tpu.memory_space<vmem>>, vector<8x64xf32>,
    %347 = vector.extract_strided_slice %344 {offsets = [0, 0], sizes = [8, 32], strides = [1, 1]} : vector<8x64xf32> to vector<8x32xf32>
    %c0_125 = arith.constant 0 : index
    %c0_126 = arith.constant 0 : index
    %c0_127 = arith.constant 0 : index
    %348 = vector.load %arg10[%c0_125, %c0_126, %c0_127] : memref<4x8x32xf32, #tpu.memory_space<vmem>>, vector<1x8x32xf32>
    %349 = vector.shape_cast %348 : vector<1x8x32xf32> to vector<8x32xf32>
    %350 = vector.shape_cast %347 : vector<8x32xf32> to vector<1x8x32xf32>
    tpu.vector_store %arg10[%c0_125, %c0_126, %c0_127], %350 {strides = array<i32>} : memref<4x8x32xf32, #tpu.memory_space<vmem>>, vector<1x8x32xf32>,
    %351 = vector.extract_strided_slice %344 {offsets = [0, 32], sizes = [8, 32], strides = [1, 1]} : vector<8x64xf32> to vector<8x32xf32>
    %c1 = arith.constant 1 : index
    %c0_128 = arith.constant 0 : index
    %c0_129 = arith.constant 0 : index
    %352 = vector.load %arg10[%c1, %c0_128, %c0_129] : memref<4x8x32xf32, #tpu.memory_space<vmem>>, vector<1x8x32xf32>
    %353 = vector.shape_cast %352 : vector<1x8x32xf32> to vector<8x32xf32>
    %354 = vector.shape_cast %351 : vector<8x32xf32> to vector<1x8x32xf32>
    tpu.vector_store %arg10[%c1, %c0_128, %c0_129], %354 {strides = array<i32>} : memref<4x8x32xf32, #tpu.memory_space<vmem>>, vector<1x8x32xf32>,
    %355 = vector.extract_strided_slice %342 {offsets = [0, 0], sizes = [8, 32], strides = [1, 1]} : vector<8x64xf32> to vector<8x32xf32>
    %c0_130 = arith.constant 0 : index
    %c0_131 = arith.constant 0 : index
    %c0_132 = arith.constant 0 : index
    %356 = vector.load %arg11[%c0_130, %c0_131, %c0_132] : memref<4x8x32xf32, #tpu.memory_space<vmem>>, vector<1x8x32xf32>
    %357 = vector.shape_cast %356 : vector<1x8x32xf32> to vector<8x32xf32>
    %358 = vector.shape_cast %355 : vector<8x32xf32> to vector<1x8x32xf32>
    tpu.vector_store %arg11[%c0_130, %c0_131, %c0_132], %358 {strides = array<i32>} : memref<4x8x32xf32, #tpu.memory_space<vmem>>, vector<1x8x32xf32>,
    %359 = vector.extract_strided_slice %342 {offsets = [0, 32], sizes = [8, 32], strides = [1, 1]} : vector<8x64xf32> to vector<8x32xf32>
    %c1_133 = arith.constant 1 : index
    %c0_134 = arith.constant 0 : index
    %c0_135 = arith.constant 0 : index
    %360 = vector.load %arg11[%c1_133, %c0_134, %c0_135] : memref<4x8x32xf32, #tpu.memory_space<vmem>>, vector<1x8x32xf32>
    %361 = vector.shape_cast %360 : vector<1x8x32xf32> to vector<8x32xf32>
    %362 = vector.shape_cast %359 : vector<8x32xf32> to vector<1x8x32xf32>
    tpu.vector_store %arg11[%c1_133, %c0_134, %c0_135], %362 {strides = array<i32>} : memref<4x8x32xf32, #tpu.memory_space<vmem>>, vector<1x8x32xf32>,
    %c0_136 = arith.constant 0 : index
    %c0_137 = arith.constant 0 : index
    %363 = vector.load %arg13[%c0_136, %c0_137] : memref<128x128xf32, #tpu.memory_space<vmem>>, vector<128x128xf32>
    %c0_138 = arith.constant 0 : index
    %c0_139 = arith.constant 0 : index
    %364 = vector.load %arg4[%c0_138, %c0_139] : memref<128x256xf32, #tpu.memory_space<vmem>>, vector<128x256xf32>
    %c0_140 = arith.constant 0 : index
    %c0_141 = arith.constant 0 : index
    %365 = vector.load %arg5[%c0_140, %c0_141] : memref<64x256xf32, #tpu.memory_space<vmem>>, vector<64x256xf32>
    %c0_142 = arith.constant 0 : index
    %c0_143 = arith.constant 0 : index
    %366 = vector.load %arg6[%c0_142, %c0_143] : memref<1x256xf32, #tpu.memory_space<vmem>>, vector<1x256xf32>
    %cst_144 = arith.constant dense<0.000000e+00> : vector<128x256xf32>
    %367 = tpu.matmul %363, %364, %cst_144 {dimension_numbers = #tpu.dot_dimension_numbers<[1], [0], [0], [1], [0, 0, 1, 1], [], []>} : vector<128x128xf32>, vector<128x256xf32>, vector<128x256xf32> -> vector<128x256xf32>
    %368 = vector.broadcast %366 : vector<1x256xf32> to vector<128x256xf32>
    %369 = arith.addf %367, %368 : vector<128x256xf32>
    %c0_145 = arith.constant 0 : index
    %c0_146 = arith.constant 0 : index
    %370 = vector.load %arg12[%c0_145, %c0_146] : memref<128x256xf32, #tpu.memory_space<vmem>>, vector<128x256xf32>
    tpu.vector_store %arg12[%c0_145, %c0_146], %369 {strides = array<i32>} : memref<128x256xf32, #tpu.memory_space<vmem>>, vector<128x256xf32>,
    %cst_147 = arith.constant 0.000000e+00 : f32
    %371 = vector.broadcast %cst_147 : f32 to vector<8x64xf32>
    %cst_148 = arith.constant 0.000000e+00 : f32
    %372 = vector.broadcast %cst_148 : f32 to vector<8x64xf32>
    %c0_149 = arith.constant 0 : index
    %c0_150 = arith.constant 0 : index
    %373 = vector.load %arg12[%c0_149, %c0_150] : memref<128x256xf32, #tpu.memory_space<vmem>>, vector<8x256xf32>
    %cst_151 = arith.constant dense<0.000000e+00> : vector<8x256xf32>
    %374 = tpu.matmul %371, %365, %cst_151 {dimension_numbers = #tpu.dot_dimension_numbers<[1], [0], [0], [1], [0, 0, 1, 1], [], []>} : vector<8x64xf32>, vector<64x256xf32>, vector<8x256xf32> -> vector<8x256xf32>
    %375 = arith.addf %373, %374 : vector<8x256xf32>
    %376 = vector.extract_strided_slice %375 {offsets = [0, 0], sizes = [8, 192], strides = [1, 1]} : vector<8x256xf32> to vector<8x192xf32>
    %377 = arith.negf %376 : vector<8x192xf32>
    %378 = math.exp %377 : vector<8x192xf32>
    %cst_152 = arith.constant 1.000000e+00 : f32
    %379 = vector.broadcast %cst_152 : f32 to vector<8x192xf32>
    %380 = arith.addf %379, %378 : vector<8x192xf32>
    %381 = arith.divf %379, %380 : vector<8x192xf32>
    %382 = vector.extract_strided_slice %375 {offsets = [0, 192], sizes = [8, 64], strides = [1, 1]} : vector<8x256xf32> to vector<8x64xf32>
    %383 = math.tanh %382 : vector<8x64xf32>
    %384 = vector.extract_strided_slice %381 {offsets = [0, 0], sizes = [8, 64], strides = [1, 1]} : vector<8x192xf32> to vector<8x64xf32>
    %385 = vector.extract_strided_slice %381 {offsets = [0, 64], sizes = [8, 64], strides = [1, 1]} : vector<8x192xf32> to vector<8x64xf32>
    %386 = vector.extract_strided_slice %381 {offsets = [0, 128], sizes = [8, 64], strides = [1, 1]} : vector<8x192xf32> to vector<8x64xf32>
    %387 = arith.mulf %385, %372 : vector<8x64xf32>
    %388 = arith.mulf %384, %383 : vector<8x64xf32>
    %389 = arith.addf %387, %388 : vector<8x64xf32>
    %390 = math.tanh %389 : vector<8x64xf32>
    %391 = arith.mulf %386, %390 : vector<8x64xf32>
    %392 = math.tanh %391 : vector<8x64xf32>
    %393 = arith.maximumf %1, %392 : vector<8x64xf32>
    %c8_153 = arith.constant 8 : index
    %c0_154 = arith.constant 0 : index
    %394 = vector.load %arg12[%c8_153, %c0_154] : memref<128x256xf32, #tpu.memory_space<vmem>>, vector<8x256xf32>
    %cst_155 = arith.constant dense<0.000000e+00> : vector<8x256xf32>
    %395 = tpu.matmul %391, %365, %cst_155 {dimension_numbers = #tpu.dot_dimension_numbers<[1], [0], [0], [1], [0, 0, 1, 1], [], []>} : vector<8x64xf32>, vector<64x256xf32>, vector<8x256xf32> -> vector<8x256xf32>
    %396 = arith.addf %394, %395 : vector<8x256xf32>
    %397 = vector.extract_strided_slice %396 {offsets = [0, 0], sizes = [8, 192], strides = [1, 1]} : vector<8x256xf32> to vector<8x192xf32>
    %398 = arith.negf %397 : vector<8x192xf32>
    %399 = math.exp %398 : vector<8x192xf32>
    %cst_156 = arith.constant 1.000000e+00 : f32
    %400 = vector.broadcast %cst_156 : f32 to vector<8x192xf32>
    %401 = arith.addf %400, %399 : vector<8x192xf32>
    %402 = arith.divf %400, %401 : vector<8x192xf32>
    %403 = vector.extract_strided_slice %396 {offsets = [0, 192], sizes = [8, 64], strides = [1, 1]} : vector<8x256xf32> to vector<8x64xf32>
    %404 = math.tanh %403 : vector<8x64xf32>
    %405 = vector.extract_strided_slice %402 {offsets = [0, 0], sizes = [8, 64], strides = [1, 1]} : vector<8x192xf32> to vector<8x64xf32>
    %406 = vector.extract_strided_slice %402 {offsets = [0, 64], sizes = [8, 64], strides = [1, 1]} : vector<8x192xf32> to vector<8x64xf32>
    %407 = vector.extract_strided_slice %402 {offsets = [0, 128], sizes = [8, 64], strides = [1, 1]} : vector<8x192xf32> to vector<8x64xf32>
    %408 = arith.mulf %406, %389 : vector<8x64xf32>
    %409 = arith.mulf %405, %404 : vector<8x64xf32>
    %410 = arith.addf %408, %409 : vector<8x64xf32>
    %411 = math.tanh %410 : vector<8x64xf32>
    %412 = arith.mulf %407, %411 : vector<8x64xf32>
    %413 = math.tanh %412 : vector<8x64xf32>
    %414 = arith.maximumf %393, %413 : vector<8x64xf32>
    %c16_157 = arith.constant 16 : index
    %c0_158 = arith.constant 0 : index
    %415 = vector.load %arg12[%c16_157, %c0_158] : memref<128x256xf32, #tpu.memory_space<vmem>>, vector<8x256xf32>
    %cst_159 = arith.constant dense<0.000000e+00> : vector<8x256xf32>
    %416 = tpu.matmul %412, %365, %cst_159 {dimension_numbers = #tpu.dot_dimension_numbers<[1], [0], [0], [1], [0, 0, 1, 1], [], []>} : vector<8x64xf32>, vector<64x256xf32>, vector<8x256xf32> -> vector<8x256xf32>
    %417 = arith.addf %415, %416 : vector<8x256xf32>
    %418 = vector.extract_strided_slice %417 {offsets = [0, 0], sizes = [8, 192], strides = [1, 1]} : vector<8x256xf32> to vector<8x192xf32>
    %419 = arith.negf %418 : vector<8x192xf32>
    %420 = math.exp %419 : vector<8x192xf32>
    %cst_160 = arith.constant 1.000000e+00 : f32
    %421 = vector.broadcast %cst_160 : f32 to vector<8x192xf32>
    %422 = arith.addf %421, %420 : vector<8x192xf32>
    %423 = arith.divf %421, %422 : vector<8x192xf32>
    %424 = vector.extract_strided_slice %417 {offsets = [0, 192], sizes = [8, 64], strides = [1, 1]} : vector<8x256xf32> to vector<8x64xf32>
    %425 = math.tanh %424 : vector<8x64xf32>
    %426 = vector.extract_strided_slice %423 {offsets = [0, 0], sizes = [8, 64], strides = [1, 1]} : vector<8x192xf32> to vector<8x64xf32>
    %427 = vector.extract_strided_slice %423 {offsets = [0, 64], sizes = [8, 64], strides = [1, 1]} : vector<8x192xf32> to vector<8x64xf32>
    %428 = vector.extract_strided_slice %423 {offsets = [0, 128], sizes = [8, 64], strides = [1, 1]} : vector<8x192xf32> to vector<8x64xf32>
    %429 = arith.mulf %427, %410 : vector<8x64xf32>
    %430 = arith.mulf %426, %425 : vector<8x64xf32>
    %431 = arith.addf %429, %430 : vector<8x64xf32>
    %432 = math.tanh %431 : vector<8x64xf32>
    %433 = arith.mulf %428, %432 : vector<8x64xf32>
    %434 = math.tanh %433 : vector<8x64xf32>
    %435 = arith.maximumf %414, %434 : vector<8x64xf32>
    %c24_161 = arith.constant 24 : index
    %c0_162 = arith.constant 0 : index
    %436 = vector.load %arg12[%c24_161, %c0_162] : memref<128x256xf32, #tpu.memory_space<vmem>>, vector<8x256xf32>
    %cst_163 = arith.constant dense<0.000000e+00> : vector<8x256xf32>
    %437 = tpu.matmul %433, %365, %cst_163 {dimension_numbers = #tpu.dot_dimension_numbers<[1], [0], [0], [1], [0, 0, 1, 1], [], []>} : vector<8x64xf32>, vector<64x256xf32>, vector<8x256xf32> -> vector<8x256xf32>
    %438 = arith.addf %436, %437 : vector<8x256xf32>
    %439 = vector.extract_strided_slice %438 {offsets = [0, 0], sizes = [8, 192], strides = [1, 1]} : vector<8x256xf32> to vector<8x192xf32>
    %440 = arith.negf %439 : vector<8x192xf32>
    %441 = math.exp %440 : vector<8x192xf32>
    %cst_164 = arith.constant 1.000000e+00 : f32
    %442 = vector.broadcast %cst_164 : f32 to vector<8x192xf32>
    %443 = arith.addf %442, %441 : vector<8x192xf32>
    %444 = arith.divf %442, %443 : vector<8x192xf32>
    %445 = vector.extract_strided_slice %438 {offsets = [0, 192], sizes = [8, 64], strides = [1, 1]} : vector<8x256xf32> to vector<8x64xf32>
    %446 = math.tanh %445 : vector<8x64xf32>
    %447 = vector.extract_strided_slice %444 {offsets = [0, 0], sizes = [8, 64], strides = [1, 1]} : vector<8x192xf32> to vector<8x64xf32>
    %448 = vector.extract_strided_slice %444 {offsets = [0, 64], sizes = [8, 64], strides = [1, 1]} : vector<8x192xf32> to vector<8x64xf32>
    %449 = vector.extract_strided_slice %444 {offsets = [0, 128], sizes = [8, 64], strides = [1, 1]} : vector<8x192xf32> to vector<8x64xf32>
    %450 = arith.mulf %448, %431 : vector<8x64xf32>
    %451 = arith.mulf %447, %446 : vector<8x64xf32>
    %452 = arith.addf %450, %451 : vector<8x64xf32>
    %453 = math.tanh %452 : vector<8x64xf32>
    %454 = arith.mulf %449, %453 : vector<8x64xf32>
    %455 = math.tanh %454 : vector<8x64xf32>
    %456 = arith.maximumf %435, %455 : vector<8x64xf32>
    %c32_165 = arith.constant 32 : index
    %c0_166 = arith.constant 0 : index
    %457 = vector.load %arg12[%c32_165, %c0_166] : memref<128x256xf32, #tpu.memory_space<vmem>>, vector<8x256xf32>
    %cst_167 = arith.constant dense<0.000000e+00> : vector<8x256xf32>
    %458 = tpu.matmul %454, %365, %cst_167 {dimension_numbers = #tpu.dot_dimension_numbers<[1], [0], [0], [1], [0, 0, 1, 1], [], []>} : vector<8x64xf32>, vector<64x256xf32>, vector<8x256xf32> -> vector<8x256xf32>
    %459 = arith.addf %457, %458 : vector<8x256xf32>
    %460 = vector.extract_strided_slice %459 {offsets = [0, 0], sizes = [8, 192], strides = [1, 1]} : vector<8x256xf32> to vector<8x192xf32>
    %461 = arith.negf %460 : vector<8x192xf32>
    %462 = math.exp %461 : vector<8x192xf32>
    %cst_168 = arith.constant 1.000000e+00 : f32
    %463 = vector.broadcast %cst_168 : f32 to vector<8x192xf32>
    %464 = arith.addf %463, %462 : vector<8x192xf32>
    %465 = arith.divf %463, %464 : vector<8x192xf32>
    %466 = vector.extract_strided_slice %459 {offsets = [0, 192], sizes = [8, 64], strides = [1, 1]} : vector<8x256xf32> to vector<8x64xf32>
    %467 = math.tanh %466 : vector<8x64xf32>
    %468 = vector.extract_strided_slice %465 {offsets = [0, 0], sizes = [8, 64], strides = [1, 1]} : vector<8x192xf32> to vector<8x64xf32>
    %469 = vector.extract_strided_slice %465 {offsets = [0, 64], sizes = [8, 64], strides = [1, 1]} : vector<8x192xf32> to vector<8x64xf32>
    %470 = vector.extract_strided_slice %465 {offsets = [0, 128], sizes = [8, 64], strides = [1, 1]} : vector<8x192xf32> to vector<8x64xf32>
    %471 = arith.mulf %469, %452 : vector<8x64xf32>
    %472 = arith.mulf %468, %467 : vector<8x64xf32>
    %473 = arith.addf %471, %472 : vector<8x64xf32>
    %474 = math.tanh %473 : vector<8x64xf32>
    %475 = arith.mulf %470, %474 : vector<8x64xf32>
    %476 = math.tanh %475 : vector<8x64xf32>
    %477 = arith.maximumf %456, %476 : vector<8x64xf32>
    %c40_169 = arith.constant 40 : index
    %c0_170 = arith.constant 0 : index
    %478 = vector.load %arg12[%c40_169, %c0_170] : memref<128x256xf32, #tpu.memory_space<vmem>>, vector<8x256xf32>
    %cst_171 = arith.constant dense<0.000000e+00> : vector<8x256xf32>
    %479 = tpu.matmul %475, %365, %cst_171 {dimension_numbers = #tpu.dot_dimension_numbers<[1], [0], [0], [1], [0, 0, 1, 1], [], []>} : vector<8x64xf32>, vector<64x256xf32>, vector<8x256xf32> -> vector<8x256xf32>
    %480 = arith.addf %478, %479 : vector<8x256xf32>
    %481 = vector.extract_strided_slice %480 {offsets = [0, 0], sizes = [8, 192], strides = [1, 1]} : vector<8x256xf32> to vector<8x192xf32>
    %482 = arith.negf %481 : vector<8x192xf32>
    %483 = math.exp %482 : vector<8x192xf32>
    %cst_172 = arith.constant 1.000000e+00 : f32
    %484 = vector.broadcast %cst_172 : f32 to vector<8x192xf32>
    %485 = arith.addf %484, %483 : vector<8x192xf32>
    %486 = arith.divf %484, %485 : vector<8x192xf32>
    %487 = vector.extract_strided_slice %480 {offsets = [0, 192], sizes = [8, 64], strides = [1, 1]} : vector<8x256xf32> to vector<8x64xf32>
    %488 = math.tanh %487 : vector<8x64xf32>
    %489 = vector.extract_strided_slice %486 {offsets = [0, 0], sizes = [8, 64], strides = [1, 1]} : vector<8x192xf32> to vector<8x64xf32>
    %490 = vector.extract_strided_slice %486 {offsets = [0, 64], sizes = [8, 64], strides = [1, 1]} : vector<8x192xf32> to vector<8x64xf32>
    %491 = vector.extract_strided_slice %486 {offsets = [0, 128], sizes = [8, 64], strides = [1, 1]} : vector<8x192xf32> to vector<8x64xf32>
    %492 = arith.mulf %490, %473 : vector<8x64xf32>
    %493 = arith.mulf %489, %488 : vector<8x64xf32>
    %494 = arith.addf %492, %493 : vector<8x64xf32>
    %495 = math.tanh %494 : vector<8x64xf32>
    %496 = arith.mulf %491, %495 : vector<8x64xf32>
    %497 = math.tanh %496 : vector<8x64xf32>
    %498 = arith.maximumf %477, %497 : vector<8x64xf32>
    %c48_173 = arith.constant 48 : index
    %c0_174 = arith.constant 0 : index
    %499 = vector.load %arg12[%c48_173, %c0_174] : memref<128x256xf32, #tpu.memory_space<vmem>>, vector<8x256xf32>
    %cst_175 = arith.constant dense<0.000000e+00> : vector<8x256xf32>
    %500 = tpu.matmul %496, %365, %cst_175 {dimension_numbers = #tpu.dot_dimension_numbers<[1], [0], [0], [1], [0, 0, 1, 1], [], []>} : vector<8x64xf32>, vector<64x256xf32>, vector<8x256xf32> -> vector<8x256xf32>
    %501 = arith.addf %499, %500 : vector<8x256xf32>
    %502 = vector.extract_strided_slice %501 {offsets = [0, 0], sizes = [8, 192], strides = [1, 1]} : vector<8x256xf32> to vector<8x192xf32>
    %503 = arith.negf %502 : vector<8x192xf32>
    %504 = math.exp %503 : vector<8x192xf32>
    %cst_176 = arith.constant 1.000000e+00 : f32
    %505 = vector.broadcast %cst_176 : f32 to vector<8x192xf32>
    %506 = arith.addf %505, %504 : vector<8x192xf32>
    %507 = arith.divf %505, %506 : vector<8x192xf32>
    %508 = vector.extract_strided_slice %501 {offsets = [0, 192], sizes = [8, 64], strides = [1, 1]} : vector<8x256xf32> to vector<8x64xf32>
    %509 = math.tanh %508 : vector<8x64xf32>
    %510 = vector.extract_strided_slice %507 {offsets = [0, 0], sizes = [8, 64], strides = [1, 1]} : vector<8x192xf32> to vector<8x64xf32>
    %511 = vector.extract_strided_slice %507 {offsets = [0, 64], sizes = [8, 64], strides = [1, 1]} : vector<8x192xf32> to vector<8x64xf32>
    %512 = vector.extract_strided_slice %507 {offsets = [0, 128], sizes = [8, 64], strides = [1, 1]} : vector<8x192xf32> to vector<8x64xf32>
    %513 = arith.mulf %511, %494 : vector<8x64xf32>
    %514 = arith.mulf %510, %509 : vector<8x64xf32>
    %515 = arith.addf %513, %514 : vector<8x64xf32>
    %516 = math.tanh %515 : vector<8x64xf32>
    %517 = arith.mulf %512, %516 : vector<8x64xf32>
    %518 = math.tanh %517 : vector<8x64xf32>
    %519 = arith.maximumf %498, %518 : vector<8x64xf32>
    %c56_177 = arith.constant 56 : index
    %c0_178 = arith.constant 0 : index
    %520 = vector.load %arg12[%c56_177, %c0_178] : memref<128x256xf32, #tpu.memory_space<vmem>>, vector<8x256xf32>
    %cst_179 = arith.constant dense<0.000000e+00> : vector<8x256xf32>
    %521 = tpu.matmul %517, %365, %cst_179 {dimension_numbers = #tpu.dot_dimension_numbers<[1], [0], [0], [1], [0, 0, 1, 1], [], []>} : vector<8x64xf32>, vector<64x256xf32>, vector<8x256xf32> -> vector<8x256xf32>
    %522 = arith.addf %520, %521 : vector<8x256xf32>
    %523 = vector.extract_strided_slice %522 {offsets = [0, 0], sizes = [8, 192], strides = [1, 1]} : vector<8x256xf32> to vector<8x192xf32>
    %524 = arith.negf %523 : vector<8x192xf32>
    %525 = math.exp %524 : vector<8x192xf32>
    %cst_180 = arith.constant 1.000000e+00 : f32
    %526 = vector.broadcast %cst_180 : f32 to vector<8x192xf32>
    %527 = arith.addf %526, %525 : vector<8x192xf32>
    %528 = arith.divf %526, %527 : vector<8x192xf32>
    %529 = vector.extract_strided_slice %522 {offsets = [0, 192], sizes = [8, 64], strides = [1, 1]} : vector<8x256xf32> to vector<8x64xf32>
    %530 = math.tanh %529 : vector<8x64xf32>
    %531 = vector.extract_strided_slice %528 {offsets = [0, 0], sizes = [8, 64], strides = [1, 1]} : vector<8x192xf32> to vector<8x64xf32>
    %532 = vector.extract_strided_slice %528 {offsets = [0, 64], sizes = [8, 64], strides = [1, 1]} : vector<8x192xf32> to vector<8x64xf32>
    %533 = vector.extract_strided_slice %528 {offsets = [0, 128], sizes = [8, 64], strides = [1, 1]} : vector<8x192xf32> to vector<8x64xf32>
    %534 = arith.mulf %532, %515 : vector<8x64xf32>
    %535 = arith.mulf %531, %530 : vector<8x64xf32>
    %536 = arith.addf %534, %535 : vector<8x64xf32>
    %537 = math.tanh %536 : vector<8x64xf32>
    %538 = arith.mulf %533, %537 : vector<8x64xf32>
    %539 = math.tanh %538 : vector<8x64xf32>
    %540 = arith.maximumf %519, %539 : vector<8x64xf32>
    %c64_181 = arith.constant 64 : index
    %c0_182 = arith.constant 0 : index
    %541 = vector.load %arg12[%c64_181, %c0_182] : memref<128x256xf32, #tpu.memory_space<vmem>>, vector<8x256xf32>
    %cst_183 = arith.constant dense<0.000000e+00> : vector<8x256xf32>
    %542 = tpu.matmul %538, %365, %cst_183 {dimension_numbers = #tpu.dot_dimension_numbers<[1], [0], [0], [1], [0, 0, 1, 1], [], []>} : vector<8x64xf32>, vector<64x256xf32>, vector<8x256xf32> -> vector<8x256xf32>
    %543 = arith.addf %541, %542 : vector<8x256xf32>
    %544 = vector.extract_strided_slice %543 {offsets = [0, 0], sizes = [8, 192], strides = [1, 1]} : vector<8x256xf32> to vector<8x192xf32>
    %545 = arith.negf %544 : vector<8x192xf32>
    %546 = math.exp %545 : vector<8x192xf32>
    %cst_184 = arith.constant 1.000000e+00 : f32
    %547 = vector.broadcast %cst_184 : f32 to vector<8x192xf32>
    %548 = arith.addf %547, %546 : vector<8x192xf32>
    %549 = arith.divf %547, %548 : vector<8x192xf32>
    %550 = vector.extract_strided_slice %543 {offsets = [0, 192], sizes = [8, 64], strides = [1, 1]} : vector<8x256xf32> to vector<8x64xf32>
    %551 = math.tanh %550 : vector<8x64xf32>
    %552 = vector.extract_strided_slice %549 {offsets = [0, 0], sizes = [8, 64], strides = [1, 1]} : vector<8x192xf32> to vector<8x64xf32>
    %553 = vector.extract_strided_slice %549 {offsets = [0, 64], sizes = [8, 64], strides = [1, 1]} : vector<8x192xf32> to vector<8x64xf32>
    %554 = vector.extract_strided_slice %549 {offsets = [0, 128], sizes = [8, 64], strides = [1, 1]} : vector<8x192xf32> to vector<8x64xf32>
    %555 = arith.mulf %553, %536 : vector<8x64xf32>
    %556 = arith.mulf %552, %551 : vector<8x64xf32>
    %557 = arith.addf %555, %556 : vector<8x64xf32>
    %558 = math.tanh %557 : vector<8x64xf32>
    %559 = arith.mulf %554, %558 : vector<8x64xf32>
    %560 = math.tanh %559 : vector<8x64xf32>
    %561 = arith.maximumf %540, %560 : vector<8x64xf32>
    %c72_185 = arith.constant 72 : index
    %c0_186 = arith.constant 0 : index
    %562 = vector.load %arg12[%c72_185, %c0_186] : memref<128x256xf32, #tpu.memory_space<vmem>>, vector<8x256xf32>
    %cst_187 = arith.constant dense<0.000000e+00> : vector<8x256xf32>
    %563 = tpu.matmul %559, %365, %cst_187 {dimension_numbers = #tpu.dot_dimension_numbers<[1], [0], [0], [1], [0, 0, 1, 1], [], []>} : vector<8x64xf32>, vector<64x256xf32>, vector<8x256xf32> -> vector<8x256xf32>
    %564 = arith.addf %562, %563 : vector<8x256xf32>
    %565 = vector.extract_strided_slice %564 {offsets = [0, 0], sizes = [8, 192], strides = [1, 1]} : vector<8x256xf32> to vector<8x192xf32>
    %566 = arith.negf %565 : vector<8x192xf32>
    %567 = math.exp %566 : vector<8x192xf32>
    %cst_188 = arith.constant 1.000000e+00 : f32
    %568 = vector.broadcast %cst_188 : f32 to vector<8x192xf32>
    %569 = arith.addf %568, %567 : vector<8x192xf32>
    %570 = arith.divf %568, %569 : vector<8x192xf32>
    %571 = vector.extract_strided_slice %564 {offsets = [0, 192], sizes = [8, 64], strides = [1, 1]} : vector<8x256xf32> to vector<8x64xf32>
    %572 = math.tanh %571 : vector<8x64xf32>
    %573 = vector.extract_strided_slice %570 {offsets = [0, 0], sizes = [8, 64], strides = [1, 1]} : vector<8x192xf32> to vector<8x64xf32>
    %574 = vector.extract_strided_slice %570 {offsets = [0, 64], sizes = [8, 64], strides = [1, 1]} : vector<8x192xf32> to vector<8x64xf32>
    %575 = vector.extract_strided_slice %570 {offsets = [0, 128], sizes = [8, 64], strides = [1, 1]} : vector<8x192xf32> to vector<8x64xf32>
    %576 = arith.mulf %574, %557 : vector<8x64xf32>
    %577 = arith.mulf %573, %572 : vector<8x64xf32>
    %578 = arith.addf %576, %577 : vector<8x64xf32>
    %579 = math.tanh %578 : vector<8x64xf32>
    %580 = arith.mulf %575, %579 : vector<8x64xf32>
    %581 = math.tanh %580 : vector<8x64xf32>
    %582 = arith.maximumf %561, %581 : vector<8x64xf32>
    %c80_189 = arith.constant 80 : index
    %c0_190 = arith.constant 0 : index
    %583 = vector.load %arg12[%c80_189, %c0_190] : memref<128x256xf32, #tpu.memory_space<vmem>>, vector<8x256xf32>
    %cst_191 = arith.constant dense<0.000000e+00> : vector<8x256xf32>
    %584 = tpu.matmul %580, %365, %cst_191 {dimension_numbers = #tpu.dot_dimension_numbers<[1], [0], [0], [1], [0, 0, 1, 1], [], []>} : vector<8x64xf32>, vector<64x256xf32>, vector<8x256xf32> -> vector<8x256xf32>
    %585 = arith.addf %583, %584 : vector<8x256xf32>
    %586 = vector.extract_strided_slice %585 {offsets = [0, 0], sizes = [8, 192], strides = [1, 1]} : vector<8x256xf32> to vector<8x192xf32>
    %587 = arith.negf %586 : vector<8x192xf32>
    %588 = math.exp %587 : vector<8x192xf32>
    %cst_192 = arith.constant 1.000000e+00 : f32
    %589 = vector.broadcast %cst_192 : f32 to vector<8x192xf32>
    %590 = arith.addf %589, %588 : vector<8x192xf32>
    %591 = arith.divf %589, %590 : vector<8x192xf32>
    %592 = vector.extract_strided_slice %585 {offsets = [0, 192], sizes = [8, 64], strides = [1, 1]} : vector<8x256xf32> to vector<8x64xf32>
    %593 = math.tanh %592 : vector<8x64xf32>
    %594 = vector.extract_strided_slice %591 {offsets = [0, 0], sizes = [8, 64], strides = [1, 1]} : vector<8x192xf32> to vector<8x64xf32>
    %595 = vector.extract_strided_slice %591 {offsets = [0, 64], sizes = [8, 64], strides = [1, 1]} : vector<8x192xf32> to vector<8x64xf32>
    %596 = vector.extract_strided_slice %591 {offsets = [0, 128], sizes = [8, 64], strides = [1, 1]} : vector<8x192xf32> to vector<8x64xf32>
    %597 = arith.mulf %595, %578 : vector<8x64xf32>
    %598 = arith.mulf %594, %593 : vector<8x64xf32>
    %599 = arith.addf %597, %598 : vector<8x64xf32>
    %600 = math.tanh %599 : vector<8x64xf32>
    %601 = arith.mulf %596, %600 : vector<8x64xf32>
    %602 = math.tanh %601 : vector<8x64xf32>
    %603 = arith.maximumf %582, %602 : vector<8x64xf32>
    %c88_193 = arith.constant 88 : index
    %c0_194 = arith.constant 0 : index
    %604 = vector.load %arg12[%c88_193, %c0_194] : memref<128x256xf32, #tpu.memory_space<vmem>>, vector<8x256xf32>
    %cst_195 = arith.constant dense<0.000000e+00> : vector<8x256xf32>
    %605 = tpu.matmul %601, %365, %cst_195 {dimension_numbers = #tpu.dot_dimension_numbers<[1], [0], [0], [1], [0, 0, 1, 1], [], []>} : vector<8x64xf32>, vector<64x256xf32>, vector<8x256xf32> -> vector<8x256xf32>
    %606 = arith.addf %604, %605 : vector<8x256xf32>
    %607 = vector.extract_strided_slice %606 {offsets = [0, 0], sizes = [8, 192], strides = [1, 1]} : vector<8x256xf32> to vector<8x192xf32>
    %608 = arith.negf %607 : vector<8x192xf32>
    %609 = math.exp %608 : vector<8x192xf32>
    %cst_196 = arith.constant 1.000000e+00 : f32
    %610 = vector.broadcast %cst_196 : f32 to vector<8x192xf32>
    %611 = arith.addf %610, %609 : vector<8x192xf32>
    %612 = arith.divf %610, %611 : vector<8x192xf32>
    %613 = vector.extract_strided_slice %606 {offsets = [0, 192], sizes = [8, 64], strides = [1, 1]} : vector<8x256xf32> to vector<8x64xf32>
    %614 = math.tanh %613 : vector<8x64xf32>
    %615 = vector.extract_strided_slice %612 {offsets = [0, 0], sizes = [8, 64], strides = [1, 1]} : vector<8x192xf32> to vector<8x64xf32>
    %616 = vector.extract_strided_slice %612 {offsets = [0, 64], sizes = [8, 64], strides = [1, 1]} : vector<8x192xf32> to vector<8x64xf32>
    %617 = vector.extract_strided_slice %612 {offsets = [0, 128], sizes = [8, 64], strides = [1, 1]} : vector<8x192xf32> to vector<8x64xf32>
    %618 = arith.mulf %616, %599 : vector<8x64xf32>
    %619 = arith.mulf %615, %614 : vector<8x64xf32>
    %620 = arith.addf %618, %619 : vector<8x64xf32>
    %621 = math.tanh %620 : vector<8x64xf32>
    %622 = arith.mulf %617, %621 : vector<8x64xf32>
    %623 = math.tanh %622 : vector<8x64xf32>
    %624 = arith.maximumf %603, %623 : vector<8x64xf32>
    %c96_197 = arith.constant 96 : index
    %c0_198 = arith.constant 0 : index
    %625 = vector.load %arg12[%c96_197, %c0_198] : memref<128x256xf32, #tpu.memory_space<vmem>>, vector<8x256xf32>
    %cst_199 = arith.constant dense<0.000000e+00> : vector<8x256xf32>
    %626 = tpu.matmul %622, %365, %cst_199 {dimension_numbers = #tpu.dot_dimension_numbers<[1], [0], [0], [1], [0, 0, 1, 1], [], []>} : vector<8x64xf32>, vector<64x256xf32>, vector<8x256xf32> -> vector<8x256xf32>
    %627 = arith.addf %625, %626 : vector<8x256xf32>
    %628 = vector.extract_strided_slice %627 {offsets = [0, 0], sizes = [8, 192], strides = [1, 1]} : vector<8x256xf32> to vector<8x192xf32>
    %629 = arith.negf %628 : vector<8x192xf32>
    %630 = math.exp %629 : vector<8x192xf32>
    %cst_200 = arith.constant 1.000000e+00 : f32
    %631 = vector.broadcast %cst_200 : f32 to vector<8x192xf32>
    %632 = arith.addf %631, %630 : vector<8x192xf32>
    %633 = arith.divf %631, %632 : vector<8x192xf32>
    %634 = vector.extract_strided_slice %627 {offsets = [0, 192], sizes = [8, 64], strides = [1, 1]} : vector<8x256xf32> to vector<8x64xf32>
    %635 = math.tanh %634 : vector<8x64xf32>
    %636 = vector.extract_strided_slice %633 {offsets = [0, 0], sizes = [8, 64], strides = [1, 1]} : vector<8x192xf32> to vector<8x64xf32>
    %637 = vector.extract_strided_slice %633 {offsets = [0, 64], sizes = [8, 64], strides = [1, 1]} : vector<8x192xf32> to vector<8x64xf32>
    %638 = vector.extract_strided_slice %633 {offsets = [0, 128], sizes = [8, 64], strides = [1, 1]} : vector<8x192xf32> to vector<8x64xf32>
    %639 = arith.mulf %637, %620 : vector<8x64xf32>
    %640 = arith.mulf %636, %635 : vector<8x64xf32>
    %641 = arith.addf %639, %640 : vector<8x64xf32>
    %642 = math.tanh %641 : vector<8x64xf32>
    %643 = arith.mulf %638, %642 : vector<8x64xf32>
    %644 = math.tanh %643 : vector<8x64xf32>
    %645 = arith.maximumf %624, %644 : vector<8x64xf32>
    %c104_201 = arith.constant 104 : index
    %c0_202 = arith.constant 0 : index
    %646 = vector.load %arg12[%c104_201, %c0_202] : memref<128x256xf32, #tpu.memory_space<vmem>>, vector<8x256xf32>
    %cst_203 = arith.constant dense<0.000000e+00> : vector<8x256xf32>
    %647 = tpu.matmul %643, %365, %cst_203 {dimension_numbers = #tpu.dot_dimension_numbers<[1], [0], [0], [1], [0, 0, 1, 1], [], []>} : vector<8x64xf32>, vector<64x256xf32>, vector<8x256xf32> -> vector<8x256xf32>
    %648 = arith.addf %646, %647 : vector<8x256xf32>
    %649 = vector.extract_strided_slice %648 {offsets = [0, 0], sizes = [8, 192], strides = [1, 1]} : vector<8x256xf32> to vector<8x192xf32>
    %650 = arith.negf %649 : vector<8x192xf32>
    %651 = math.exp %650 : vector<8x192xf32>
    %cst_204 = arith.constant 1.000000e+00 : f32
    %652 = vector.broadcast %cst_204 : f32 to vector<8x192xf32>
    %653 = arith.addf %652, %651 : vector<8x192xf32>
    %654 = arith.divf %652, %653 : vector<8x192xf32>
    %655 = vector.extract_strided_slice %648 {offsets = [0, 192], sizes = [8, 64], strides = [1, 1]} : vector<8x256xf32> to vector<8x64xf32>
    %656 = math.tanh %655 : vector<8x64xf32>
    %657 = vector.extract_strided_slice %654 {offsets = [0, 0], sizes = [8, 64], strides = [1, 1]} : vector<8x192xf32> to vector<8x64xf32>
    %658 = vector.extract_strided_slice %654 {offsets = [0, 64], sizes = [8, 64], strides = [1, 1]} : vector<8x192xf32> to vector<8x64xf32>
    %659 = vector.extract_strided_slice %654 {offsets = [0, 128], sizes = [8, 64], strides = [1, 1]} : vector<8x192xf32> to vector<8x64xf32>
    %660 = arith.mulf %658, %641 : vector<8x64xf32>
    %661 = arith.mulf %657, %656 : vector<8x64xf32>
    %662 = arith.addf %660, %661 : vector<8x64xf32>
    %663 = math.tanh %662 : vector<8x64xf32>
    %664 = arith.mulf %659, %663 : vector<8x64xf32>
    %665 = math.tanh %664 : vector<8x64xf32>
    %666 = arith.maximumf %645, %665 : vector<8x64xf32>
    %c112_205 = arith.constant 112 : index
    %c0_206 = arith.constant 0 : index
    %667 = vector.load %arg12[%c112_205, %c0_206] : memref<128x256xf32, #tpu.memory_space<vmem>>, vector<8x256xf32>
    %cst_207 = arith.constant dense<0.000000e+00> : vector<8x256xf32>
    %668 = tpu.matmul %664, %365, %cst_207 {dimension_numbers = #tpu.dot_dimension_numbers<[1], [0], [0], [1], [0, 0, 1, 1], [], []>} : vector<8x64xf32>, vector<64x256xf32>, vector<8x256xf32> -> vector<8x256xf32>
    %669 = arith.addf %667, %668 : vector<8x256xf32>
    %670 = vector.extract_strided_slice %669 {offsets = [0, 0], sizes = [8, 192], strides = [1, 1]} : vector<8x256xf32> to vector<8x192xf32>
    %671 = arith.negf %670 : vector<8x192xf32>
    %672 = math.exp %671 : vector<8x192xf32>
    %cst_208 = arith.constant 1.000000e+00 : f32
    %673 = vector.broadcast %cst_208 : f32 to vector<8x192xf32>
    %674 = arith.addf %673, %672 : vector<8x192xf32>
    %675 = arith.divf %673, %674 : vector<8x192xf32>
    %676 = vector.extract_strided_slice %669 {offsets = [0, 192], sizes = [8, 64], strides = [1, 1]} : vector<8x256xf32> to vector<8x64xf32>
    %677 = math.tanh %676 : vector<8x64xf32>
    %678 = vector.extract_strided_slice %675 {offsets = [0, 0], sizes = [8, 64], strides = [1, 1]} : vector<8x192xf32> to vector<8x64xf32>
    %679 = vector.extract_strided_slice %675 {offsets = [0, 64], sizes = [8, 64], strides = [1, 1]} : vector<8x192xf32> to vector<8x64xf32>
    %680 = vector.extract_strided_slice %675 {offsets = [0, 128], sizes = [8, 64], strides = [1, 1]} : vector<8x192xf32> to vector<8x64xf32>
    %681 = arith.mulf %679, %662 : vector<8x64xf32>
    %682 = arith.mulf %678, %677 : vector<8x64xf32>
    %683 = arith.addf %681, %682 : vector<8x64xf32>
    %684 = math.tanh %683 : vector<8x64xf32>
    %685 = arith.mulf %680, %684 : vector<8x64xf32>
    %686 = math.tanh %685 : vector<8x64xf32>
    %687 = arith.maximumf %666, %686 : vector<8x64xf32>
    %c120_209 = arith.constant 120 : index
    %c0_210 = arith.constant 0 : index
    %688 = vector.load %arg12[%c120_209, %c0_210] : memref<128x256xf32, #tpu.memory_space<vmem>>, vector<8x256xf32>
    %cst_211 = arith.constant dense<0.000000e+00> : vector<8x256xf32>
    %689 = tpu.matmul %685, %365, %cst_211 {dimension_numbers = #tpu.dot_dimension_numbers<[1], [0], [0], [1], [0, 0, 1, 1], [], []>} : vector<8x64xf32>, vector<64x256xf32>, vector<8x256xf32> -> vector<8x256xf32>
    %690 = arith.addf %688, %689 : vector<8x256xf32>
    %691 = vector.extract_strided_slice %690 {offsets = [0, 0], sizes = [8, 192], strides = [1, 1]} : vector<8x256xf32> to vector<8x192xf32>
    %692 = arith.negf %691 : vector<8x192xf32>
    %693 = math.exp %692 : vector<8x192xf32>
    %cst_212 = arith.constant 1.000000e+00 : f32
    %694 = vector.broadcast %cst_212 : f32 to vector<8x192xf32>
    %695 = arith.addf %694, %693 : vector<8x192xf32>
    %696 = arith.divf %694, %695 : vector<8x192xf32>
    %697 = vector.extract_strided_slice %690 {offsets = [0, 192], sizes = [8, 64], strides = [1, 1]} : vector<8x256xf32> to vector<8x64xf32>
    %698 = math.tanh %697 : vector<8x64xf32>
    %699 = vector.extract_strided_slice %696 {offsets = [0, 0], sizes = [8, 64], strides = [1, 1]} : vector<8x192xf32> to vector<8x64xf32>
    %700 = vector.extract_strided_slice %696 {offsets = [0, 64], sizes = [8, 64], strides = [1, 1]} : vector<8x192xf32> to vector<8x64xf32>
    %701 = vector.extract_strided_slice %696 {offsets = [0, 128], sizes = [8, 64], strides = [1, 1]} : vector<8x192xf32> to vector<8x64xf32>
    %702 = arith.mulf %700, %683 : vector<8x64xf32>
    %703 = arith.mulf %699, %698 : vector<8x64xf32>
    %704 = arith.addf %702, %703 : vector<8x64xf32>
    %705 = math.tanh %704 : vector<8x64xf32>
    %706 = arith.mulf %701, %705 : vector<8x64xf32>
    %707 = math.tanh %706 : vector<8x64xf32>
    %708 = arith.maximumf %687, %707 : vector<8x64xf32>
    %709 = vector.extract_strided_slice %706 {offsets = [0, 0], sizes = [8, 32], strides = [1, 1]} : vector<8x64xf32> to vector<8x32xf32>
    %c2 = arith.constant 2 : index
    %c0_213 = arith.constant 0 : index
    %c0_214 = arith.constant 0 : index
    %710 = vector.load %arg10[%c2, %c0_213, %c0_214] : memref<4x8x32xf32, #tpu.memory_space<vmem>>, vector<1x8x32xf32>
    %711 = vector.shape_cast %710 : vector<1x8x32xf32> to vector<8x32xf32>
    %712 = vector.shape_cast %709 : vector<8x32xf32> to vector<1x8x32xf32>
    tpu.vector_store %arg10[%c2, %c0_213, %c0_214], %712 {strides = array<i32>} : memref<4x8x32xf32, #tpu.memory_space<vmem>>, vector<1x8x32xf32>,
    %713 = vector.extract_strided_slice %706 {offsets = [0, 32], sizes = [8, 32], strides = [1, 1]} : vector<8x64xf32> to vector<8x32xf32>
    %c3 = arith.constant 3 : index
    %c0_215 = arith.constant 0 : index
    %c0_216 = arith.constant 0 : index
    %714 = vector.load %arg10[%c3, %c0_215, %c0_216] : memref<4x8x32xf32, #tpu.memory_space<vmem>>, vector<1x8x32xf32>
    %715 = vector.shape_cast %714 : vector<1x8x32xf32> to vector<8x32xf32>
    %716 = vector.shape_cast %713 : vector<8x32xf32> to vector<1x8x32xf32>
    tpu.vector_store %arg10[%c3, %c0_215, %c0_216], %716 {strides = array<i32>} : memref<4x8x32xf32, #tpu.memory_space<vmem>>, vector<1x8x32xf32>,
    %717 = vector.extract_strided_slice %704 {offsets = [0, 0], sizes = [8, 32], strides = [1, 1]} : vector<8x64xf32> to vector<8x32xf32>
    %c2_217 = arith.constant 2 : index
    %c0_218 = arith.constant 0 : index
    %c0_219 = arith.constant 0 : index
    %718 = vector.load %arg11[%c2_217, %c0_218, %c0_219] : memref<4x8x32xf32, #tpu.memory_space<vmem>>, vector<1x8x32xf32>
    %719 = vector.shape_cast %718 : vector<1x8x32xf32> to vector<8x32xf32>
    %720 = vector.shape_cast %717 : vector<8x32xf32> to vector<1x8x32xf32>
    tpu.vector_store %arg11[%c2_217, %c0_218, %c0_219], %720 {strides = array<i32>} : memref<4x8x32xf32, #tpu.memory_space<vmem>>, vector<1x8x32xf32>,
    %721 = vector.extract_strided_slice %704 {offsets = [0, 32], sizes = [8, 32], strides = [1, 1]} : vector<8x64xf32> to vector<8x32xf32>
    %c3_220 = arith.constant 3 : index
    %c0_221 = arith.constant 0 : index
    %c0_222 = arith.constant 0 : index
    %722 = vector.load %arg11[%c3_220, %c0_221, %c0_222] : memref<4x8x32xf32, #tpu.memory_space<vmem>>, vector<1x8x32xf32>
    %723 = vector.shape_cast %722 : vector<1x8x32xf32> to vector<8x32xf32>
    %724 = vector.shape_cast %721 : vector<8x32xf32> to vector<1x8x32xf32>
    tpu.vector_store %arg11[%c3_220, %c0_221, %c0_222], %724 {strides = array<i32>} : memref<4x8x32xf32, #tpu.memory_space<vmem>>, vector<1x8x32xf32>,
    %725 = math.tanh %708 : vector<8x64xf32>
    %c0_223 = arith.constant 0 : index
    %c0_224 = arith.constant 0 : index
    %726 = vector.load %arg7[%c0_223, %c0_224] : memref<64x10xf32, #tpu.memory_space<vmem>>, vector<64x10xf32>
    %cst_225 = arith.constant dense<0.000000e+00> : vector<8x10xf32>
    %727 = tpu.matmul %725, %726, %cst_225 {dimension_numbers = #tpu.dot_dimension_numbers<[1], [0], [0], [1], [0, 0, 1, 1], [], []>} : vector<8x64xf32>, vector<64x10xf32>, vector<8x10xf32> -> vector<8x10xf32>
    %c0_226 = arith.constant 0 : index
    %c0_227 = arith.constant 0 : index
    %728 = vector.load %arg8[%c0_226, %c0_227] : memref<1x10xf32, #tpu.memory_space<vmem>>, vector<1x10xf32>
    %729 = vector.broadcast %728 : vector<1x10xf32> to vector<8x10xf32>
    %730 = arith.addf %727, %729 : vector<8x10xf32>
    %cst_228 = arith.constant dense<0xFF800000> : vector<8xf32>
    %731 = vector.multi_reduction <maximumf>, %730, %cst_228 [1] : vector<8x10xf32> to vector<8xf32>
    %732 = vector.shape_cast %731 : vector<8xf32> to vector<8x1xf32>
    %733 = vector.broadcast %732 : vector<8x1xf32> to vector<8x10xf32>
    %734 = arith.subf %730, %733 : vector<8x10xf32>
    %735 = math.exp %734 : vector<8x10xf32>
    %cst_229 = arith.constant dense<0.000000e+00> : vector<8xf32>
    %736 = vector.multi_reduction <add>, %735, %cst_229 [1] : vector<8x10xf32> to vector<8xf32>
    %737 = vector.shape_cast %736 : vector<8xf32> to vector<8x1xf32>
    %738 = math.log %737 : vector<8x1xf32>
    %739 = arith.addf %738, %732 : vector<8x1xf32>
    %740 = vector.broadcast %739 : vector<8x1xf32> to vector<8x10xf32>
    %741 = arith.subf %730, %740 : vector<8x10xf32>
    %c0_230 = arith.constant 0 : index
    %c0_231 = arith.constant 0 : index
    %742 = vector.load %arg9[%c0_230, %c0_231] : memref<8x10xf32, #tpu.memory_space<vmem>>, vector<8x10xf32>
    tpu.vector_store %arg9[%c0_230, %c0_231], %741 {strides = array<i32>} : memref<8x10xf32, #tpu.memory_space<vmem>>, vector<8x10xf32>,
    return
  }
}

</mosaic_0001>

<llo_original>
// kernel: char_lstm_forward.1
$region0: #{char_lstm_forward.1}
  #allocation0 [shape = 'u32[]', space=smem, size = 0x4, offset = 0x4, fixed_abs, tag = 'smem constant byte address 0x4 - core index']
  #allocation1 [shape = 'u32[144,128]{1,0:T(1,128)}', space=vmem, size = 0x12000, scoped, tag = 'internal scratch']
  #allocation2 [shape = 'f32[128,256]{1,0:T(8,128)}', space=vmem, size = 0x20000, scoped, tag = 'scratch operand']
  #allocation3 [shape = 'f32[128,128]{1,0:T(8,128)}', space=vmem, size = 0x10000, scoped, tag = 'scratch operand']
  %s0 = inlined_call_operand.vmem [shape: f32[128,32], index: 0, kind: input, shape index: {}]
  %s1 = inlined_call_operand.vmem [shape: f32[32,256], index: 1, kind: input, shape index: {}]
  %s2 = inlined_call_operand.vmem [shape: f32[64,256], index: 2, kind: input, shape index: {}]
  %s3 = inlined_call_operand.vmem [shape: f32[1,256], index: 3, kind: input, shape index: {}]
  %s4 = inlined_call_operand.vmem [shape: f32[128,256], index: 4, kind: input, shape index: {}]
  %s5 = inlined_call_operand.vmem [shape: f32[64,256], index: 5, kind: input, shape index: {}]
  %s6 = inlined_call_operand.vmem [shape: f32[1,256], index: 6, kind: input, shape index: {}]
  %s7 = inlined_call_operand.vmem [shape: f32[64,10], index: 7, kind: input, shape index: {}]
  %s8 = inlined_call_operand.vmem [shape: f32[1,10], index: 8, kind: input, shape index: {}]
  %s9 = inlined_call_operand.vmem [shape: f32[8,10], index: 9, kind: output, shape index: {0}]
  %s10 = inlined_call_operand.vmem [shape: f32[4,8,32], index: 10, kind: output, shape index: {1}]
  %s11 = inlined_call_operand.vmem [shape: f32[4,8,32], index: 11, kind: output, shape index: {2}]
  %12 = xla_tuple %s9, %s10, %s11
  %s13 = sld [smem:[#allocation0]]
  $region62: #{char_lstm_forward.1} parent=0
    _
  %s15 = ssub.s32 1, %s13
  %s16 = scalar_select 0, %s15, %s13
  // Predicated region
  $region2: #{char_lstm_forward.1} parent=0 // pred_check
    _
  $region3: #{char_lstm_forward.1} parent=0 // pred_check_branch
    %18 = sbr.rel (0) target = $region5
  $region4: #{char_lstm_forward.1} parent=0 // pred_region
    _
  $region5: #{char_lstm_forward.1} parent=0 // pred_fallthru
    _
  // Predicated region
  $region6: #{char_lstm_forward.1} parent=0 // pred_check
    _
  $region7: #{char_lstm_forward.1} parent=0 // pred_check_branch
    %20 = sbr.rel (0) target = $region9
  $region8: #{char_lstm_forward.1} parent=0 // pred_region
    _
  $region9: #{char_lstm_forward.1} parent=0 // pred_fallthru
    _
  // Predicated region
  $region10: #{char_lstm_forward.1} parent=0 // pred_check
    _
  $region11: #{char_lstm_forward.1} parent=0 // pred_check_branch
    %22 = sbr.rel (0) target = $region13
  $region12: #{char_lstm_forward.1} parent=0 // pred_region
    _
  $region13: #{char_lstm_forward.1} parent=0 // pred_fallthru
    _
  // Predicated region
  $region14: #{char_lstm_forward.1} parent=0 // pred_check
    _
  $region15: #{char_lstm_forward.1} parent=0 // pred_check_branch
    %24 = sbr.rel (0) target = $region17
  $region16: #{char_lstm_forward.1} parent=0 // pred_region
    _
  $region17: #{char_lstm_forward.1} parent=0 // pred_fallthru
    _
  // Predicated region
  $region18: #{char_lstm_forward.1} parent=0 // pred_check
    _
  $region19: #{char_lstm_forward.1} parent=0 // pred_check_branch
    %26 = sbr.rel (0) target = $region21
  $region20: #{char_lstm_forward.1} parent=0 // pred_region
    _
  $region21: #{char_lstm_forward.1} parent=0 // pred_fallthru
    _
  // Predicated region
  $region22: #{char_lstm_forward.1} parent=0 // pred_check
    _
  $region23: #{char_lstm_forward.1} parent=0 // pred_check_branch
    %28 = sbr.rel (0) target = $region25
  $region24: #{char_lstm_forward.1} parent=0 // pred_region
    _
  $region25: #{char_lstm_forward.1} parent=0 // pred_fallthru
    _
  // Predicated region
  $region26: #{char_lstm_forward.1} parent=0 // pred_check
    _
  $region27: #{char_lstm_forward.1} parent=0 // pred_check_branch
    %30 = sbr.rel (0) target = $region29
  $region28: #{char_lstm_forward.1} parent=0 // pred_region
    _
  $region29: #{char_lstm_forward.1} parent=0 // pred_fallthru
    _
  // Predicated region
  $region30: #{char_lstm_forward.1} parent=0 // pred_check
    _
  $region31: #{char_lstm_forward.1} parent=0 // pred_check_branch
    %32 = sbr.rel (0) target = $region33
  $region32: #{char_lstm_forward.1} parent=0 // pred_region
    _
  $region33: #{char_lstm_forward.1} parent=0 // pred_fallthru
    _
  // Predicated region
  $region34: #{char_lstm_forward.1} parent=0 // pred_check
    _
  $region35: #{char_lstm_forward.1} parent=0 // pred_check_branch
    %34 = sbr.rel (0) target = $region37
  $region36: #{char_lstm_forward.1} parent=0 // pred_region
    _
  $region37: #{char_lstm_forward.1} parent=0 // pred_fallthru
    _
  %v35 = vld [vmem:[%s0] sm:$0xff]
  %v36 = vld [vmem:[%s0 + $0x8] sm:$0xff]
  %v37 = vld [vmem:[%s0 + $0x10] sm:$0xff]
  %v38 = vld [vmem:[%s0 + $0x18] sm:$0xff]
  %v39 = vld [vmem:[%s0 + $0x20] sm:$0xff]
  %v40 = vld [vmem:[%s0 + $0x28] sm:$0xff]
  %v41 = vld [vmem:[%s0 + $0x30] sm:$0xff]
  %v42 = vld [vmem:[%s0 + $0x38] sm:$0xff]
  %v43 = vld [vmem:[%s0 + $0x40] sm:$0xff]
  %v44 = vld [vmem:[%s0 + $0x48] sm:$0xff]
  %v45 = vld [vmem:[%s0 + $0x50] sm:$0xff]
  %v46 = vld [vmem:[%s0 + $0x58] sm:$0xff]
  %v47 = vld [vmem:[%s0 + $0x60] sm:$0xff]
  %v48 = vld [vmem:[%s0 + $0x68] sm:$0xff]
  %v49 = vld [vmem:[%s0 + $0x70] sm:$0xff]
  %v50 = vld [vmem:[%s0 + $0x78] sm:$0xff]
  %v51 = vld [vmem:[%s1] sm:$0xff]
  %v52 = vld [vmem:[%s1 + $0x8] sm:$0xff]
  %v53 = vld [vmem:[%s1 + $0x10] sm:$0xff]
  %v54 = vld [vmem:[%s1 + $0x18] sm:$0xff]
  %v55 = vld [vmem:[%s1 + $0x20] sm:$0xff]
  %v56 = vld [vmem:[%s1 + $0x28] sm:$0xff]
  %v57 = vld [vmem:[%s1 + $0x30] sm:$0xff]
  %v58 = vld [vmem:[%s1 + $0x38] sm:$0xff]
  %v59 = vld [vmem:[%s2] sm:$0xff]
  %v60 = vld [vmem:[%s2 + $0x8] sm:$0xff]
  %v61 = vld [vmem:[%s2 + $0x10] sm:$0xff]
  %v62 = vld [vmem:[%s2 + $0x18] sm:$0xff]
  %v63 = vld [vmem:[%s2 + $0x20] sm:$0xff]
  %v64 = vld [vmem:[%s2 + $0x28] sm:$0xff]
  %v65 = vld [vmem:[%s2 + $0x30] sm:$0xff]
  %v66 = vld [vmem:[%s2 + $0x38] sm:$0xff]
  %v67 = vld [vmem:[%s2 + $0x40] sm:$0xff]
  %v68 = vld [vmem:[%s2 + $0x48] sm:$0xff]
  %v69 = vld [vmem:[%s2 + $0x50] sm:$0xff]
  %v70 = vld [vmem:[%s2 + $0x58] sm:$0xff]
  %v71 = vld [vmem:[%s2 + $0x60] sm:$0xff]
  %v72 = vld [vmem:[%s2 + $0x68] sm:$0xff]
  %v73 = vld [vmem:[%s2 + $0x70] sm:$0xff]
  %v74 = vld [vmem:[%s2 + $0x78] sm:$0xff]
  %v75 = vld [vmem:[%s3] sm:$0x3]
  %v77 = vlaneseq
  %v78 = vshrl.u32 %v77, 7
  %v79 = vsub.s32 0, %v78
  %v80 = vrot.slane %v75, %v79
  %v81 = vlaneseq
  %v82 = vshrl.u32 %v81, 7
  %v83 = vsub.s32 1, %v82
  %v84 = vrot.slane %v75, %v83
  %vm87 = vcmask 261120
  %v89 = vsel %vm87, %v35, 0
  %v92 = vsel %vm87, %v36, 0
  %v95 = vsel %vm87, %v37, 0
  %v98 = vsel %vm87, %v38, 0
  %v101 = vsel %vm87, %v39, 0
  %v104 = vsel %vm87, %v40, 0
  %v107 = vsel %vm87, %v41, 0
  %v110 = vsel %vm87, %v42, 0
  %v113 = vsel %vm87, %v43, 0
  %v116 = vsel %vm87, %v44, 0
  %v119 = vsel %vm87, %v45, 0
  %v122 = vsel %vm87, %v46, 0
  %v125 = vsel %vm87, %v47, 0
  %v128 = vsel %vm87, %v48, 0
  %v131 = vsel %vm87, %v49, 0
  %v134 = vsel %vm87, %v50, 0
  %136 = vmatprep.subr.mxu0 0.0
  %137 = vmatpush1.msra.mxu0 0.0
  %138 = vmatprep.subr.mxu0 0.0
  %139 = vmatpush1.msra.mxu0 0.0
  %140 = vmatprep.subr.mxu0 0.0
  %141 = vmatpush1.msra.mxu0 0.0
  %142 = vmatprep.subr.mxu0 0.0
  %143 = vmatpush1.msra.mxu0 0.0
  %144 = vmatprep.subr.mxu0 0.0
  %145 = vmatpush1.msra.mxu0 0.0
  %146 = vmatprep.subr.mxu0 0.0
  %147 = vmatpush1.msra.mxu0 0.0
  %148 = vmatprep.subr.mxu0 0.0
  %149 = vmatpush1.msra.mxu0 0.0
  %150 = vmatprep.subr.mxu0 0.0
  %151 = vmatpush1.msra.mxu0 0.0
  %152 = vmatprep.subr.mxu0 0.0
  %153 = vmatpush1.msra.mxu0 0.0
  %154 = vmatprep.subr.mxu0 0.0
  %155 = vmatpush1.msra.mxu0 0.0
  %156 = vmatprep.subr.mxu0 0.0
  %157 = vmatpush1.msra.mxu0 0.0
  %158 = vmatprep.subr.mxu0 0.0
  %159 = vmatpush1.msra.mxu0 0.0
  %160 = vmatprep.subr.mxu0 %v58
  %161 = vmatpush1.msra.mxu0 %v57
  %162 = vmatprep.subr.mxu0 %v56
  %163 = vmatpush1.msra.mxu0 %v55
  %164 = vmatprep.subr.mxu0 %v54
  %165 = vmatpush1.msra.mxu0 %v53
  %166 = vmatprep.subr.mxu0 %v52
  %167 = vmatpush1.msra.mxu0 %v51
  %168 = vmatprep.subr.mxu0 0.0
  %169 = vmatpush2.msra.mxu0 0.0
  %170 = vmatprep.subr.mxu0 0.0
  %171 = vmatpush2.msra.mxu0 0.0
  %172 = vmatprep.subr.mxu0 0.0
  %173 = vmatpush2.msra.mxu0 0.0
  %174 = vmatprep.subr.mxu0 0.0
  %175 = vmatpush2.msra.mxu0 0.0
  %176 = vmatprep.subr.mxu0 0.0
  %177 = vmatpush2.msra.mxu0 0.0
  %178 = vmatprep.subr.mxu0 0.0
  %179 = vmatpush2.msra.mxu0 0.0
  %180 = vmatprep.subr.mxu0 0.0
  %181 = vmatpush2.msra.mxu0 0.0
  %182 = vmatprep.subr.mxu0 0.0
  %183 = vmatpush2.msra.mxu0 0.0
  %184 = vmatprep.subr.mxu0 0.0
  %185 = vmatpush2.msra.mxu0 0.0
  %186 = vmatprep.subr.mxu0 0.0
  %187 = vmatpush2.msra.mxu0 0.0
  %188 = vmatprep.subr.mxu0 0.0
  %189 = vmatpush2.msra.mxu0 0.0
  %190 = vmatprep.subr.mxu0 0.0
  %191 = vmatpush2.msra.mxu0 0.0
  %192 = vmatprep.subr.mxu0 0.0
  %193 = vmatpush2.msra.mxu0 0.0
  %194 = vmatprep.subr.mxu0 0.0
  %195 = vmatpush2.msra.mxu0 0.0
  %196 = vmatprep.subr.mxu0 0.0
  %197 = vmatpush2.msra.mxu0 0.0
  %198 = vmatprep.subr.mxu0 0.0
  %199 = vmatpush2.msra.mxu0 0.0
  %200 = vmatprep.mubr.f32.mxu0 0.0
  %201 = vmatmul.mubr.f32.gmra.mxu0 %v89
  %v202 = vpop.f32.mrf.mxu0
  %v203 = vadd.f32 %v80, %v202
  %v204 = vpop.f32.mrf.mxu0
  %v205 = vadd.f32 %v84, %v204
  %206 = vmatprep.mubr.f32.mxu0 0.0
  %207 = vmatmul.mubr.f32.gmra.mxu0 %v92
  %v208 = vpop.f32.mrf.mxu0
  %v209 = vadd.f32 %v80, %v208
  %v210 = vpop.f32.mrf.mxu0
  %v211 = vadd.f32 %v84, %v210
  %212 = vmatprep.mubr.f32.mxu0 0.0
  %213 = vmatmul.mubr.f32.gmra.mxu0 %v95
  %v214 = vpop.f32.mrf.mxu0
  %v215 = vadd.f32 %v80, %v214
  %v216 = vpop.f32.mrf.mxu0
  %v217 = vadd.f32 %v84, %v216
  %218 = vmatprep.mubr.f32.mxu0 0.0
  %219 = vmatmul.mubr.f32.gmra.mxu0 %v98
  %v220 = vpop.f32.mrf.mxu0
  %v221 = vadd.f32 %v80, %v220
  %v222 = vpop.f32.mrf.mxu0
  %v223 = vadd.f32 %v84, %v222
  %224 = vmatprep.mubr.f32.mxu0 0.0
  %225 = vmatmul.mubr.f32.gmra.mxu0 %v101
  %v226 = vpop.f32.mrf.mxu0
  %v227 = vadd.f32 %v80, %v226
  %v228 = vpop.f32.mrf.mxu0
  %v229 = vadd.f32 %v84, %v228
  %230 = vmatprep.mubr.f32.mxu0 0.0
  %231 = vmatmul.mubr.f32.gmra.mxu0 %v104
  %v232 = vpop.f32.mrf.mxu0
  %v233 = vadd.f32 %v80, %v232
  %v234 = vpop.f32.mrf.mxu0
  %v235 = vadd.f32 %v84, %v234
  %236 = vmatprep.mubr.f32.mxu0 0.0
  %237 = vmatmul.mubr.f32.gmra.mxu0 %v107
  %v238 = vpop.f32.mrf.mxu0
  %v239 = vadd.f32 %v80, %v238
  %v240 = vpop.f32.mrf.mxu0
  %v241 = vadd.f32 %v84, %v240
  %242 = vmatprep.mubr.f32.mxu0 0.0
  %243 = vmatmul.mubr.f32.gmra.mxu0 %v110
  %v244 = vpop.f32.mrf.mxu0
  %v245 = vadd.f32 %v80, %v244
  %v246 = vpop.f32.mrf.mxu0
  %v247 = vadd.f32 %v84, %v246
  %248 = vmatprep.mubr.f32.mxu0 0.0
  %249 = vmatmul.mubr.f32.gmra.mxu0 %v113
  %v250 = vpop.f32.mrf.mxu0
  %v251 = vadd.f32 %v80, %v250
  %v252 = vpop.f32.mrf.mxu0
  %v253 = vadd.f32 %v84, %v252
  %254 = vmatprep.mubr.f32.mxu0 0.0
  %255 = vmatmul.mubr.f32.gmra.mxu0 %v116
  %v256 = vpop.f32.mrf.mxu0
  %v257 = vadd.f32 %v80, %v256
  %v258 = vpop.f32.mrf.mxu0
  %v259 = vadd.f32 %v84, %v258
  %260 = vmatprep.mubr.f32.mxu0 0.0
  %261 = vmatmul.mubr.f32.gmra.mxu0 %v119
  %v262 = vpop.f32.mrf.mxu0
  %v263 = vadd.f32 %v80, %v262
  %v264 = vpop.f32.mrf.mxu0
  %v265 = vadd.f32 %v84, %v264
  %266 = vmatprep.mubr.f32.mxu0 0.0
  %267 = vmatmul.mubr.f32.gmra.mxu0 %v122
  %v268 = vpop.f32.mrf.mxu0
  %v269 = vadd.f32 %v80, %v268
  %v270 = vpop.f32.mrf.mxu0
  %v271 = vadd.f32 %v84, %v270
  %272 = vmatprep.mubr.f32.mxu0 0.0
  %273 = vmatmul.mubr.f32.gmra.mxu0 %v125
  %v274 = vpop.f32.mrf.mxu0
  %v275 = vadd.f32 %v80, %v274
  %v276 = vpop.f32.mrf.mxu0
  %v277 = vadd.f32 %v84, %v276
  %278 = vmatprep.mubr.f32.mxu0 0.0
  %279 = vmatmul.mubr.f32.gmra.mxu0 %v128
  %v280 = vpop.f32.mrf.mxu0
  %v281 = vadd.f32 %v80, %v280
  %v282 = vpop.f32.mrf.mxu0
  %v283 = vadd.f32 %v84, %v282
  %284 = vmatprep.mubr.f32.mxu0 0.0
  %285 = vmatmul.mubr.f32.gmra.mxu0 %v131
  %v286 = vpop.f32.mrf.mxu0
  %v287 = vadd.f32 %v80, %v286
  %v288 = vpop.f32.mrf.mxu0
  %v289 = vadd.f32 %v84, %v288
  %290 = vmatprep.mubr.f32.mxu0 0.0
  %291 = vmatmul.mubr.f32.gmra.mxu0 %v134
  %v292 = vpop.f32.mrf.mxu0
  %v293 = vadd.f32 %v80, %v292
  %v294 = vpop.f32.mrf.mxu0
  %v295 = vadd.f32 %v84, %v294
  %296 = vdwg.mxu0
  %297 = vst [vmem:[#allocation2] sm:$0xff] %v203
  %298 = vst [vmem:[#allocation2 + $0x8] sm:$0xff] %v205
  %299 = vst [vmem:[#allocation2 + $0x10] sm:$0xff] %v209
  %300 = vst [vmem:[#allocation2 + $0x18] sm:$0xff] %v211
  %301 = vst [vmem:[#allocation2 + $0x20] sm:$0xff] %v215
  %302 = vst [vmem:[#allocation2 + $0x28] sm:$0xff] %v217
  %303 = vst [vmem:[#allocation2 + $0x30] sm:$0xff] %v221
  %304 = vst [vmem:[#allocation2 + $0x38] sm:$0xff] %v223
  %305 = vst [vmem:[#allocation2 + $0x40] sm:$0xff] %v227
  %306 = vst [vmem:[#allocation2 + $0x48] sm:$0xff] %v229
  %307 = vst [vmem:[#allocation2 + $0x50] sm:$0xff] %v233
  %308 = vst [vmem:[#allocation2 + $0x58] sm:$0xff] %v235
  %309 = vst [vmem:[#allocation2 + $0x60] sm:$0xff] %v239
  %310 = vst [vmem:[#allocation2 + $0x68] sm:$0xff] %v241
  %311 = vst [vmem:[#allocation2 + $0x70] sm:$0xff] %v245
  %312 = vst [vmem:[#allocation2 + $0x78] sm:$0xff] %v247
  %313 = vst [vmem:[#allocation2 + $0x80] sm:$0xff] %v251
  %314 = vst [vmem:[#allocation2 + $0x88] sm:$0xff] %v253
  %315 = vst [vmem:[#allocation2 + $0x90] sm:$0xff] %v257
  %316 = vst [vmem:[#allocation2 + $0x98] sm:$0xff] %v259
  %317 = vst [vmem:[#allocation2 + $0xa0] sm:$0xff] %v263
  %318 = vst [vmem:[#allocation2 + $0xa8] sm:$0xff] %v265
  %319 = vst [vmem:[#allocation2 + $0xb0] sm:$0xff] %v269
  %320 = vst [vmem:[#allocation2 + $0xb8] sm:$0xff] %v271
  %321 = vst [vmem:[#allocation2 + $0xc0] sm:$0xff] %v275
  %322 = vst [vmem:[#allocation2 + $0xc8] sm:$0xff] %v277
  %323 = vst [vmem:[#allocation2 + $0xd0] sm:$0xff] %v281
  %324 = vst [vmem:[#allocation2 + $0xd8] sm:$0xff] %v283
  %325 = vst [vmem:[#allocation2 + $0xe0] sm:$0xff] %v287
  %326 = vst [vmem:[#allocation2 + $0xe8] sm:$0xff] %v289
  %327 = vst [vmem:[#allocation2 + $0xf0] sm:$0xff] %v293
  %328 = vst [vmem:[#allocation2 + $0xf8] sm:$0xff] %v295
  %v329 = vld [vmem:[#allocation2] sm:$0xff]
  %v330 = vld [vmem:[#allocation2 + $0x8] sm:$0xff]
  %vm331 = vcmask 523264
  %v333 = vsel %vm331, 0.0, 0
  %335 = vmatprep.subr.mxu0 0.0
  %336 = vmatpush1.msra.mxu0 0.0
  %337 = vmatprep.subr.mxu0 0.0
  %338 = vmatpush1.msra.mxu0 0.0
  %339 = vmatprep.subr.mxu0 0.0
  %340 = vmatpush1.msra.mxu0 0.0
  %341 = vmatprep.subr.mxu0 0.0
  %342 = vmatpush1.msra.mxu0 0.0
  %343 = vmatprep.subr.mxu0 0.0
  %344 = vmatpush1.msra.mxu0 0.0
  %345 = vmatprep.subr.mxu0 0.0
  %346 = vmatpush1.msra.mxu0 0.0
  %347 = vmatprep.subr.mxu0 0.0
  %348 = vmatpush1.msra.mxu0 0.0
  %349 = vmatprep.subr.mxu0 0.0
  %350 = vmatpush1.msra.mxu0 0.0
  %351 = vmatprep.subr.mxu0 %v74
  %352 = vmatpush1.msra.mxu0 %v73
  %353 = vmatprep.subr.mxu0 %v72
  %354 = vmatpush1.msra.mxu0 %v71
  %355 = vmatprep.subr.mxu0 %v70
  %356 = vmatpush1.msra.mxu0 %v69
  %357 = vmatprep.subr.mxu0 %v68
  %358 = vmatpush1.msra.mxu0 %v67
  %359 = vmatprep.subr.mxu0 %v66
  %360 = vmatpush1.msra.mxu0 %v65
  %361 = vmatprep.subr.mxu0 %v64
  %362 = vmatpush1.msra.mxu0 %v63
  %363 = vmatprep.subr.mxu0 %v62
  %364 = vmatpush1.msra.mxu0 %v61
  %365 = vmatprep.subr.mxu0 %v60
  %366 = vmatpush1.msra.mxu0 %v59
  %367 = vmatprep.subr.mxu0 0.0
  %368 = vmatpush2.msra.mxu0 0.0
  %369 = vmatprep.subr.mxu0 0.0
  %370 = vmatpush2.msra.mxu0 0.0
  %371 = vmatprep.subr.mxu0 0.0
  %372 = vmatpush2.msra.mxu0 0.0
  %373 = vmatprep.subr.mxu0 0.0
  %374 = vmatpush2.msra.mxu0 0.0
  %375 = vmatprep.subr.mxu0 0.0
  %376 = vmatpush2.msra.mxu0 0.0
  %377 = vmatprep.subr.mxu0 0.0
  %378 = vmatpush2.msra.mxu0 0.0
  %379 = vmatprep.subr.mxu0 0.0
  %380 = vmatpush2.msra.mxu0 0.0
  %381 = vmatprep.subr.mxu0 0.0
  %382 = vmatpush2.msra.mxu0 0.0
  %383 = vmatprep.subr.mxu0 0.0
  %384 = vmatpush2.msra.mxu0 0.0
  %385 = vmatprep.subr.mxu0 0.0
  %386 = vmatpush2.msra.mxu0 0.0
  %387 = vmatprep.subr.mxu0 0.0
  %388 = vmatpush2.msra.mxu0 0.0
  %389 = vmatprep.subr.mxu0 0.0
  %390 = vmatpush2.msra.mxu0 0.0
  %391 = vmatprep.subr.mxu0 0.0
  %392 = vmatpush2.msra.mxu0 0.0
  %393 = vmatprep.subr.mxu0 0.0
  %394 = vmatpush2.msra.mxu0 0.0
  %395 = vmatprep.subr.mxu0 0.0
  %396 = vmatpush2.msra.mxu0 0.0
  %397 = vmatprep.subr.mxu0 0.0
  %398 = vmatpush2.msra.mxu0 0.0
  %399 = vmatprep.mubr.f32.mxu0 0.0
  %400 = vmatmul.mubr.f32.gmra.mxu0 %v333
  %v401 = vpop.f32.mrf.mxu0
  %v402 = vadd.f32 0.0, %v401
  %v403 = vpop.f32.mrf.mxu0
  %v404 = vadd.f32 0.0, %v403
  %405 = vdwg.mxu0
  %v406 = vadd.f32 %v329, %v402
  %v407 = vadd.f32 %v330, %v404
  %v408 = vxor.u32 %v406, 2147483648
  %v409 = vxor.u32 %v407, 2147483648
  %v410 = vmul.f32 %v408, 1.442695
  %v411 = vpow.pop %v410
  %v412 = vmul.f32 %v409, 1.442695
  %v413 = vpow.pop %v412
  %v414 = vadd.f32 %v411, 1.0
  %v415 = vadd.f32 %v413, 1.0
  %v416 = vrcp.pop %v414
  %v417 = vmul.f32 1.0, %v416
  %v418 = vrcp.pop %v415
  %v419 = vmul.f32 1.0, %v418
  %v420 = vtanh.pop %v407
  %v421 = vmul.f32 %v417, 0.0
  %423 = vrot.lane.b32.xlu0 %v420, 64
  %v424 = vpop.permute.xlu0 %423
  %v426 = vmul.f32 %v417, %v424
  %428 = vrot.lane.b32.xlu0 %v426, 64
  %v429 = vpop.permute.xlu0 %428
  %v431 = vadd.f32 %v421, %v429
  %v432 = vtanh.pop %v431
  %434 = vrot.lane.b32.xlu0 %v432, 64
  %v435 = vpop.permute.xlu0 %434
  %v437 = vmul.f32 %v419, %v435
  %438 = vst.msk [vmem:[#allocation3] sm:$0xff] %vm331, %v437
  %440 = vrot.lane.b32.xlu0 %v437, 64
  %v441 = vpop.permute.xlu0 %440
  %vm443 = vcmask 1048064
  %444 = vst.msk [vmem:[#allocation3 + $0x78] sm:$0xff] %vm443, %v441
  %v445 = vld [vmem:[#allocation2 + $0x10] sm:$0xff]
  %v446 = vld [vmem:[#allocation2 + $0x18] sm:$0xff]
  %v447 = vsel %vm331, %v437, 0
  %449 = vmatprep.subr.mxu0 0.0
  %450 = vmatpush1.msra.mxu0 0.0
  %451 = vmatprep.subr.mxu0 0.0
  %452 = vmatpush1.msra.mxu0 0.0
  %453 = vmatprep.subr.mxu0 0.0
  %454 = vmatpush1.msra.mxu0 0.0
  %455 = vmatprep.subr.mxu0 0.0
  %456 = vmatpush1.msra.mxu0 0.0
  %457 = vmatprep.subr.mxu0 0.0
  %458 = vmatpush1.msra.mxu0 0.0
  %459 = vmatprep.subr.mxu0 0.0
  %460 = vmatpush1.msra.mxu0 0.0
  %461 = vmatprep.subr.mxu0 0.0
  %462 = vmatpush1.msra.mxu0 0.0
  %463 = vmatprep.subr.mxu0 0.0
  %464 = vmatpush1.msra.mxu0 0.0
  %465 = vmatprep.subr.mxu0 %v74
  %466 = vmatpush1.msra.mxu0 %v73
  %467 = vmatprep.subr.mxu0 %v72
  %468 = vmatpush1.msra.mxu0 %v71
  %469 = vmatprep.subr.mxu0 %v70
  %470 = vmatpush1.msra.mxu0 %v69
  %471 = vmatprep.subr.mxu0 %v68
  %472 = vmatpush1.msra.mxu0 %v67
  %473 = vmatprep.subr.mxu0 %v66
  %474 = vmatpush1.msra.mxu0 %v65
  %475 = vmatprep.subr.mxu0 %v64
  %476 = vmatpush1.msra.mxu0 %v63
  %477 = vmatprep.subr.mxu0 %v62
  %478 = vmatpush1.msra.mxu0 %v61
  %479 = vmatprep.subr.mxu0 %v60
  %480 = vmatpush1.msra.mxu0 %v59
  %481 = vmatprep.subr.mxu0 0.0
  %482 = vmatpush2.msra.mxu0 0.0
  %483 = vmatprep.subr.mxu0 0.0
  %484 = vmatpush2.msra.mxu0 0.0
  %485 = vmatprep.subr.mxu0 0.0
  %486 = vmatpush2.msra.mxu0 0.0
  %487 = vmatprep.subr.mxu0 0.0
  %488 = vmatpush2.msra.mxu0 0.0
  %489 = vmatprep.subr.mxu0 0.0
  %490 = vmatpush2.msra.mxu0 0.0
  %491 = vmatprep.subr.mxu0 0.0
  %492 = vmatpush2.msra.mxu0 0.0
  %493 = vmatprep.subr.mxu0 0.0
  %494 = vmatpush2.msra.mxu0 0.0
  %495 = vmatprep.subr.mxu0 0.0
  %496 = vmatpush2.msra.mxu0 0.0
  %497 = vmatprep.subr.mxu0 0.0
  %498 = vmatpush2.msra.mxu0 0.0
  %499 = vmatprep.subr.mxu0 0.0
  %500 = vmatpush2.msra.mxu0 0.0
  %501 = vmatprep.subr.mxu0 0.0
  %502 = vmatpush2.msra.mxu0 0.0
  %503 = vmatprep.subr.mxu0 0.0
  %504 = vmatpush2.msra.mxu0 0.0
  %505 = vmatprep.subr.mxu0 0.0
  %506 = vmatpush2.msra.mxu0 0.0
  %507 = vmatprep.subr.mxu0 0.0
  %508 = vmatpush2.msra.mxu0 0.0
  %509 = vmatprep.subr.mxu0 0.0
  %510 = vmatpush2.msra.mxu0 0.0
  %511 = vmatprep.subr.mxu0 0.0
  %512 = vmatpush2.msra.mxu0 0.0
  %513 = vmatprep.mubr.f32.mxu0 0.0
  %514 = vmatmul.mubr.f32.gmra.mxu0 %v447
  %v515 = vpop.f32.mrf.mxu0
  %v516 = vadd.f32 0.0, %v515
  %v517 = vpop.f32.mrf.mxu0
  %v518 = vadd.f32 0.0, %v517
  %519 = vdwg.mxu0
  %v520 = vadd.f32 %v445, %v516
  %v521 = vadd.f32 %v446, %v518
  %v522 = vxor.u32 %v520, 2147483648
  %v523 = vxor.u32 %v521, 2147483648
  %v524 = vmul.f32 %v522, 1.442695
  %v525 = vpow.pop %v524
  %v526 = vmul.f32 %v523, 1.442695
  %v527 = vpow.pop %v526
  %v528 = vadd.f32 %v525, 1.0
  %v529 = vadd.f32 %v527, 1.0
  %v530 = vrcp.pop %v528
  %v531 = vmul.f32 1.0, %v530
  %v532 = vrcp.pop %v529
  %v533 = vmul.f32 1.0, %v532
  %v534 = vtanh.pop %v521
  %v535 = vmul.f32 %v531, %v431
  %537 = vrot.lane.b32.xlu0 %v534, 64
  %v538 = vpop.permute.xlu0 %537
  %v540 = vmul.f32 %v531, %v538
  %542 = vrot.lane.b32.xlu0 %v540, 64
  %v543 = vpop.permute.xlu0 %542
  %v545 = vadd.f32 %v535, %v543
  %v546 = vtanh.pop %v545
  %548 = vrot.lane.b32.xlu0 %v546, 64
  %v549 = vpop.permute.xlu0 %548
  %v551 = vmul.f32 %v533, %v549
  %552 = vst.msk [vmem:[#allocation3 + $0x8] sm:$0xff] %vm331, %v551
  %554 = vrot.lane.b32.xlu0 %v551, 64
  %v555 = vpop.permute.xlu0 %554
  %557 = vst.msk [vmem:[#allocation3 + $0x70] sm:$0xff] %vm443, %v555
  %v558 = vld [vmem:[#allocation2 + $0x20] sm:$0xff]
  %v559 = vld [vmem:[#allocation2 + $0x28] sm:$0xff]
  %v560 = vsel %vm331, %v551, 0
  %562 = vmatprep.subr.mxu0 0.0
  %563 = vmatpush1.msra.mxu0 0.0
  %564 = vmatprep.subr.mxu0 0.0
  %565 = vmatpush1.msra.mxu0 0.0
  %566 = vmatprep.subr.mxu0 0.0
  %567 = vmatpush1.msra.mxu0 0.0
  %568 = vmatprep.subr.mxu0 0.0
  %569 = vmatpush1.msra.mxu0 0.0
  %570 = vmatprep.subr.mxu0 0.0
  %571 = vmatpush1.msra.mxu0 0.0
  %572 = vmatprep.subr.mxu0 0.0
  %573 = vmatpush1.msra.mxu0 0.0
  %574 = vmatprep.subr.mxu0 0.0
  %575 = vmatpush1.msra.mxu0 0.0
  %576 = vmatprep.subr.mxu0 0.0
  %577 = vmatpush1.msra.mxu0 0.0
  %578 = vmatprep.subr.mxu0 %v74
  %579 = vmatpush1.msra.mxu0 %v73
  %580 = vmatprep.subr.mxu0 %v72
  %581 = vmatpush1.msra.mxu0 %v71
  %582 = vmatprep.subr.mxu0 %v70
  %583 = vmatpush1.msra.mxu0 %v69
  %584 = vmatprep.subr.mxu0 %v68
  %585 = vmatpush1.msra.mxu0 %v67
  %586 = vmatprep.subr.mxu0 %v66
  %587 = vmatpush1.msra.mxu0 %v65
  %588 = vmatprep.subr.mxu0 %v64
  %589 = vmatpush1.msra.mxu0 %v63
  %590 = vmatprep.subr.mxu0 %v62
  %591 = vmatpush1.msra.mxu0 %v61
  %592 = vmatprep.subr.mxu0 %v60
  %593 = vmatpush1.msra.mxu0 %v59
  %594 = vmatprep.subr.mxu0 0.0
  %595 = vmatpush2.msra.mxu0 0.0
  %596 = vmatprep.subr.mxu0 0.0
  %597 = vmatpush2.msra.mxu0 0.0
  %598 = vmatprep.subr.mxu0 0.0
  %599 = vmatpush2.msra.mxu0 0.0
  %600 = vmatprep.subr.mxu0 0.0
  %601 = vmatpush2.msra.mxu0 0.0
  %602 = vmatprep.subr.mxu0 0.0
  %603 = vmatpush2.msra.mxu0 0.0
  %604 = vmatprep.subr.mxu0 0.0
  %605 = vmatpush2.msra.mxu0 0.0
  %606 = vmatprep.subr.mxu0 0.0
  %607 = vmatpush2.msra.mxu0 0.0
  %608 = vmatprep.subr.mxu0 0.0
  %609 = vmatpush2.msra.mxu0 0.0
  %610 = vmatprep.subr.mxu0 0.0
  %611 = vmatpush2.msra.mxu0 0.0
  %612 = vmatprep.subr.mxu0 0.0
  %613 = vmatpush2.msra.mxu0 0.0
  %614 = vmatprep.subr.mxu0 0.0
  %615 = vmatpush2.msra.mxu0 0.0
  %616 = vmatprep.subr.mxu0 0.0
  %617 = vmatpush2.msra.mxu0 0.0
  %618 = vmatprep.subr.mxu0 0.0
  %619 = vmatpush2.msra.mxu0 0.0
  %620 = vmatprep.subr.mxu0 0.0
  %621 = vmatpush2.msra.mxu0 0.0
  %622 = vmatprep.subr.mxu0 0.0
  %623 = vmatpush2.msra.mxu0 0.0
  %624 = vmatprep.subr.mxu0 0.0
  %625 = vmatpush2.msra.mxu0 0.0
  %626 = vmatprep.mubr.f32.mxu0 0.0
  %627 = vmatmul.mubr.f32.gmra.mxu0 %v560
  %v628 = vpop.f32.mrf.mxu0
  %v629 = vadd.f32 0.0, %v628
  %v630 = vpop.f32.mrf.mxu0
  %v631 = vadd.f32 0.0, %v630
  %632 = vdwg.mxu0
  %v633 = vadd.f32 %v558, %v629
  %v634 = vadd.f32 %v559, %v631
  %v635 = vxor.u32 %v633, 2147483648
  %v636 = vxor.u32 %v634, 2147483648
  %v637 = vmul.f32 %v635, 1.442695
  %v638 = vpow.pop %v637
  %v639 = vmul.f32 %v636, 1.442695
  %v640 = vpow.pop %v639
  %v641 = vadd.f32 %v638, 1.0
  %v642 = vadd.f32 %v640, 1.0
  %v643 = vrcp.pop %v641
  %v644 = vmul.f32 1.0, %v643
  %v645 = vrcp.pop %v642
  %v646 = vmul.f32 1.0, %v645
  %v647 = vtanh.pop %v634
  %v648 = vmul.f32 %v644, %v545
  %650 = vrot.lane.b32.xlu0 %v647, 64
  %v651 = vpop.permute.xlu0 %650
  %v653 = vmul.f32 %v644, %v651
  %655 = vrot.lane.b32.xlu0 %v653, 64
  %v656 = vpop.permute.xlu0 %655
  %v658 = vadd.f32 %v648, %v656
  %v659 = vtanh.pop %v658
  %661 = vrot.lane.b32.xlu0 %v659, 64
  %v662 = vpop.permute.xlu0 %661
  %v664 = vmul.f32 %v646, %v662
  %665 = vst.msk [vmem:[#allocation3 + $0x10] sm:$0xff] %vm331, %v664
  %667 = vrot.lane.b32.xlu0 %v664, 64
  %v668 = vpop.permute.xlu0 %667
  %670 = vst.msk [vmem:[#allocation3 + $0x68] sm:$0xff] %vm443, %v668
  %v671 = vld [vmem:[#allocation2 + $0x30] sm:$0xff]
  %v672 = vld [vmem:[#allocation2 + $0x38] sm:$0xff]
  %v673 = vsel %vm331, %v664, 0
  %675 = vmatprep.subr.mxu0 0.0
  %676 = vmatpush1.msra.mxu0 0.0
  %677 = vmatprep.subr.mxu0 0.0
  %678 = vmatpush1.msra.mxu0 0.0
  %679 = vmatprep.subr.mxu0 0.0
  %680 = vmatpush1.msra.mxu0 0.0
  %681 = vmatprep.subr.mxu0 0.0
  %682 = vmatpush1.msra.mxu0 0.0
  %683 = vmatprep.subr.mxu0 0.0
  %684 = vmatpush1.msra.mxu0 0.0
  %685 = vmatprep.subr.mxu0 0.0
  %686 = vmatpush1.msra.mxu0 0.0
  %687 = vmatprep.subr.mxu0 0.0
  %688 = vmatpush1.msra.mxu0 0.0
  %689 = vmatprep.subr.mxu0 0.0
  %690 = vmatpush1.msra.mxu0 0.0
  %691 = vmatprep.subr.mxu0 %v74
  %692 = vmatpush1.msra.mxu0 %v73
  %693 = vmatprep.subr.mxu0 %v72
  %694 = vmatpush1.msra.mxu0 %v71
  %695 = vmatprep.subr.mxu0 %v70
  %696 = vmatpush1.msra.mxu0 %v69
  %697 = vmatprep.subr.mxu0 %v68
  %698 = vmatpush1.msra.mxu0 %v67
  %699 = vmatprep.subr.mxu0 %v66
  %700 = vmatpush1.msra.mxu0 %v65
  %701 = vmatprep.subr.mxu0 %v64
  %702 = vmatpush1.msra.mxu0 %v63
  %703 = vmatprep.subr.mxu0 %v62
  %704 = vmatpush1.msra.mxu0 %v61
  %705 = vmatprep.subr.mxu0 %v60
  %706 = vmatpush1.msra.mxu0 %v59
  %707 = vmatprep.subr.mxu0 0.0
  %708 = vmatpush2.msra.mxu0 0.0
  %709 = vmatprep.subr.mxu0 0.0
  %710 = vmatpush2.msra.mxu0 0.0
  %711 = vmatprep.subr.mxu0 0.0
  %712 = vmatpush2.msra.mxu0 0.0
  %713 = vmatprep.subr.mxu0 0.0
  %714 = vmatpush2.msra.mxu0 0.0
  %715 = vmatprep.subr.mxu0 0.0
  %716 = vmatpush2.msra.mxu0 0.0
  %717 = vmatprep.subr.mxu0 0.0
  %718 = vmatpush2.msra.mxu0 0.0
  %719 = vmatprep.subr.mxu0 0.0
  %720 = vmatpush2.msra.mxu0 0.0
  %721 = vmatprep.subr.mxu0 0.0
  %722 = vmatpush2.msra.mxu0 0.0
  %723 = vmatprep.subr.mxu0 0.0
  %724 = vmatpush2.msra.mxu0 0.0
  %725 = vmatprep.subr.mxu0 0.0
  %726 = vmatpush2.msra.mxu0 0.0
  %727 = vmatprep.subr.mxu0 0.0
  %728 = vmatpush2.msra.mxu0 0.0
  %729 = vmatprep.subr.mxu0 0.0
  %730 = vmatpush2.msra.mxu0 0.0
  %731 = vmatprep.subr.mxu0 0.0
  %732 = vmatpush2.msra.mxu0 0.0
  %733 = vmatprep.subr.mxu0 0.0
  %734 = vmatpush2.msra.mxu0 0.0
  %735 = vmatprep.subr.mxu0 0.0
  %736 = vmatpush2.msra.mxu0 0.0
  %737 = vmatprep.subr.mxu0 0.0
  %738 = vmatpush2.msra.mxu0 0.0
  %739 = vmatprep.mubr.f32.mxu0 0.0
  %740 = vmatmul.mubr.f32.gmra.mxu0 %v673
  %v741 = vpop.f32.mrf.mxu0
  %v742 = vadd.f32 0.0, %v741
  %v743 = vpop.f32.mrf.mxu0
  %v744 = vadd.f32 0.0, %v743
  %745 = vdwg.mxu0
  %v746 = vadd.f32 %v671, %v742
  %v747 = vadd.f32 %v672, %v744
  %v748 = vxor.u32 %v746, 2147483648
  %v749 = vxor.u32 %v747, 2147483648
  %v750 = vmul.f32 %v748, 1.442695
  %v751 = vpow.pop %v750
  %v752 = vmul.f32 %v749, 1.442695
  %v753 = vpow.pop %v752
  %v754 = vadd.f32 %v751, 1.0
  %v755 = vadd.f32 %v753, 1.0
  %v756 = vrcp.pop %v754
  %v757 = vmul.f32 1.0, %v756
  %v758 = vrcp.pop %v755
  %v759 = vmul.f32 1.0, %v758
  %v760 = vtanh.pop %v747
  %v761 = vmul.f32 %v757, %v658
  %763 = vrot.lane.b32.xlu0 %v760, 64
  %v764 = vpop.permute.xlu0 %763
  %v766 = vmul.f32 %v757, %v764
  %768 = vrot.lane.b32.xlu0 %v766, 64
  %v769 = vpop.permute.xlu0 %768
  %v771 = vadd.f32 %v761, %v769
  %v772 = vtanh.pop %v771
  %774 = vrot.lane.b32.xlu0 %v772, 64
  %v775 = vpop.permute.xlu0 %774
  %v777 = vmul.f32 %v759, %v775
  %778 = vst.msk [vmem:[#allocation3 + $0x18] sm:$0xff] %vm331, %v777
  %780 = vrot.lane.b32.xlu0 %v777, 64
  %v781 = vpop.permute.xlu0 %780
  %783 = vst.msk [vmem:[#allocation3 + $0x60] sm:$0xff] %vm443, %v781
  %v784 = vld [vmem:[#allocation2 + $0x40] sm:$0xff]
  %v785 = vld [vmem:[#allocation2 + $0x48] sm:$0xff]
  %v786 = vsel %vm331, %v777, 0
  %788 = vmatprep.subr.mxu0 0.0
  %789 = vmatpush1.msra.mxu0 0.0
  %790 = vmatprep.subr.mxu0 0.0
  %791 = vmatpush1.msra.mxu0 0.0
  %792 = vmatprep.subr.mxu0 0.0
  %793 = vmatpush1.msra.mxu0 0.0
  %794 = vmatprep.subr.mxu0 0.0
  %795 = vmatpush1.msra.mxu0 0.0
  %796 = vmatprep.subr.mxu0 0.0
  %797 = vmatpush1.msra.mxu0 0.0
  %798 = vmatprep.subr.mxu0 0.0
  %799 = vmatpush1.msra.mxu0 0.0
  %800 = vmatprep.subr.mxu0 0.0
  %801 = vmatpush1.msra.mxu0 0.0
  %802 = vmatprep.subr.mxu0 0.0
  %803 = vmatpush1.msra.mxu0 0.0
  %804 = vmatprep.subr.mxu0 %v74
  %805 = vmatpush1.msra.mxu0 %v73
  %806 = vmatprep.subr.mxu0 %v72
  %807 = vmatpush1.msra.mxu0 %v71
  %808 = vmatprep.subr.mxu0 %v70
  %809 = vmatpush1.msra.mxu0 %v69
  %810 = vmatprep.subr.mxu0 %v68
  %811 = vmatpush1.msra.mxu0 %v67
  %812 = vmatprep.subr.mxu0 %v66
  %813 = vmatpush1.msra.mxu0 %v65
  %814 = vmatprep.subr.mxu0 %v64
  %815 = vmatpush1.msra.mxu0 %v63
  %816 = vmatprep.subr.mxu0 %v62
  %817 = vmatpush1.msra.mxu0 %v61
  %818 = vmatprep.subr.mxu0 %v60
  %819 = vmatpush1.msra.mxu0 %v59
  %820 = vmatprep.subr.mxu0 0.0
  %821 = vmatpush2.msra.mxu0 0.0
  %822 = vmatprep.subr.mxu0 0.0
  %823 = vmatpush2.msra.mxu0 0.0
  %824 = vmatprep.subr.mxu0 0.0
  %825 = vmatpush2.msra.mxu0 0.0
  %826 = vmatprep.subr.mxu0 0.0
  %827 = vmatpush2.msra.mxu0 0.0
  %828 = vmatprep.subr.mxu0 0.0
  %829 = vmatpush2.msra.mxu0 0.0
  %830 = vmatprep.subr.mxu0 0.0
  %831 = vmatpush2.msra.mxu0 0.0
  %832 = vmatprep.subr.mxu0 0.0
  %833 = vmatpush2.msra.mxu0 0.0
  %834 = vmatprep.subr.mxu0 0.0
  %835 = vmatpush2.msra.mxu0 0.0
  %836 = vmatprep.subr.mxu0 0.0
  %837 = vmatpush2.msra.mxu0 0.0
  %838 = vmatprep.subr.mxu0 0.0
  %839 = vmatpush2.msra.mxu0 0.0
  %840 = vmatprep.subr.mxu0 0.0
  %841 = vmatpush2.msra.mxu0 0.0
  %842 = vmatprep.subr.mxu0 0.0
  %843 = vmatpush2.msra.mxu0 0.0
  %844 = vmatprep.subr.mxu0 0.0
  %845 = vmatpush2.msra.mxu0 0.0
  %846 = vmatprep.subr.mxu0 0.0
  %847 = vmatpush2.msra.mxu0 0.0
  %848 = vmatprep.subr.mxu0 0.0
  %849 = vmatpush2.msra.mxu0 0.0
  %850 = vmatprep.subr.mxu0 0.0
  %851 = vmatpush2.msra.mxu0 0.0
  %852 = vmatprep.mubr.f32.mxu0 0.0
  %853 = vmatmul.mubr.f32.gmra.mxu0 %v786
  %v854 = vpop.f32.mrf.mxu0
  %v855 = vadd.f32 0.0, %v854
  %v856 = vpop.f32.mrf.mxu0
  %v857 = vadd.f32 0.0, %v856
  %858 = vdwg.mxu0
  %v859 = vadd.f32 %v784, %v855
  %v860 = vadd.f32 %v785, %v857
  %v861 = vxor.u32 %v859, 2147483648
  %v862 = vxor.u32 %v860, 2147483648
  %v863 = vmul.f32 %v861, 1.442695
  %v864 = vpow.pop %v863
  %v865 = vmul.f32 %v862, 1.442695
  %v866 = vpow.pop %v865
  %v867 = vadd.f32 %v864, 1.0
  %v868 = vadd.f32 %v866, 1.0
  %v869 = vrcp.pop %v867
  %v870 = vmul.f32 1.0, %v869
  %v871 = vrcp.pop %v868
  %v872 = vmul.f32 1.0, %v871
  %v873 = vtanh.pop %v860
  %v874 = vmul.f32 %v870, %v771
  %876 = vrot.lane.b32.xlu0 %v873, 64
  %v877 = vpop.permute.xlu0 %876
  %v879 = vmul.f32 %v870, %v877
  %881 = vrot.lane.b32.xlu0 %v879, 64
  %v882 = vpop.permute.xlu0 %881
  %v884 = vadd.f32 %v874, %v882
  %v885 = vtanh.pop %v884
  %887 = vrot.lane.b32.xlu0 %v885, 64
  %v888 = vpop.permute.xlu0 %887
  %v890 = vmul.f32 %v872, %v888
  %891 = vst.msk [vmem:[#allocation3 + $0x20] sm:$0xff] %vm331, %v890
  %893 = vrot.lane.b32.xlu0 %v890, 64
  %v894 = vpop.permute.xlu0 %893
  %896 = vst.msk [vmem:[#allocation3 + $0x58] sm:$0xff] %vm443, %v894
  %v897 = vld [vmem:[#allocation2 + $0x50] sm:$0xff]
  %v898 = vld [vmem:[#allocation2 + $0x58] sm:$0xff]
  %v899 = vsel %vm331, %v890, 0
  %901 = vmatprep.subr.mxu0 0.0
  %902 = vmatpush1.msra.mxu0 0.0
  %903 = vmatprep.subr.mxu0 0.0
  %904 = vmatpush1.msra.mxu0 0.0
  %905 = vmatprep.subr.mxu0 0.0
  %906 = vmatpush1.msra.mxu0 0.0
  %907 = vmatprep.subr.mxu0 0.0
  %908 = vmatpush1.msra.mxu0 0.0
  %909 = vmatprep.subr.mxu0 0.0
  %910 = vmatpush1.msra.mxu0 0.0
  %911 = vmatprep.subr.mxu0 0.0
  %912 = vmatpush1.msra.mxu0 0.0
  %913 = vmatprep.subr.mxu0 0.0
  %914 = vmatpush1.msra.mxu0 0.0
  %915 = vmatprep.subr.mxu0 0.0
  %916 = vmatpush1.msra.mxu0 0.0
  %917 = vmatprep.subr.mxu0 %v74
  %918 = vmatpush1.msra.mxu0 %v73
  %919 = vmatprep.subr.mxu0 %v72
  %920 = vmatpush1.msra.mxu0 %v71
  %921 = vmatprep.subr.mxu0 %v70
  %922 = vmatpush1.msra.mxu0 %v69
  %923 = vmatprep.subr.mxu0 %v68
  %924 = vmatpush1.msra.mxu0 %v67
  %925 = vmatprep.subr.mxu0 %v66
  %926 = vmatpush1.msra.mxu0 %v65
  %927 = vmatprep.subr.mxu0 %v64
  %928 = vmatpush1.msra.mxu0 %v63
  %929 = vmatprep.subr.mxu0 %v62
  %930 = vmatpush1.msra.mxu0 %v61
  %931 = vmatprep.subr.mxu0 %v60
  %932 = vmatpush1.msra.mxu0 %v59
  %933 = vmatprep.subr.mxu0 0.0
  %934 = vmatpush2.msra.mxu0 0.0
  %935 = vmatprep.subr.mxu0 0.0
  %936 = vmatpush2.msra.mxu0 0.0
  %937 = vmatprep.subr.mxu0 0.0
  %938 = vmatpush2.msra.mxu0 0.0
  %939 = vmatprep.subr.mxu0 0.0
  %940 = vmatpush2.msra.mxu0 0.0
  %941 = vmatprep.subr.mxu0 0.0
  %942 = vmatpush2.msra.mxu0 0.0
  %943 = vmatprep.subr.mxu0 0.0
  %944 = vmatpush2.msra.mxu0 0.0
  %945 = vmatprep.subr.mxu0 0.0
  %946 = vmatpush2.msra.mxu0 0.0
  %947 = vmatprep.subr.mxu0 0.0
  %948 = vmatpush2.msra.mxu0 0.0
  %949 = vmatprep.subr.mxu0 0.0
  %950 = vmatpush2.msra.mxu0 0.0
  %951 = vmatprep.subr.mxu0 0.0
  %952 = vmatpush2.msra.mxu0 0.0
  %953 = vmatprep.subr.mxu0 0.0
  %954 = vmatpush2.msra.mxu0 0.0
  %955 = vmatprep.subr.mxu0 0.0
  %956 = vmatpush2.msra.mxu0 0.0
  %957 = vmatprep.subr.mxu0 0.0
  %958 = vmatpush2.msra.mxu0 0.0
  %959 = vmatprep.subr.mxu0 0.0
  %960 = vmatpush2.msra.mxu0 0.0
  %961 = vmatprep.subr.mxu0 0.0
  %962 = vmatpush2.msra.mxu0 0.0
  %963 = vmatprep.subr.mxu0 0.0
  %964 = vmatpush2.msra.mxu0 0.0
  %965 = vmatprep.mubr.f32.mxu0 0.0
  %966 = vmatmul.mubr.f32.gmra.mxu0 %v899
  %v967 = vpop.f32.mrf.mxu0
  %v968 = vadd.f32 0.0, %v967
  %v969 = vpop.f32.mrf.mxu0
  %v970 = vadd.f32 0.0, %v969
  %971 = vdwg.mxu0
  %v972 = vadd.f32 %v897, %v968
  %v973 = vadd.f32 %v898, %v970
  %v974 = vxor.u32 %v972, 2147483648
  %v975 = vxor.u32 %v973, 2147483648
  %v976 = vmul.f32 %v974, 1.442695
  %v977 = vpow.pop %v976
  %v978 = vmul.f32 %v975, 1.442695
  %v979 = vpow.pop %v978
  %v980 = vadd.f32 %v977, 1.0
  %v981 = vadd.f32 %v979, 1.0
  %v982 = vrcp.pop %v980
  %v983 = vmul.f32 1.0, %v982
  %v984 = vrcp.pop %v981
  %v985 = vmul.f32 1.0, %v984
  %v986 = vtanh.pop %v973
  %v987 = vmul.f32 %v983, %v884
  %989 = vrot.lane.b32.xlu0 %v986, 64
  %v990 = vpop.permute.xlu0 %989
  %v992 = vmul.f32 %v983, %v990
  %994 = vrot.lane.b32.xlu0 %v992, 64
  %v995 = vpop.permute.xlu0 %994
  %v997 = vadd.f32 %v987, %v995
  %v998 = vtanh.pop %v997
  %1000 = vrot.lane.b32.xlu0 %v998, 64
  %v1001 = vpop.permute.xlu0 %1000
  %v1003 = vmul.f32 %v985, %v1001
  %1004 = vst.msk [vmem:[#allocation3 + $0x28] sm:$0xff] %vm331, %v1003
  %1006 = vrot.lane.b32.xlu0 %v1003, 64
  %v1007 = vpop.permute.xlu0 %1006
  %1009 = vst.msk [vmem:[#allocation3 + $0x50] sm:$0xff] %vm443, %v1007
  %v1010 = vld [vmem:[#allocation2 + $0x60] sm:$0xff]
  %v1011 = vld [vmem:[#allocation2 + $0x68] sm:$0xff]
  %v1012 = vsel %vm331, %v1003, 0
  %1014 = vmatprep.subr.mxu0 0.0
  %1015 = vmatpush1.msra.mxu0 0.0
  %1016 = vmatprep.subr.mxu0 0.0
  %1017 = vmatpush1.msra.mxu0 0.0
  %1018 = vmatprep.subr.mxu0 0.0
  %1019 = vmatpush1.msra.mxu0 0.0
  %1020 = vmatprep.subr.mxu0 0.0
  %1021 = vmatpush1.msra.mxu0 0.0
  %1022 = vmatprep.subr.mxu0 0.0
  %1023 = vmatpush1.msra.mxu0 0.0
  %1024 = vmatprep.subr.mxu0 0.0
  %1025 = vmatpush1.msra.mxu0 0.0
  %1026 = vmatprep.subr.mxu0 0.0
  %1027 = vmatpush1.msra.mxu0 0.0
  %1028 = vmatprep.subr.mxu0 0.0
  %1029 = vmatpush1.msra.mxu0 0.0
  %1030 = vmatprep.subr.mxu0 %v74
  %1031 = vmatpush1.msra.mxu0 %v73
  %1032 = vmatprep.subr.mxu0 %v72
  %1033 = vmatpush1.msra.mxu0 %v71
  %1034 = vmatprep.subr.mxu0 %v70
  %1035 = vmatpush1.msra.mxu0 %v69
  %1036 = vmatprep.subr.mxu0 %v68
  %1037 = vmatpush1.msra.mxu0 %v67
  %1038 = vmatprep.subr.mxu0 %v66
  %1039 = vmatpush1.msra.mxu0 %v65
  %1040 = vmatprep.subr.mxu0 %v64
  %1041 = vmatpush1.msra.mxu0 %v63
  %1042 = vmatprep.subr.mxu0 %v62
  %1043 = vmatpush1.msra.mxu0 %v61
  %1044 = vmatprep.subr.mxu0 %v60
  %1045 = vmatpush1.msra.mxu0 %v59
  %1046 = vmatprep.subr.mxu0 0.0
  %1047 = vmatpush2.msra.mxu0 0.0
  %1048 = vmatprep.subr.mxu0 0.0
  %1049 = vmatpush2.msra.mxu0 0.0
  %1050 = vmatprep.subr.mxu0 0.0
  %1051 = vmatpush2.msra.mxu0 0.0
  %1052 = vmatprep.subr.mxu0 0.0
  %1053 = vmatpush2.msra.mxu0 0.0
  %1054 = vmatprep.subr.mxu0 0.0
  %1055 = vmatpush2.msra.mxu0 0.0
  %1056 = vmatprep.subr.mxu0 0.0
  %1057 = vmatpush2.msra.mxu0 0.0
  %1058 = vmatprep.subr.mxu0 0.0
  %1059 = vmatpush2.msra.mxu0 0.0
  %1060 = vmatprep.subr.mxu0 0.0
  %1061 = vmatpush2.msra.mxu0 0.0
  %1062 = vmatprep.subr.mxu0 0.0
  %1063 = vmatpush2.msra.mxu0 0.0
  %1064 = vmatprep.subr.mxu0 0.0
  %1065 = vmatpush2.msra.mxu0 0.0
  %1066 = vmatprep.subr.mxu0 0.0
  %1067 = vmatpush2.msra.mxu0 0.0
  %1068 = vmatprep.subr.mxu0 0.0
  %1069 = vmatpush2.msra.mxu0 0.0
  %1070 = vmatprep.subr.mxu0 0.0
  %1071 = vmatpush2.msra.mxu0 0.0
  %1072 = vmatprep.subr.mxu0 0.0
  %1073 = vmatpush2.msra.mxu0 0.0
  %1074 = vmatprep.subr.mxu0 0.0
  %1075 = vmatpush2.msra.mxu0 0.0
  %1076 = vmatprep.subr.mxu0 0.0
  %1077 = vmatpush2.msra.mxu0 0.0
  %1078 = vmatprep.mubr.f32.mxu0 0.0
  %1079 = vmatmul.mubr.f32.gmra.mxu0 %v1012
  %v1080 = vpop.f32.mrf.mxu0
  %v1081 = vadd.f32 0.0, %v1080
  %v1082 = vpop.f32.mrf.mxu0
  %v1083 = vadd.f32 0.0, %v1082
  %1084 = vdwg.mxu0
  %v1085 = vadd.f32 %v1010, %v1081
  %v1086 = vadd.f32 %v1011, %v1083
  %v1087 = vxor.u32 %v1085, 2147483648
  %v1088 = vxor.u32 %v1086, 2147483648
  %v1089 = vmul.f32 %v1087, 1.442695
  %v1090 = vpow.pop %v1089
  %v1091 = vmul.f32 %v1088, 1.442695
  %v1092 = vpow.pop %v1091
  %v1093 = vadd.f32 %v1090, 1.0
  %v1094 = vadd.f32 %v1092, 1.0
  %v1095 = vrcp.pop %v1093
  %v1096 = vmul.f32 1.0, %v1095
  %v1097 = vrcp.pop %v1094
  %v1098 = vmul.f32 1.0, %v1097
  %v1099 = vtanh.pop %v1086
  %v1100 = vmul.f32 %v1096, %v997
  %1102 = vrot.lane.b32.xlu0 %v1099, 64
  %v1103 = vpop.permute.xlu0 %1102
  %v1105 = vmul.f32 %v1096, %v1103
  %1107 = vrot.lane.b32.xlu0 %v1105, 64
  %v1108 = vpop.permute.xlu0 %1107
  %v1110 = vadd.f32 %v1100, %v1108
  %v1111 = vtanh.pop %v1110
  %1113 = vrot.lane.b32.xlu0 %v1111, 64
  %v1114 = vpop.permute.xlu0 %1113
  %v1116 = vmul.f32 %v1098, %v1114
  %1117 = vst.msk [vmem:[#allocation3 + $0x30] sm:$0xff] %vm331, %v1116
  %1119 = vrot.lane.b32.xlu0 %v1116, 64
  %v1120 = vpop.permute.xlu0 %1119
  %1122 = vst.msk [vmem:[#allocation3 + $0x48] sm:$0xff] %vm443, %v1120
  %v1123 = vld [vmem:[#allocation2 + $0x70] sm:$0xff]
  %v1124 = vld [vmem:[#allocation2 + $0x78] sm:$0xff]
  %v1125 = vsel %vm331, %v1116, 0
  %1127 = vmatprep.subr.mxu0 0.0
  %1128 = vmatpush1.msra.mxu0 0.0
  %1129 = vmatprep.subr.mxu0 0.0
  %1130 = vmatpush1.msra.mxu0 0.0
  %1131 = vmatprep.subr.mxu0 0.0
  %1132 = vmatpush1.msra.mxu0 0.0
  %1133 = vmatprep.subr.mxu0 0.0
  %1134 = vmatpush1.msra.mxu0 0.0
  %1135 = vmatprep.subr.mxu0 0.0
  %1136 = vmatpush1.msra.mxu0 0.0
  %1137 = vmatprep.subr.mxu0 0.0
  %1138 = vmatpush1.msra.mxu0 0.0
  %1139 = vmatprep.subr.mxu0 0.0
  %1140 = vmatpush1.msra.mxu0 0.0
  %1141 = vmatprep.subr.mxu0 0.0
  %1142 = vmatpush1.msra.mxu0 0.0
  %1143 = vmatprep.subr.mxu0 %v74
  %1144 = vmatpush1.msra.mxu0 %v73
  %1145 = vmatprep.subr.mxu0 %v72
  %1146 = vmatpush1.msra.mxu0 %v71
  %1147 = vmatprep.subr.mxu0 %v70
  %1148 = vmatpush1.msra.mxu0 %v69
  %1149 = vmatprep.subr.mxu0 %v68
  %1150 = vmatpush1.msra.mxu0 %v67
  %1151 = vmatprep.subr.mxu0 %v66
  %1152 = vmatpush1.msra.mxu0 %v65
  %1153 = vmatprep.subr.mxu0 %v64
  %1154 = vmatpush1.msra.mxu0 %v63
  %1155 = vmatprep.subr.mxu0 %v62
  %1156 = vmatpush1.msra.mxu0 %v61
  %1157 = vmatprep.subr.mxu0 %v60
  %1158 = vmatpush1.msra.mxu0 %v59
  %1159 = vmatprep.subr.mxu0 0.0
  %1160 = vmatpush2.msra.mxu0 0.0
  %1161 = vmatprep.subr.mxu0 0.0
  %1162 = vmatpush2.msra.mxu0 0.0
  %1163 = vmatprep.subr.mxu0 0.0
  %1164 = vmatpush2.msra.mxu0 0.0
  %1165 = vmatprep.subr.mxu0 0.0
  %1166 = vmatpush2.msra.mxu0 0.0
  %1167 = vmatprep.subr.mxu0 0.0
  %1168 = vmatpush2.msra.mxu0 0.0
  %1169 = vmatprep.subr.mxu0 0.0
  %1170 = vmatpush2.msra.mxu0 0.0
  %1171 = vmatprep.subr.mxu0 0.0
  %1172 = vmatpush2.msra.mxu0 0.0
  %1173 = vmatprep.subr.mxu0 0.0
  %1174 = vmatpush2.msra.mxu0 0.0
  %1175 = vmatprep.subr.mxu0 0.0
  %1176 = vmatpush2.msra.mxu0 0.0
  %1177 = vmatprep.subr.mxu0 0.0
  %1178 = vmatpush2.msra.mxu0 0.0
  %1179 = vmatprep.subr.mxu0 0.0
  %1180 = vmatpush2.msra.mxu0 0.0
  %1181 = vmatprep.subr.mxu0 0.0
  %1182 = vmatpush2.msra.mxu0 0.0
  %1183 = vmatprep.subr.mxu0 0.0
  %1184 = vmatpush2.msra.mxu0 0.0
  %1185 = vmatprep.subr.mxu0 0.0
  %1186 = vmatpush2.msra.mxu0 0.0
  %1187 = vmatprep.subr.mxu0 0.0
  %1188 = vmatpush2.msra.mxu0 0.0
  %1189 = vmatprep.subr.mxu0 0.0
  %1190 = vmatpush2.msra.mxu0 0.0
  %1191 = vmatprep.mubr.f32.mxu0 0.0
  %1192 = vmatmul.mubr.f32.gmra.mxu0 %v1125
  %v1193 = vpop.f32.mrf.mxu0
  %v1194 = vadd.f32 0.0, %v1193
  %v1195 = vpop.f32.mrf.mxu0
  %v1196 = vadd.f32 0.0, %v1195
  %1197 = vdwg.mxu0
  %v1198 = vadd.f32 %v1123, %v1194
  %v1199 = vadd.f32 %v1124, %v1196
  %v1200 = vxor.u32 %v1198, 2147483648
  %v1201 = vxor.u32 %v1199, 2147483648
  %v1202 = vmul.f32 %v1200, 1.442695
  %v1203 = vpow.pop %v1202
  %v1204 = vmul.f32 %v1201, 1.442695
  %v1205 = vpow.pop %v1204
  %v1206 = vadd.f32 %v1203, 1.0
  %v1207 = vadd.f32 %v1205, 1.0
  %v1208 = vrcp.pop %v1206
  %v1209 = vmul.f32 1.0, %v1208
  %v1210 = vrcp.pop %v1207
  %v1211 = vmul.f32 1.0, %v1210
  %v1212 = vtanh.pop %v1199
  %v1213 = vmul.f32 %v1209, %v1110
  %1215 = vrot.lane.b32.xlu0 %v1212, 64
  %v1216 = vpop.permute.xlu0 %1215
  %v1218 = vmul.f32 %v1209, %v1216
  %1220 = vrot.lane.b32.xlu0 %v1218, 64
  %v1221 = vpop.permute.xlu0 %1220
  %v1223 = vadd.f32 %v1213, %v1221
  %v1224 = vtanh.pop %v1223
  %1226 = vrot.lane.b32.xlu0 %v1224, 64
  %v1227 = vpop.permute.xlu0 %1226
  %v1229 = vmul.f32 %v1211, %v1227
  %1230 = vst.msk [vmem:[#allocation3 + $0x38] sm:$0xff] %vm331, %v1229
  %1232 = vrot.lane.b32.xlu0 %v1229, 64
  %v1233 = vpop.permute.xlu0 %1232
  %1235 = vst.msk [vmem:[#allocation3 + $0x40] sm:$0xff] %vm443, %v1233
  %v1236 = vld [vmem:[#allocation2 + $0x80] sm:$0xff]
  %v1237 = vld [vmem:[#allocation2 + $0x88] sm:$0xff]
  %v1238 = vsel %vm331, %v1229, 0
  %1240 = vmatprep.subr.mxu0 0.0
  %1241 = vmatpush1.msra.mxu0 0.0
  %1242 = vmatprep.subr.mxu0 0.0
  %1243 = vmatpush1.msra.mxu0 0.0
  %1244 = vmatprep.subr.mxu0 0.0
  %1245 = vmatpush1.msra.mxu0 0.0
  %1246 = vmatprep.subr.mxu0 0.0
  %1247 = vmatpush1.msra.mxu0 0.0
  %1248 = vmatprep.subr.mxu0 0.0
  %1249 = vmatpush1.msra.mxu0 0.0
  %1250 = vmatprep.subr.mxu0 0.0
  %1251 = vmatpush1.msra.mxu0 0.0
  %1252 = vmatprep.subr.mxu0 0.0
  %1253 = vmatpush1.msra.mxu0 0.0
  %1254 = vmatprep.subr.mxu0 0.0
  %1255 = vmatpush1.msra.mxu0 0.0
  %1256 = vmatprep.subr.mxu0 %v74
  %1257 = vmatpush1.msra.mxu0 %v73
  %1258 = vmatprep.subr.mxu0 %v72
  %1259 = vmatpush1.msra.mxu0 %v71
  %1260 = vmatprep.subr.mxu0 %v70
  %1261 = vmatpush1.msra.mxu0 %v69
  %1262 = vmatprep.subr.mxu0 %v68
  %1263 = vmatpush1.msra.mxu0 %v67
  %1264 = vmatprep.subr.mxu0 %v66
  %1265 = vmatpush1.msra.mxu0 %v65
  %1266 = vmatprep.subr.mxu0 %v64
  %1267 = vmatpush1.msra.mxu0 %v63
  %1268 = vmatprep.subr.mxu0 %v62
  %1269 = vmatpush1.msra.mxu0 %v61
  %1270 = vmatprep.subr.mxu0 %v60
  %1271 = vmatpush1.msra.mxu0 %v59
  %1272 = vmatprep.subr.mxu0 0.0
  %1273 = vmatpush2.msra.mxu0 0.0
  %1274 = vmatprep.subr.mxu0 0.0
  %1275 = vmatpush2.msra.mxu0 0.0
  %1276 = vmatprep.subr.mxu0 0.0
  %1277 = vmatpush2.msra.mxu0 0.0
  %1278 = vmatprep.subr.mxu0 0.0
  %1279 = vmatpush2.msra.mxu0 0.0
  %1280 = vmatprep.subr.mxu0 0.0
  %1281 = vmatpush2.msra.mxu0 0.0
  %1282 = vmatprep.subr.mxu0 0.0
  %1283 = vmatpush2.msra.mxu0 0.0
  %1284 = vmatprep.subr.mxu0 0.0
  %1285 = vmatpush2.msra.mxu0 0.0
  %1286 = vmatprep.subr.mxu0 0.0
  %1287 = vmatpush2.msra.mxu0 0.0
  %1288 = vmatprep.subr.mxu0 0.0
  %1289 = vmatpush2.msra.mxu0 0.0
  %1290 = vmatprep.subr.mxu0 0.0
  %1291 = vmatpush2.msra.mxu0 0.0
  %1292 = vmatprep.subr.mxu0 0.0
  %1293 = vmatpush2.msra.mxu0 0.0
  %1294 = vmatprep.subr.mxu0 0.0
  %1295 = vmatpush2.msra.mxu0 0.0
  %1296 = vmatprep.subr.mxu0 0.0
  %1297 = vmatpush2.msra.mxu0 0.0
  %1298 = vmatprep.subr.mxu0 0.0
  %1299 = vmatpush2.msra.mxu0 0.0
  %1300 = vmatprep.subr.mxu0 0.0
  %1301 = vmatpush2.msra.mxu0 0.0
  %1302 = vmatprep.subr.mxu0 0.0
  %1303 = vmatpush2.msra.mxu0 0.0
  %1304 = vmatprep.mubr.f32.mxu0 0.0
  %1305 = vmatmul.mubr.f32.gmra.mxu0 %v1238
  %v1306 = vpop.f32.mrf.mxu0
  %v1307 = vadd.f32 0.0, %v1306
  %v1308 = vpop.f32.mrf.mxu0
  %v1309 = vadd.f32 0.0, %v1308
  %1310 = vdwg.mxu0
  %v1311 = vadd.f32 %v1236, %v1307
  %v1312 = vadd.f32 %v1237, %v1309
  %v1313 = vxor.u32 %v1311, 2147483648
  %v1314 = vxor.u32 %v1312, 2147483648
  %v1315 = vmul.f32 %v1313, 1.442695
  %v1316 = vpow.pop %v1315
  %v1317 = vmul.f32 %v1314, 1.442695
  %v1318 = vpow.pop %v1317
  %v1319 = vadd.f32 %v1316, 1.0
  %v1320 = vadd.f32 %v1318, 1.0
  %v1321 = vrcp.pop %v1319
  %v1322 = vmul.f32 1.0, %v1321
  %v1323 = vrcp.pop %v1320
  %v1324 = vmul.f32 1.0, %v1323
  %v1325 = vtanh.pop %v1312
  %v1326 = vmul.f32 %v1322, %v1223
  %1328 = vrot.lane.b32.xlu0 %v1325, 64
  %v1329 = vpop.permute.xlu0 %1328
  %v1331 = vmul.f32 %v1322, %v1329
  %1333 = vrot.lane.b32.xlu0 %v1331, 64
  %v1334 = vpop.permute.xlu0 %1333
  %v1336 = vadd.f32 %v1326, %v1334
  %v1337 = vtanh.pop %v1336
  %1339 = vrot.lane.b32.xlu0 %v1337, 64
  %v1340 = vpop.permute.xlu0 %1339
  %v1342 = vmul.f32 %v1324, %v1340
  %1343 = vst.msk [vmem:[#allocation3 + $0x40] sm:$0xff] %vm331, %v1342
  %1345 = vrot.lane.b32.xlu0 %v1342, 64
  %v1346 = vpop.permute.xlu0 %1345
  %1348 = vst.msk [vmem:[#allocation3 + $0x38] sm:$0xff] %vm443, %v1346
  %v1349 = vld [vmem:[#allocation2 + $0x90] sm:$0xff]
  %v1350 = vld [vmem:[#allocation2 + $0x98] sm:$0xff]
  %v1351 = vsel %vm331, %v1342, 0
  %1353 = vmatprep.subr.mxu0 0.0
  %1354 = vmatpush1.msra.mxu0 0.0
  %1355 = vmatprep.subr.mxu0 0.0
  %1356 = vmatpush1.msra.mxu0 0.0
  %1357 = vmatprep.subr.mxu0 0.0
  %1358 = vmatpush1.msra.mxu0 0.0
  %1359 = vmatprep.subr.mxu0 0.0
  %1360 = vmatpush1.msra.mxu0 0.0
  %1361 = vmatprep.subr.mxu0 0.0
  %1362 = vmatpush1.msra.mxu0 0.0
  %1363 = vmatprep.subr.mxu0 0.0
  %1364 = vmatpush1.msra.mxu0 0.0
  %1365 = vmatprep.subr.mxu0 0.0
  %1366 = vmatpush1.msra.mxu0 0.0
  %1367 = vmatprep.subr.mxu0 0.0
  %1368 = vmatpush1.msra.mxu0 0.0
  %1369 = vmatprep.subr.mxu0 %v74
  %1370 = vmatpush1.msra.mxu0 %v73
  %1371 = vmatprep.subr.mxu0 %v72
  %1372 = vmatpush1.msra.mxu0 %v71
  %1373 = vmatprep.subr.mxu0 %v70
  %1374 = vmatpush1.msra.mxu0 %v69
  %1375 = vmatprep.subr.mxu0 %v68
  %1376 = vmatpush1.msra.mxu0 %v67
  %1377 = vmatprep.subr.mxu0 %v66
  %1378 = vmatpush1.msra.mxu0 %v65
  %1379 = vmatprep.subr.mxu0 %v64
  %1380 = vmatpush1.msra.mxu0 %v63
  %1381 = vmatprep.subr.mxu0 %v62
  %1382 = vmatpush1.msra.mxu0 %v61
  %1383 = vmatprep.subr.mxu0 %v60
  %1384 = vmatpush1.msra.mxu0 %v59
  %1385 = vmatprep.subr.mxu0 0.0
  %1386 = vmatpush2.msra.mxu0 0.0
  %1387 = vmatprep.subr.mxu0 0.0
  %1388 = vmatpush2.msra.mxu0 0.0
  %1389 = vmatprep.subr.mxu0 0.0
  %1390 = vmatpush2.msra.mxu0 0.0
  %1391 = vmatprep.subr.mxu0 0.0
  %1392 = vmatpush2.msra.mxu0 0.0
  %1393 = vmatprep.subr.mxu0 0.0
  %1394 = vmatpush2.msra.mxu0 0.0
  %1395 = vmatprep.subr.mxu0 0.0
  %1396 = vmatpush2.msra.mxu0 0.0
  %1397 = vmatprep.subr.mxu0 0.0
  %1398 = vmatpush2.msra.mxu0 0.0
  %1399 = vmatprep.subr.mxu0 0.0
  %1400 = vmatpush2.msra.mxu0 0.0
  %1401 = vmatprep.subr.mxu0 0.0
  %1402 = vmatpush2.msra.mxu0 0.0
  %1403 = vmatprep.subr.mxu0 0.0
  %1404 = vmatpush2.msra.mxu0 0.0
  %1405 = vmatprep.subr.mxu0 0.0
  %1406 = vmatpush2.msra.mxu0 0.0
  %1407 = vmatprep.subr.mxu0 0.0
  %1408 = vmatpush2.msra.mxu0 0.0
  %1409 = vmatprep.subr.mxu0 0.0
  %1410 = vmatpush2.msra.mxu0 0.0
  %1411 = vmatprep.subr.mxu0 0.0
  %1412 = vmatpush2.msra.mxu0 0.0
  %1413 = vmatprep.subr.mxu0 0.0
  %1414 = vmatpush2.msra.mxu0 0.0
  %1415 = vmatprep.subr.mxu0 0.0
  %1416 = vmatpush2.msra.mxu0 0.0
  %1417 = vmatprep.mubr.f32.mxu0 0.0
  %1418 = vmatmul.mubr.f32.gmra.mxu0 %v1351
  %v1419 = vpop.f32.mrf.mxu0
  %v1420 = vadd.f32 0.0, %v1419
  %v1421 = vpop.f32.mrf.mxu0
  %v1422 = vadd.f32 0.0, %v1421
  %1423 = vdwg.mxu0
  %v1424 = vadd.f32 %v1349, %v1420
  %v1425 = vadd.f32 %v1350, %v1422
  %v1426 = vxor.u32 %v1424, 2147483648
  %v1427 = vxor.u32 %v1425, 2147483648
  %v1428 = vmul.f32 %v1426, 1.442695
  %v1429 = vpow.pop %v1428
  %v1430 = vmul.f32 %v1427, 1.442695
  %v1431 = vpow.pop %v1430
  %v1432 = vadd.f32 %v1429, 1.0
  %v1433 = vadd.f32 %v1431, 1.0
  %v1434 = vrcp.pop %v1432
  %v1435 = vmul.f32 1.0, %v1434
  %v1436 = vrcp.pop %v1433
  %v1437 = vmul.f32 1.0, %v1436
  %v1438 = vtanh.pop %v1425
  %v1439 = vmul.f32 %v1435, %v1336
  %1441 = vrot.lane.b32.xlu0 %v1438, 64
  %v1442 = vpop.permute.xlu0 %1441
  %v1444 = vmul.f32 %v1435, %v1442
  %1446 = vrot.lane.b32.xlu0 %v1444, 64
  %v1447 = vpop.permute.xlu0 %1446
  %v1449 = vadd.f32 %v1439, %v1447
  %v1450 = vtanh.pop %v1449
  %1452 = vrot.lane.b32.xlu0 %v1450, 64
  %v1453 = vpop.permute.xlu0 %1452
  %v1455 = vmul.f32 %v1437, %v1453
  %1456 = vst.msk [vmem:[#allocation3 + $0x48] sm:$0xff] %vm331, %v1455
  %1458 = vrot.lane.b32.xlu0 %v1455, 64
  %v1459 = vpop.permute.xlu0 %1458
  %1461 = vst.msk [vmem:[#allocation3 + $0x30] sm:$0xff] %vm443, %v1459
  %v1462 = vld [vmem:[#allocation2 + $0xa0] sm:$0xff]
  %v1463 = vld [vmem:[#allocation2 + $0xa8] sm:$0xff]
  %v1464 = vsel %vm331, %v1455, 0
  %1466 = vmatprep.subr.mxu0 0.0
  %1467 = vmatpush1.msra.mxu0 0.0
  %1468 = vmatprep.subr.mxu0 0.0
  %1469 = vmatpush1.msra.mxu0 0.0
  %1470 = vmatprep.subr.mxu0 0.0
  %1471 = vmatpush1.msra.mxu0 0.0
  %1472 = vmatprep.subr.mxu0 0.0
  %1473 = vmatpush1.msra.mxu0 0.0
  %1474 = vmatprep.subr.mxu0 0.0
  %1475 = vmatpush1.msra.mxu0 0.0
  %1476 = vmatprep.subr.mxu0 0.0
  %1477 = vmatpush1.msra.mxu0 0.0
  %1478 = vmatprep.subr.mxu0 0.0
  %1479 = vmatpush1.msra.mxu0 0.0
  %1480 = vmatprep.subr.mxu0 0.0
  %1481 = vmatpush1.msra.mxu0 0.0
  %1482 = vmatprep.subr.mxu0 %v74
  %1483 = vmatpush1.msra.mxu0 %v73
  %1484 = vmatprep.subr.mxu0 %v72
  %1485 = vmatpush1.msra.mxu0 %v71
  %1486 = vmatprep.subr.mxu0 %v70
  %1487 = vmatpush1.msra.mxu0 %v69
  %1488 = vmatprep.subr.mxu0 %v68
  %1489 = vmatpush1.msra.mxu0 %v67
  %1490 = vmatprep.subr.mxu0 %v66
  %1491 = vmatpush1.msra.mxu0 %v65
  %1492 = vmatprep.subr.mxu0 %v64
  %1493 = vmatpush1.msra.mxu0 %v63
  %1494 = vmatprep.subr.mxu0 %v62
  %1495 = vmatpush1.msra.mxu0 %v61
  %1496 = vmatprep.subr.mxu0 %v60
  %1497 = vmatpush1.msra.mxu0 %v59
  %1498 = vmatprep.subr.mxu0 0.0
  %1499 = vmatpush2.msra.mxu0 0.0
  %1500 = vmatprep.subr.mxu0 0.0
  %1501 = vmatpush2.msra.mxu0 0.0
  %1502 = vmatprep.subr.mxu0 0.0
  %1503 = vmatpush2.msra.mxu0 0.0
  %1504 = vmatprep.subr.mxu0 0.0
  %1505 = vmatpush2.msra.mxu0 0.0
  %1506 = vmatprep.subr.mxu0 0.0
  %1507 = vmatpush2.msra.mxu0 0.0
  %1508 = vmatprep.subr.mxu0 0.0
  %1509 = vmatpush2.msra.mxu0 0.0
  %1510 = vmatprep.subr.mxu0 0.0
  %1511 = vmatpush2.msra.mxu0 0.0
  %1512 = vmatprep.subr.mxu0 0.0
  %1513 = vmatpush2.msra.mxu0 0.0
  %1514 = vmatprep.subr.mxu0 0.0
  %1515 = vmatpush2.msra.mxu0 0.0
  %1516 = vmatprep.subr.mxu0 0.0
  %1517 = vmatpush2.msra.mxu0 0.0
  %1518 = vmatprep.subr.mxu0 0.0
  %1519 = vmatpush2.msra.mxu0 0.0
  %1520 = vmatprep.subr.mxu0 0.0
  %1521 = vmatpush2.msra.mxu0 0.0
  %1522 = vmatprep.subr.mxu0 0.0
  %1523 = vmatpush2.msra.mxu0 0.0
  %1524 = vmatprep.subr.mxu0 0.0
  %1525 = vmatpush2.msra.mxu0 0.0
  %1526 = vmatprep.subr.mxu0 0.0
  %1527 = vmatpush2.msra.mxu0 0.0
  %1528 = vmatprep.subr.mxu0 0.0
  %1529 = vmatpush2.msra.mxu0 0.0
  %1530 = vmatprep.mubr.f32.mxu0 0.0
  %1531 = vmatmul.mubr.f32.gmra.mxu0 %v1464
  %v1532 = vpop.f32.mrf.mxu0
  %v1533 = vadd.f32 0.0, %v1532
  %v1534 = vpop.f32.mrf.mxu0
  %v1535 = vadd.f32 0.0, %v1534
  %1536 = vdwg.mxu0
  %v1537 = vadd.f32 %v1462, %v1533
  %v1538 = vadd.f32 %v1463, %v1535
  %v1539 = vxor.u32 %v1537, 2147483648
  %v1540 = vxor.u32 %v1538, 2147483648
  %v1541 = vmul.f32 %v1539, 1.442695
  %v1542 = vpow.pop %v1541
  %v1543 = vmul.f32 %v1540, 1.442695
  %v1544 = vpow.pop %v1543
  %v1545 = vadd.f32 %v1542, 1.0
  %v1546 = vadd.f32 %v1544, 1.0
  %v1547 = vrcp.pop %v1545
  %v1548 = vmul.f32 1.0, %v1547
  %v1549 = vrcp.pop %v1546
  %v1550 = vmul.f32 1.0, %v1549
  %v1551 = vtanh.pop %v1538
  %v1552 = vmul.f32 %v1548, %v1449
  %1554 = vrot.lane.b32.xlu0 %v1551, 64
  %v1555 = vpop.permute.xlu0 %1554
  %v1557 = vmul.f32 %v1548, %v1555
  %1559 = vrot.lane.b32.xlu0 %v1557, 64
  %v1560 = vpop.permute.xlu0 %1559
  %v1562 = vadd.f32 %v1552, %v1560
  %v1563 = vtanh.pop %v1562
  %1565 = vrot.lane.b32.xlu0 %v1563, 64
  %v1566 = vpop.permute.xlu0 %1565
  %v1568 = vmul.f32 %v1550, %v1566
  %1569 = vst.msk [vmem:[#allocation3 + $0x50] sm:$0xff] %vm331, %v1568
  %1571 = vrot.lane.b32.xlu0 %v1568, 64
  %v1572 = vpop.permute.xlu0 %1571
  %1574 = vst.msk [vmem:[#allocation3 + $0x28] sm:$0xff] %vm443, %v1572
  %v1575 = vld [vmem:[#allocation2 + $0xb0] sm:$0xff]
  %v1576 = vld [vmem:[#allocation2 + $0xb8] sm:$0xff]
  %v1577 = vsel %vm331, %v1568, 0
  %1579 = vmatprep.subr.mxu0 0.0
  %1580 = vmatpush1.msra.mxu0 0.0
  %1581 = vmatprep.subr.mxu0 0.0
  %1582 = vmatpush1.msra.mxu0 0.0
  %1583 = vmatprep.subr.mxu0 0.0
  %1584 = vmatpush1.msra.mxu0 0.0
  %1585 = vmatprep.subr.mxu0 0.0
  %1586 = vmatpush1.msra.mxu0 0.0
  %1587 = vmatprep.subr.mxu0 0.0
  %1588 = vmatpush1.msra.mxu0 0.0
  %1589 = vmatprep.subr.mxu0 0.0
  %1590 = vmatpush1.msra.mxu0 0.0
  %1591 = vmatprep.subr.mxu0 0.0
  %1592 = vmatpush1.msra.mxu0 0.0
  %1593 = vmatprep.subr.mxu0 0.0
  %1594 = vmatpush1.msra.mxu0 0.0
  %1595 = vmatprep.subr.mxu0 %v74
  %1596 = vmatpush1.msra.mxu0 %v73
  %1597 = vmatprep.subr.mxu0 %v72
  %1598 = vmatpush1.msra.mxu0 %v71
  %1599 = vmatprep.subr.mxu0 %v70
  %1600 = vmatpush1.msra.mxu0 %v69
  %1601 = vmatprep.subr.mxu0 %v68
  %1602 = vmatpush1.msra.mxu0 %v67
  %1603 = vmatprep.subr.mxu0 %v66
  %1604 = vmatpush1.msra.mxu0 %v65
  %1605 = vmatprep.subr.mxu0 %v64
  %1606 = vmatpush1.msra.mxu0 %v63
  %1607 = vmatprep.subr.mxu0 %v62
  %1608 = vmatpush1.msra.mxu0 %v61
  %1609 = vmatprep.subr.mxu0 %v60
  %1610 = vmatpush1.msra.mxu0 %v59
  %1611 = vmatprep.subr.mxu0 0.0
  %1612 = vmatpush2.msra.mxu0 0.0
  %1613 = vmatprep.subr.mxu0 0.0
  %1614 = vmatpush2.msra.mxu0 0.0
  %1615 = vmatprep.subr.mxu0 0.0
  %1616 = vmatpush2.msra.mxu0 0.0
  %1617 = vmatprep.subr.mxu0 0.0
  %1618 = vmatpush2.msra.mxu0 0.0
  %1619 = vmatprep.subr.mxu0 0.0
  %1620 = vmatpush2.msra.mxu0 0.0
  %1621 = vmatprep.subr.mxu0 0.0
  %1622 = vmatpush2.msra.mxu0 0.0
  %1623 = vmatprep.subr.mxu0 0.0
  %1624 = vmatpush2.msra.mxu0 0.0
  %1625 = vmatprep.subr.mxu0 0.0
  %1626 = vmatpush2.msra.mxu0 0.0
  %1627 = vmatprep.subr.mxu0 0.0
  %1628 = vmatpush2.msra.mxu0 0.0
  %1629 = vmatprep.subr.mxu0 0.0
  %1630 = vmatpush2.msra.mxu0 0.0
  %1631 = vmatprep.subr.mxu0 0.0
  %1632 = vmatpush2.msra.mxu0 0.0
  %1633 = vmatprep.subr.mxu0 0.0
  %1634 = vmatpush2.msra.mxu0 0.0
  %1635 = vmatprep.subr.mxu0 0.0
  %1636 = vmatpush2.msra.mxu0 0.0
  %1637 = vmatprep.subr.mxu0 0.0
  %1638 = vmatpush2.msra.mxu0 0.0
  %1639 = vmatprep.subr.mxu0 0.0
  %1640 = vmatpush2.msra.mxu0 0.0
  %1641 = vmatprep.subr.mxu0 0.0
  %1642 = vmatpush2.msra.mxu0 0.0
  %1643 = vmatprep.mubr.f32.mxu0 0.0
  %1644 = vmatmul.mubr.f32.gmra.mxu0 %v1577
  %v1645 = vpop.f32.mrf.mxu0
  %v1646 = vadd.f32 0.0, %v1645
  %v1647 = vpop.f32.mrf.mxu0
  %v1648 = vadd.f32 0.0, %v1647
  %1649 = vdwg.mxu0
  %v1650 = vadd.f32 %v1575, %v1646
  %v1651 = vadd.f32 %v1576, %v1648
  %v1652 = vxor.u32 %v1650, 2147483648
  %v1653 = vxor.u32 %v1651, 2147483648
  %v1654 = vmul.f32 %v1652, 1.442695
  %v1655 = vpow.pop %v1654
  %v1656 = vmul.f32 %v1653, 1.442695
  %v1657 = vpow.pop %v1656
  %v1658 = vadd.f32 %v1655, 1.0
  %v1659 = vadd.f32 %v1657, 1.0
  %v1660 = vrcp.pop %v1658
  %v1661 = vmul.f32 1.0, %v1660
  %v1662 = vrcp.pop %v1659
  %v1663 = vmul.f32 1.0, %v1662
  %v1664 = vtanh.pop %v1651
  %v1665 = vmul.f32 %v1661, %v1562
  %1667 = vrot.lane.b32.xlu0 %v1664, 64
  %v1668 = vpop.permute.xlu0 %1667
  %v1670 = vmul.f32 %v1661, %v1668
  %1672 = vrot.lane.b32.xlu0 %v1670, 64
  %v1673 = vpop.permute.xlu0 %1672
  %v1675 = vadd.f32 %v1665, %v1673
  %v1676 = vtanh.pop %v1675
  %1678 = vrot.lane.b32.xlu0 %v1676, 64
  %v1679 = vpop.permute.xlu0 %1678
  %v1681 = vmul.f32 %v1663, %v1679
  %1682 = vst.msk [vmem:[#allocation3 + $0x58] sm:$0xff] %vm331, %v1681
  %1684 = vrot.lane.b32.xlu0 %v1681, 64
  %v1685 = vpop.permute.xlu0 %1684
  %1687 = vst.msk [vmem:[#allocation3 + $0x20] sm:$0xff] %vm443, %v1685
  %v1688 = vld [vmem:[#allocation2 + $0xc0] sm:$0xff]
  %v1689 = vld [vmem:[#allocation2 + $0xc8] sm:$0xff]
  %v1690 = vsel %vm331, %v1681, 0
  %1692 = vmatprep.subr.mxu0 0.0
  %1693 = vmatpush1.msra.mxu0 0.0
  %1694 = vmatprep.subr.mxu0 0.0
  %1695 = vmatpush1.msra.mxu0 0.0
  %1696 = vmatprep.subr.mxu0 0.0
  %1697 = vmatpush1.msra.mxu0 0.0
  %1698 = vmatprep.subr.mxu0 0.0
  %1699 = vmatpush1.msra.mxu0 0.0
  %1700 = vmatprep.subr.mxu0 0.0
  %1701 = vmatpush1.msra.mxu0 0.0
  %1702 = vmatprep.subr.mxu0 0.0
  %1703 = vmatpush1.msra.mxu0 0.0
  %1704 = vmatprep.subr.mxu0 0.0
  %1705 = vmatpush1.msra.mxu0 0.0
  %1706 = vmatprep.subr.mxu0 0.0
  %1707 = vmatpush1.msra.mxu0 0.0
  %1708 = vmatprep.subr.mxu0 %v74
  %1709 = vmatpush1.msra.mxu0 %v73
  %1710 = vmatprep.subr.mxu0 %v72
  %1711 = vmatpush1.msra.mxu0 %v71
  %1712 = vmatprep.subr.mxu0 %v70
  %1713 = vmatpush1.msra.mxu0 %v69
  %1714 = vmatprep.subr.mxu0 %v68
  %1715 = vmatpush1.msra.mxu0 %v67
  %1716 = vmatprep.subr.mxu0 %v66
  %1717 = vmatpush1.msra.mxu0 %v65
  %1718 = vmatprep.subr.mxu0 %v64
  %1719 = vmatpush1.msra.mxu0 %v63
  %1720 = vmatprep.subr.mxu0 %v62
  %1721 = vmatpush1.msra.mxu0 %v61
  %1722 = vmatprep.subr.mxu0 %v60
  %1723 = vmatpush1.msra.mxu0 %v59
  %1724 = vmatprep.subr.mxu0 0.0
  %1725 = vmatpush2.msra.mxu0 0.0
  %1726 = vmatprep.subr.mxu0 0.0
  %1727 = vmatpush2.msra.mxu0 0.0
  %1728 = vmatprep.subr.mxu0 0.0
  %1729 = vmatpush2.msra.mxu0 0.0
  %1730 = vmatprep.subr.mxu0 0.0
  %1731 = vmatpush2.msra.mxu0 0.0
  %1732 = vmatprep.subr.mxu0 0.0
  %1733 = vmatpush2.msra.mxu0 0.0
  %1734 = vmatprep.subr.mxu0 0.0
  %1735 = vmatpush2.msra.mxu0 0.0
  %1736 = vmatprep.subr.mxu0 0.0
  %1737 = vmatpush2.msra.mxu0 0.0
  %1738 = vmatprep.subr.mxu0 0.0
  %1739 = vmatpush2.msra.mxu0 0.0
  %1740 = vmatprep.subr.mxu0 0.0
  %1741 = vmatpush2.msra.mxu0 0.0
  %1742 = vmatprep.subr.mxu0 0.0
  %1743 = vmatpush2.msra.mxu0 0.0
  %1744 = vmatprep.subr.mxu0 0.0
  %1745 = vmatpush2.msra.mxu0 0.0
  %1746 = vmatprep.subr.mxu0 0.0
  %1747 = vmatpush2.msra.mxu0 0.0
  %1748 = vmatprep.subr.mxu0 0.0
  %1749 = vmatpush2.msra.mxu0 0.0
  %1750 = vmatprep.subr.mxu0 0.0
  %1751 = vmatpush2.msra.mxu0 0.0
  %1752 = vmatprep.subr.mxu0 0.0
  %1753 = vmatpush2.msra.mxu0 0.0
  %1754 = vmatprep.subr.mxu0 0.0
  %1755 = vmatpush2.msra.mxu0 0.0
  %1756 = vmatprep.mubr.f32.mxu0 0.0
  %1757 = vmatmul.mubr.f32.gmra.mxu0 %v1690
  %v1758 = vpop.f32.mrf.mxu0
  %v1759 = vadd.f32 0.0, %v1758
  %v1760 = vpop.f32.mrf.mxu0
  %v1761 = vadd.f32 0.0, %v1760
  %1762 = vdwg.mxu0
  %v1763 = vadd.f32 %v1688, %v1759
  %v1764 = vadd.f32 %v1689, %v1761
  %v1765 = vxor.u32 %v1763, 2147483648
  %v1766 = vxor.u32 %v1764, 2147483648
  %v1767 = vmul.f32 %v1765, 1.442695
  %v1768 = vpow.pop %v1767
  %v1769 = vmul.f32 %v1766, 1.442695
  %v1770 = vpow.pop %v1769
  %v1771 = vadd.f32 %v1768, 1.0
  %v1772 = vadd.f32 %v1770, 1.0
  %v1773 = vrcp.pop %v1771
  %v1774 = vmul.f32 1.0, %v1773
  %v1775 = vrcp.pop %v1772
  %v1776 = vmul.f32 1.0, %v1775
  %v1777 = vtanh.pop %v1764
  %v1778 = vmul.f32 %v1774, %v1675
  %1780 = vrot.lane.b32.xlu0 %v1777, 64
  %v1781 = vpop.permute.xlu0 %1780
  %v1783 = vmul.f32 %v1774, %v1781
  %1785 = vrot.lane.b32.xlu0 %v1783, 64
  %v1786 = vpop.permute.xlu0 %1785
  %v1788 = vadd.f32 %v1778, %v1786
  %v1789 = vtanh.pop %v1788
  %1791 = vrot.lane.b32.xlu0 %v1789, 64
  %v1792 = vpop.permute.xlu0 %1791
  %v1794 = vmul.f32 %v1776, %v1792
  %1795 = vst.msk [vmem:[#allocation3 + $0x60] sm:$0xff] %vm331, %v1794
  %1797 = vrot.lane.b32.xlu0 %v1794, 64
  %v1798 = vpop.permute.xlu0 %1797
  %1800 = vst.msk [vmem:[#allocation3 + $0x18] sm:$0xff] %vm443, %v1798
  %v1801 = vld [vmem:[#allocation2 + $0xd0] sm:$0xff]
  %v1802 = vld [vmem:[#allocation2 + $0xd8] sm:$0xff]
  %v1803 = vsel %vm331, %v1794, 0
  %1805 = vmatprep.subr.mxu0 0.0
  %1806 = vmatpush1.msra.mxu0 0.0
  %1807 = vmatprep.subr.mxu0 0.0
  %1808 = vmatpush1.msra.mxu0 0.0
  %1809 = vmatprep.subr.mxu0 0.0
  %1810 = vmatpush1.msra.mxu0 0.0
  %1811 = vmatprep.subr.mxu0 0.0
  %1812 = vmatpush1.msra.mxu0 0.0
  %1813 = vmatprep.subr.mxu0 0.0
  %1814 = vmatpush1.msra.mxu0 0.0
  %1815 = vmatprep.subr.mxu0 0.0
  %1816 = vmatpush1.msra.mxu0 0.0
  %1817 = vmatprep.subr.mxu0 0.0
  %1818 = vmatpush1.msra.mxu0 0.0
  %1819 = vmatprep.subr.mxu0 0.0
  %1820 = vmatpush1.msra.mxu0 0.0
  %1821 = vmatprep.subr.mxu0 %v74
  %1822 = vmatpush1.msra.mxu0 %v73
  %1823 = vmatprep.subr.mxu0 %v72
  %1824 = vmatpush1.msra.mxu0 %v71
  %1825 = vmatprep.subr.mxu0 %v70
  %1826 = vmatpush1.msra.mxu0 %v69
  %1827 = vmatprep.subr.mxu0 %v68
  %1828 = vmatpush1.msra.mxu0 %v67
  %1829 = vmatprep.subr.mxu0 %v66
  %1830 = vmatpush1.msra.mxu0 %v65
  %1831 = vmatprep.subr.mxu0 %v64
  %1832 = vmatpush1.msra.mxu0 %v63
  %1833 = vmatprep.subr.mxu0 %v62
  %1834 = vmatpush1.msra.mxu0 %v61
  %1835 = vmatprep.subr.mxu0 %v60
  %1836 = vmatpush1.msra.mxu0 %v59
  %1837 = vmatprep.subr.mxu0 0.0
  %1838 = vmatpush2.msra.mxu0 0.0
  %1839 = vmatprep.subr.mxu0 0.0
  %1840 = vmatpush2.msra.mxu0 0.0
  %1841 = vmatprep.subr.mxu0 0.0
  %1842 = vmatpush2.msra.mxu0 0.0
  %1843 = vmatprep.subr.mxu0 0.0
  %1844 = vmatpush2.msra.mxu0 0.0
  %1845 = vmatprep.subr.mxu0 0.0
  %1846 = vmatpush2.msra.mxu0 0.0
  %1847 = vmatprep.subr.mxu0 0.0
  %1848 = vmatpush2.msra.mxu0 0.0
  %1849 = vmatprep.subr.mxu0 0.0
  %1850 = vmatpush2.msra.mxu0 0.0
  %1851 = vmatprep.subr.mxu0 0.0
  %1852 = vmatpush2.msra.mxu0 0.0
  %1853 = vmatprep.subr.mxu0 0.0
  %1854 = vmatpush2.msra.mxu0 0.0
  %1855 = vmatprep.subr.mxu0 0.0
  %1856 = vmatpush2.msra.mxu0 0.0
  %1857 = vmatprep.subr.mxu0 0.0
  %1858 = vmatpush2.msra.mxu0 0.0
  %1859 = vmatprep.subr.mxu0 0.0
  %1860 = vmatpush2.msra.mxu0 0.0
  %1861 = vmatprep.subr.mxu0 0.0
  %1862 = vmatpush2.msra.mxu0 0.0
  %1863 = vmatprep.subr.mxu0 0.0
  %1864 = vmatpush2.msra.mxu0 0.0
  %1865 = vmatprep.subr.mxu0 0.0
  %1866 = vmatpush2.msra.mxu0 0.0
  %1867 = vmatprep.subr.mxu0 0.0
  %1868 = vmatpush2.msra.mxu0 0.0
  %1869 = vmatprep.mubr.f32.mxu0 0.0
  %1870 = vmatmul.mubr.f32.gmra.mxu0 %v1803
  %v1871 = vpop.f32.mrf.mxu0
  %v1872 = vadd.f32 0.0, %v1871
  %v1873 = vpop.f32.mrf.mxu0
  %v1874 = vadd.f32 0.0, %v1873
  %1875 = vdwg.mxu0
  %v1876 = vadd.f32 %v1801, %v1872
  %v1877 = vadd.f32 %v1802, %v1874
  %v1878 = vxor.u32 %v1876, 2147483648
  %v1879 = vxor.u32 %v1877, 2147483648
  %v1880 = vmul.f32 %v1878, 1.442695
  %v1881 = vpow.pop %v1880
  %v1882 = vmul.f32 %v1879, 1.442695
  %v1883 = vpow.pop %v1882
  %v1884 = vadd.f32 %v1881, 1.0
  %v1885 = vadd.f32 %v1883, 1.0
  %v1886 = vrcp.pop %v1884
  %v1887 = vmul.f32 1.0, %v1886
  %v1888 = vrcp.pop %v1885
  %v1889 = vmul.f32 1.0, %v1888
  %v1890 = vtanh.pop %v1877
  %v1891 = vmul.f32 %v1887, %v1788
  %1893 = vrot.lane.b32.xlu0 %v1890, 64
  %v1894 = vpop.permute.xlu0 %1893
  %v1896 = vmul.f32 %v1887, %v1894
  %1898 = vrot.lane.b32.xlu0 %v1896, 64
  %v1899 = vpop.permute.xlu0 %1898
  %v1901 = vadd.f32 %v1891, %v1899
  %v1902 = vtanh.pop %v1901
  %1904 = vrot.lane.b32.xlu0 %v1902, 64
  %v1905 = vpop.permute.xlu0 %1904
  %v1907 = vmul.f32 %v1889, %v1905
  %1908 = vst.msk [vmem:[#allocation3 + $0x68] sm:$0xff] %vm331, %v1907
  %1910 = vrot.lane.b32.xlu0 %v1907, 64
  %v1911 = vpop.permute.xlu0 %1910
  %1913 = vst.msk [vmem:[#allocation3 + $0x10] sm:$0xff] %vm443, %v1911
  %v1914 = vld [vmem:[#allocation2 + $0xe0] sm:$0xff]
  %v1915 = vld [vmem:[#allocation2 + $0xe8] sm:$0xff]
  %v1916 = vsel %vm331, %v1907, 0
  %1918 = vmatprep.subr.mxu0 0.0
  %1919 = vmatpush1.msra.mxu0 0.0
  %1920 = vmatprep.subr.mxu0 0.0
  %1921 = vmatpush1.msra.mxu0 0.0
  %1922 = vmatprep.subr.mxu0 0.0
  %1923 = vmatpush1.msra.mxu0 0.0
  %1924 = vmatprep.subr.mxu0 0.0
  %1925 = vmatpush1.msra.mxu0 0.0
  %1926 = vmatprep.subr.mxu0 0.0
  %1927 = vmatpush1.msra.mxu0 0.0
  %1928 = vmatprep.subr.mxu0 0.0
  %1929 = vmatpush1.msra.mxu0 0.0
  %1930 = vmatprep.subr.mxu0 0.0
  %1931 = vmatpush1.msra.mxu0 0.0
  %1932 = vmatprep.subr.mxu0 0.0
  %1933 = vmatpush1.msra.mxu0 0.0
  %1934 = vmatprep.subr.mxu0 %v74
  %1935 = vmatpush1.msra.mxu0 %v73
  %1936 = vmatprep.subr.mxu0 %v72
  %1937 = vmatpush1.msra.mxu0 %v71
  %1938 = vmatprep.subr.mxu0 %v70
  %1939 = vmatpush1.msra.mxu0 %v69
  %1940 = vmatprep.subr.mxu0 %v68
  %1941 = vmatpush1.msra.mxu0 %v67
  %1942 = vmatprep.subr.mxu0 %v66
  %1943 = vmatpush1.msra.mxu0 %v65
  %1944 = vmatprep.subr.mxu0 %v64
  %1945 = vmatpush1.msra.mxu0 %v63
  %1946 = vmatprep.subr.mxu0 %v62
  %1947 = vmatpush1.msra.mxu0 %v61
  %1948 = vmatprep.subr.mxu0 %v60
  %1949 = vmatpush1.msra.mxu0 %v59
  %1950 = vmatprep.subr.mxu0 0.0
  %1951 = vmatpush2.msra.mxu0 0.0
  %1952 = vmatprep.subr.mxu0 0.0
  %1953 = vmatpush2.msra.mxu0 0.0
  %1954 = vmatprep.subr.mxu0 0.0
  %1955 = vmatpush2.msra.mxu0 0.0
  %1956 = vmatprep.subr.mxu0 0.0
  %1957 = vmatpush2.msra.mxu0 0.0
  %1958 = vmatprep.subr.mxu0 0.0
  %1959 = vmatpush2.msra.mxu0 0.0
  %1960 = vmatprep.subr.mxu0 0.0
  %1961 = vmatpush2.msra.mxu0 0.0
  %1962 = vmatprep.subr.mxu0 0.0
  %1963 = vmatpush2.msra.mxu0 0.0
  %1964 = vmatprep.subr.mxu0 0.0
  %1965 = vmatpush2.msra.mxu0 0.0
  %1966 = vmatprep.subr.mxu0 0.0
  %1967 = vmatpush2.msra.mxu0 0.0
  %1968 = vmatprep.subr.mxu0 0.0
  %1969 = vmatpush2.msra.mxu0 0.0
  %1970 = vmatprep.subr.mxu0 0.0
  %1971 = vmatpush2.msra.mxu0 0.0
  %1972 = vmatprep.subr.mxu0 0.0
  %1973 = vmatpush2.msra.mxu0 0.0
  %1974 = vmatprep.subr.mxu0 0.0
  %1975 = vmatpush2.msra.mxu0 0.0
  %1976 = vmatprep.subr.mxu0 0.0
  %1977 = vmatpush2.msra.mxu0 0.0
  %1978 = vmatprep.subr.mxu0 0.0
  %1979 = vmatpush2.msra.mxu0 0.0
  %1980 = vmatprep.subr.mxu0 0.0
  %1981 = vmatpush2.msra.mxu0 0.0
  %1982 = vmatprep.mubr.f32.mxu0 0.0
  %1983 = vmatmul.mubr.f32.gmra.mxu0 %v1916
  %v1984 = vpop.f32.mrf.mxu0
  %v1985 = vadd.f32 0.0, %v1984
  %v1986 = vpop.f32.mrf.mxu0
  %v1987 = vadd.f32 0.0, %v1986
  %1988 = vdwg.mxu0
  %v1989 = vadd.f32 %v1914, %v1985
  %v1990 = vadd.f32 %v1915, %v1987
  %v1991 = vxor.u32 %v1989, 2147483648
  %v1992 = vxor.u32 %v1990, 2147483648
  %v1993 = vmul.f32 %v1991, 1.442695
  %v1994 = vpow.pop %v1993
  %v1995 = vmul.f32 %v1992, 1.442695
  %v1996 = vpow.pop %v1995
  %v1997 = vadd.f32 %v1994, 1.0
  %v1998 = vadd.f32 %v1996, 1.0
  %v1999 = vrcp.pop %v1997
  %v2000 = vmul.f32 1.0, %v1999
  %v2001 = vrcp.pop %v1998
  %v2002 = vmul.f32 1.0, %v2001
  %v2003 = vtanh.pop %v1990
  %v2004 = vmul.f32 %v2000, %v1901
  %2006 = vrot.lane.b32.xlu0 %v2003, 64
  %v2007 = vpop.permute.xlu0 %2006
  %v2009 = vmul.f32 %v2000, %v2007
  %2011 = vrot.lane.b32.xlu0 %v2009, 64
  %v2012 = vpop.permute.xlu0 %2011
  %v2014 = vadd.f32 %v2004, %v2012
  %v2015 = vtanh.pop %v2014
  %2017 = vrot.lane.b32.xlu0 %v2015, 64
  %v2018 = vpop.permute.xlu0 %2017
  %v2020 = vmul.f32 %v2002, %v2018
  %2021 = vst.msk [vmem:[#allocation3 + $0x70] sm:$0xff] %vm331, %v2020
  %2023 = vrot.lane.b32.xlu0 %v2020, 64
  %v2024 = vpop.permute.xlu0 %2023
  %2026 = vst.msk [vmem:[#allocation3 + $0x8] sm:$0xff] %vm443, %v2024
  %v2027 = vld [vmem:[#allocation2 + $0xf0] sm:$0xff]
  %v2028 = vld [vmem:[#allocation2 + $0xf8] sm:$0xff]
  %v2029 = vsel %vm331, %v2020, 0
  %2031 = vmatprep.subr.mxu0 0.0
  %2032 = vmatpush1.msra.mxu0 0.0
  %2033 = vmatprep.subr.mxu0 0.0
  %2034 = vmatpush1.msra.mxu0 0.0
  %2035 = vmatprep.subr.mxu0 0.0
  %2036 = vmatpush1.msra.mxu0 0.0
  %2037 = vmatprep.subr.mxu0 0.0
  %2038 = vmatpush1.msra.mxu0 0.0
  %2039 = vmatprep.subr.mxu0 0.0
  %2040 = vmatpush1.msra.mxu0 0.0
  %2041 = vmatprep.subr.mxu0 0.0
  %2042 = vmatpush1.msra.mxu0 0.0
  %2043 = vmatprep.subr.mxu0 0.0
  %2044 = vmatpush1.msra.mxu0 0.0
  %2045 = vmatprep.subr.mxu0 0.0
  %2046 = vmatpush1.msra.mxu0 0.0
  %2047 = vmatprep.subr.mxu0 %v74
  %2048 = vmatpush1.msra.mxu0 %v73
  %2049 = vmatprep.subr.mxu0 %v72
  %2050 = vmatpush1.msra.mxu0 %v71
  %2051 = vmatprep.subr.mxu0 %v70
  %2052 = vmatpush1.msra.mxu0 %v69
  %2053 = vmatprep.subr.mxu0 %v68
  %2054 = vmatpush1.msra.mxu0 %v67
  %2055 = vmatprep.subr.mxu0 %v66
  %2056 = vmatpush1.msra.mxu0 %v65
  %2057 = vmatprep.subr.mxu0 %v64
  %2058 = vmatpush1.msra.mxu0 %v63
  %2059 = vmatprep.subr.mxu0 %v62
  %2060 = vmatpush1.msra.mxu0 %v61
  %2061 = vmatprep.subr.mxu0 %v60
  %2062 = vmatpush1.msra.mxu0 %v59
  %2063 = vmatprep.subr.mxu0 0.0
  %2064 = vmatpush2.msra.mxu0 0.0
  %2065 = vmatprep.subr.mxu0 0.0
  %2066 = vmatpush2.msra.mxu0 0.0
  %2067 = vmatprep.subr.mxu0 0.0
  %2068 = vmatpush2.msra.mxu0 0.0
  %2069 = vmatprep.subr.mxu0 0.0
  %2070 = vmatpush2.msra.mxu0 0.0
  %2071 = vmatprep.subr.mxu0 0.0
  %2072 = vmatpush2.msra.mxu0 0.0
  %2073 = vmatprep.subr.mxu0 0.0
  %2074 = vmatpush2.msra.mxu0 0.0
  %2075 = vmatprep.subr.mxu0 0.0
  %2076 = vmatpush2.msra.mxu0 0.0
  %2077 = vmatprep.subr.mxu0 0.0
  %2078 = vmatpush2.msra.mxu0 0.0
  %2079 = vmatprep.subr.mxu0 0.0
  %2080 = vmatpush2.msra.mxu0 0.0
  %2081 = vmatprep.subr.mxu0 0.0
  %2082 = vmatpush2.msra.mxu0 0.0
  %2083 = vmatprep.subr.mxu0 0.0
  %2084 = vmatpush2.msra.mxu0 0.0
  %2085 = vmatprep.subr.mxu0 0.0
  %2086 = vmatpush2.msra.mxu0 0.0
  %2087 = vmatprep.subr.mxu0 0.0
  %2088 = vmatpush2.msra.mxu0 0.0
  %2089 = vmatprep.subr.mxu0 0.0
  %2090 = vmatpush2.msra.mxu0 0.0
  %2091 = vmatprep.subr.mxu0 0.0
  %2092 = vmatpush2.msra.mxu0 0.0
  %2093 = vmatprep.subr.mxu0 0.0
  %2094 = vmatpush2.msra.mxu0 0.0
  %2095 = vmatprep.mubr.f32.mxu0 0.0
  %2096 = vmatmul.mubr.f32.gmra.mxu0 %v2029
  %v2097 = vpop.f32.mrf.mxu0
  %v2098 = vadd.f32 0.0, %v2097
  %v2099 = vpop.f32.mrf.mxu0
  %v2100 = vadd.f32 0.0, %v2099
  %2101 = vdwg.mxu0
  %v2102 = vadd.f32 %v2027, %v2098
  %v2103 = vadd.f32 %v2028, %v2100
  %v2104 = vxor.u32 %v2102, 2147483648
  %v2105 = vxor.u32 %v2103, 2147483648
  %v2106 = vmul.f32 %v2104, 1.442695
  %v2107 = vpow.pop %v2106
  %v2108 = vmul.f32 %v2105, 1.442695
  %v2109 = vpow.pop %v2108
  %v2110 = vadd.f32 %v2107, 1.0
  %v2111 = vadd.f32 %v2109, 1.0
  %v2112 = vrcp.pop %v2110
  %v2113 = vmul.f32 1.0, %v2112
  %v2114 = vrcp.pop %v2111
  %v2115 = vmul.f32 1.0, %v2114
  %v2116 = vtanh.pop %v2103
  %v2117 = vmul.f32 %v2113, %v2014
  %2119 = vrot.lane.b32.xlu0 %v2116, 64
  %v2120 = vpop.permute.xlu0 %2119
  %v2122 = vmul.f32 %v2113, %v2120
  %2124 = vrot.lane.b32.xlu0 %v2122, 64
  %v2125 = vpop.permute.xlu0 %2124
  %v2127 = vadd.f32 %v2117, %v2125
  %v2128 = vtanh.pop %v2127
  %2130 = vrot.lane.b32.xlu0 %v2128, 64
  %v2131 = vpop.permute.xlu0 %2130
  %v2133 = vmul.f32 %v2115, %v2131
  %2134 = vst.msk [vmem:[#allocation3 + $0x78] sm:$0xff] %vm331, %v2133
  %2136 = vrot.lane.b32.xlu0 %v2133, 64
  %v2137 = vpop.permute.xlu0 %2136
  %2139 = vst.msk [vmem:[#allocation3] sm:$0xff] %vm443, %v2137
  %2140 = vst.msk [vmem:[%s10] sm:$0xff] %vm87, %v2133
  %2141 = vrot.lane.b32.xlu0 %v2133, 96
  %v2142 = vpop.permute.xlu0 %2141
  %s2144 = scalar_lea.vmem %s10, 8
  %2145 = vst.msk [vmem:[%s2144] sm:$0xff] %vm87, %v2142
  %2147 = vrot.lane.b32.xlu0 %v2127, 64
  %v2148 = vpop.permute.xlu0 %2147
  %2150 = vst.msk [vmem:[%s11] sm:$0xff] %vm87, %v2148
  %2151 = vrot.lane.b32.xlu0 %v2127, 32
  %v2152 = vpop.permute.xlu0 %2151
  %s2154 = scalar_lea.vmem %s11, 8
  %2155 = vst.msk [vmem:[%s2154] sm:$0xff] %vm87, %v2152
  %v2156 = vld [vmem:[#allocation3] sm:$0xff]
  %v2157 = vld [vmem:[#allocation3 + $0x8] sm:$0xff]
  %v2158 = vld [vmem:[#allocation3 + $0x10] sm:$0xff]
  %v2159 = vld [vmem:[#allocation3 + $0x18] sm:$0xff]
  %v2160 = vld [vmem:[#allocation3 + $0x20] sm:$0xff]
  %v2161 = vld [vmem:[#allocation3 + $0x28] sm:$0xff]
  %v2162 = vld [vmem:[#allocation3 + $0x30] sm:$0xff]
  %v2163 = vld [vmem:[#allocation3 + $0x38] sm:$0xff]
  %v2164 = vld [vmem:[#allocation3 + $0x40] sm:$0xff]
  %v2165 = vld [vmem:[#allocation3 + $0x48] sm:$0xff]
  %v2166 = vld [vmem:[#allocation3 + $0x50] sm:$0xff]
  %v2167 = vld [vmem:[#allocation3 + $0x58] sm:$0xff]
  %v2168 = vld [vmem:[#allocation3 + $0x60] sm:$0xff]
  %v2169 = vld [vmem:[#allocation3 + $0x68] sm:$0xff]
  %v2170 = vld [vmem:[#allocation3 + $0x70] sm:$0xff]
  %v2171 = vld [vmem:[#allocation3 + $0x78] sm:$0xff]
  %v2172 = vld [vmem:[%s4] sm:$0xff]
  %v2173 = vld [vmem:[%s4 + $0x8] sm:$0xff]
  %v2174 = vld [vmem:[%s4 + $0x10] sm:$0xff]
  %v2175 = vld [vmem:[%s4 + $0x18] sm:$0xff]
  %v2176 = vld [vmem:[%s4 + $0x20] sm:$0xff]
  %v2177 = vld [vmem:[%s4 + $0x28] sm:$0xff]
  %v2178 = vld [vmem:[%s4 + $0x30] sm:$0xff]
  %v2179 = vld [vmem:[%s4 + $0x38] sm:$0xff]
  %v2180 = vld [vmem:[%s4 + $0x40] sm:$0xff]
  %v2181 = vld [vmem:[%s4 + $0x48] sm:$0xff]
  %v2182 = vld [vmem:[%s4 + $0x50] sm:$0xff]
  %v2183 = vld [vmem:[%s4 + $0x58] sm:$0xff]
  %v2184 = vld [vmem:[%s4 + $0x60] sm:$0xff]
  %v2185 = vld [vmem:[%s4 + $0x68] sm:$0xff]
  %v2186 = vld [vmem:[%s4 + $0x70] sm:$0xff]
  %v2187 = vld [vmem:[%s4 + $0x78] sm:$0xff]
  %v2188 = vld [vmem:[%s4 + $0x80] sm:$0xff]
  %v2189 = vld [vmem:[%s4 + $0x88] sm:$0xff]
  %v2190 = vld [vmem:[%s4 + $0x90] sm:$0xff]
  %v2191 = vld [vmem:[%s4 + $0x98] sm:$0xff]
  %v2192 = vld [vmem:[%s4 + $0xa0] sm:$0xff]
  %v2193 = vld [vmem:[%s4 + $0xa8] sm:$0xff]
  %v2194 = vld [vmem:[%s4 + $0xb0] sm:$0xff]
  %v2195 = vld [vmem:[%s4 + $0xb8] sm:$0xff]
  %v2196 = vld [vmem:[%s4 + $0xc0] sm:$0xff]
  %v2197 = vld [vmem:[%s4 + $0xc8] sm:$0xff]
  %v2198 = vld [vmem:[%s4 + $0xd0] sm:$0xff]
  %v2199 = vld [vmem:[%s4 + $0xd8] sm:$0xff]
  %v2200 = vld [vmem:[%s4 + $0xe0] sm:$0xff]
  %v2201 = vld [vmem:[%s4 + $0xe8] sm:$0xff]
  %v2202 = vld [vmem:[%s4 + $0xf0] sm:$0xff]
  %v2203 = vld [vmem:[%s4 + $0xf8] sm:$0xff]
  %v2204 = vld [vmem:[%s5] sm:$0xff]
  %v2205 = vld [vmem:[%s5 + $0x8] sm:$0xff]
  %v2206 = vld [vmem:[%s5 + $0x10] sm:$0xff]
  %v2207 = vld [vmem:[%s5 + $0x18] sm:$0xff]
  %v2208 = vld [vmem:[%s5 + $0x20] sm:$0xff]
  %v2209 = vld [vmem:[%s5 + $0x28] sm:$0xff]
  %v2210 = vld [vmem:[%s5 + $0x30] sm:$0xff]
  %v2211 = vld [vmem:[%s5 + $0x38] sm:$0xff]
  %v2212 = vld [vmem:[%s5 + $0x40] sm:$0xff]
  %v2213 = vld [vmem:[%s5 + $0x48] sm:$0xff]
  %v2214 = vld [vmem:[%s5 + $0x50] sm:$0xff]
  %v2215 = vld [vmem:[%s5 + $0x58] sm:$0xff]
  %v2216 = vld [vmem:[%s5 + $0x60] sm:$0xff]
  %v2217 = vld [vmem:[%s5 + $0x68] sm:$0xff]
  %v2218 = vld [vmem:[%s5 + $0x70] sm:$0xff]
  %v2219 = vld [vmem:[%s5 + $0x78] sm:$0xff]
  %v2220 = vld [vmem:[%s6] sm:$0x3]
  %v2222 = vlaneseq
  %v2223 = vshrl.u32 %v2222, 7
  %v2224 = vsub.s32 0, %v2223
  %v2225 = vrot.slane %v2220, %v2224
  %v2226 = vlaneseq
  %v2227 = vshrl.u32 %v2226, 7
  %v2228 = vsub.s32 1, %v2227
  %v2229 = vrot.slane %v2220, %v2228
  %2232 = vmatprep.subr.mxu0 %v2203
  %2233 = vmatpush1.msra.mxu0 %v2202
  %2234 = vmatprep.subr.mxu0 %v2201
  %2235 = vmatpush1.msra.mxu0 %v2200
  %2236 = vmatprep.subr.mxu0 %v2199
  %2237 = vmatpush1.msra.mxu0 %v2198
  %2238 = vmatprep.subr.mxu0 %v2197
  %2239 = vmatpush1.msra.mxu0 %v2196
  %2240 = vmatprep.subr.mxu0 %v2195
  %2241 = vmatpush1.msra.mxu0 %v2194
  %2242 = vmatprep.subr.mxu0 %v2193
  %2243 = vmatpush1.msra.mxu0 %v2192
  %2244 = vmatprep.subr.mxu0 %v2191
  %2245 = vmatpush1.msra.mxu0 %v2190
  %2246 = vmatprep.subr.mxu0 %v2189
  %2247 = vmatpush1.msra.mxu0 %v2188
  %2248 = vmatprep.subr.mxu0 %v2187
  %2249 = vmatpush1.msra.mxu0 %v2186
  %2250 = vmatprep.subr.mxu0 %v2185
  %2251 = vmatpush1.msra.mxu0 %v2184
  %2252 = vmatprep.subr.mxu0 %v2183
  %2253 = vmatpush1.msra.mxu0 %v2182
  %2254 = vmatprep.subr.mxu0 %v2181
  %2255 = vmatpush1.msra.mxu0 %v2180
  %2256 = vmatprep.subr.mxu0 %v2179
  %2257 = vmatpush1.msra.mxu0 %v2178
  %2258 = vmatprep.subr.mxu0 %v2177
  %2259 = vmatpush1.msra.mxu0 %v2176
  %2260 = vmatprep.subr.mxu0 %v2175
  %2261 = vmatpush1.msra.mxu0 %v2174
  %2262 = vmatprep.subr.mxu0 %v2173
  %2263 = vmatpush1.msra.mxu0 %v2172
  %2264 = vmatprep.subr.mxu0 0.0
  %2265 = vmatpush2.msra.mxu0 0.0
  %2266 = vmatprep.subr.mxu0 0.0
  %2267 = vmatpush2.msra.mxu0 0.0
  %2268 = vmatprep.subr.mxu0 0.0
  %2269 = vmatpush2.msra.mxu0 0.0
  %2270 = vmatprep.subr.mxu0 0.0
  %2271 = vmatpush2.msra.mxu0 0.0
  %2272 = vmatprep.subr.mxu0 0.0
  %2273 = vmatpush2.msra.mxu0 0.0
  %2274 = vmatprep.subr.mxu0 0.0
  %2275 = vmatpush2.msra.mxu0 0.0
  %2276 = vmatprep.subr.mxu0 0.0
  %2277 = vmatpush2.msra.mxu0 0.0
  %2278 = vmatprep.subr.mxu0 0.0
  %2279 = vmatpush2.msra.mxu0 0.0
  %2280 = vmatprep.subr.mxu0 0.0
  %2281 = vmatpush2.msra.mxu0 0.0
  %2282 = vmatprep.subr.mxu0 0.0
  %2283 = vmatpush2.msra.mxu0 0.0
  %2284 = vmatprep.subr.mxu0 0.0
  %2285 = vmatpush2.msra.mxu0 0.0
  %2286 = vmatprep.subr.mxu0 0.0
  %2287 = vmatpush2.msra.mxu0 0.0
  %2288 = vmatprep.subr.mxu0 0.0
  %2289 = vmatpush2.msra.mxu0 0.0
  %2290 = vmatprep.subr.mxu0 0.0
  %2291 = vmatpush2.msra.mxu0 0.0
  %2292 = vmatprep.subr.mxu0 0.0
  %2293 = vmatpush2.msra.mxu0 0.0
  %2294 = vmatprep.subr.mxu0 0.0
  %2295 = vmatpush2.msra.mxu0 0.0
  %2296 = vmatprep.mubr.f32.mxu0 0.0
  %2297 = vmatmul.mubr.f32.gmra.mxu0 %v2156
  %v2298 = vpop.f32.mrf.mxu0
  %v2299 = vadd.f32 %v2225, %v2298
  %v2300 = vpop.f32.mrf.mxu0
  %v2301 = vadd.f32 %v2229, %v2300
  %2302 = vmatprep.mubr.f32.mxu0 0.0
  %2303 = vmatmul.mubr.f32.gmra.mxu0 %v2157
  %v2304 = vpop.f32.mrf.mxu0
  %v2305 = vadd.f32 %v2225, %v2304
  %v2306 = vpop.f32.mrf.mxu0
  %v2307 = vadd.f32 %v2229, %v2306
  %2308 = vmatprep.mubr.f32.mxu0 0.0
  %2309 = vmatmul.mubr.f32.gmra.mxu0 %v2158
  %v2310 = vpop.f32.mrf.mxu0
  %v2311 = vadd.f32 %v2225, %v2310
  %v2312 = vpop.f32.mrf.mxu0
  %v2313 = vadd.f32 %v2229, %v2312
  %2314 = vmatprep.mubr.f32.mxu0 0.0
  %2315 = vmatmul.mubr.f32.gmra.mxu0 %v2159
  %v2316 = vpop.f32.mrf.mxu0
  %v2317 = vadd.f32 %v2225, %v2316
  %v2318 = vpop.f32.mrf.mxu0
  %v2319 = vadd.f32 %v2229, %v2318
  %2320 = vmatprep.mubr.f32.mxu0 0.0
  %2321 = vmatmul.mubr.f32.gmra.mxu0 %v2160
  %v2322 = vpop.f32.mrf.mxu0
  %v2323 = vadd.f32 %v2225, %v2322
  %v2324 = vpop.f32.mrf.mxu0
  %v2325 = vadd.f32 %v2229, %v2324
  %2326 = vmatprep.mubr.f32.mxu0 0.0
  %2327 = vmatmul.mubr.f32.gmra.mxu0 %v2161
  %v2328 = vpop.f32.mrf.mxu0
  %v2329 = vadd.f32 %v2225, %v2328
  %v2330 = vpop.f32.mrf.mxu0
  %v2331 = vadd.f32 %v2229, %v2330
  %2332 = vmatprep.mubr.f32.mxu0 0.0
  %2333 = vmatmul.mubr.f32.gmra.mxu0 %v2162
  %v2334 = vpop.f32.mrf.mxu0
  %v2335 = vadd.f32 %v2225, %v2334
  %v2336 = vpop.f32.mrf.mxu0
  %v2337 = vadd.f32 %v2229, %v2336
  %2338 = vmatprep.mubr.f32.mxu0 0.0
  %2339 = vmatmul.mubr.f32.gmra.mxu0 %v2163
  %v2340 = vpop.f32.mrf.mxu0
  %v2341 = vadd.f32 %v2225, %v2340
  %v2342 = vpop.f32.mrf.mxu0
  %v2343 = vadd.f32 %v2229, %v2342
  %2344 = vmatprep.mubr.f32.mxu0 0.0
  %2345 = vmatmul.mubr.f32.gmra.mxu0 %v2164
  %v2346 = vpop.f32.mrf.mxu0
  %v2347 = vadd.f32 %v2225, %v2346
  %v2348 = vpop.f32.mrf.mxu0
  %v2349 = vadd.f32 %v2229, %v2348
  %2350 = vmatprep.mubr.f32.mxu0 0.0
  %2351 = vmatmul.mubr.f32.gmra.mxu0 %v2165
  %v2352 = vpop.f32.mrf.mxu0
  %v2353 = vadd.f32 %v2225, %v2352
  %v2354 = vpop.f32.mrf.mxu0
  %v2355 = vadd.f32 %v2229, %v2354
  %2356 = vmatprep.mubr.f32.mxu0 0.0
  %2357 = vmatmul.mubr.f32.gmra.mxu0 %v2166
  %v2358 = vpop.f32.mrf.mxu0
  %v2359 = vadd.f32 %v2225, %v2358
  %v2360 = vpop.f32.mrf.mxu0
  %v2361 = vadd.f32 %v2229, %v2360
  %2362 = vmatprep.mubr.f32.mxu0 0.0
  %2363 = vmatmul.mubr.f32.gmra.mxu0 %v2167
  %v2364 = vpop.f32.mrf.mxu0
  %v2365 = vadd.f32 %v2225, %v2364
  %v2366 = vpop.f32.mrf.mxu0
  %v2367 = vadd.f32 %v2229, %v2366
  %2368 = vmatprep.mubr.f32.mxu0 0.0
  %2369 = vmatmul.mubr.f32.gmra.mxu0 %v2168
  %v2370 = vpop.f32.mrf.mxu0
  %v2371 = vadd.f32 %v2225, %v2370
  %v2372 = vpop.f32.mrf.mxu0
  %v2373 = vadd.f32 %v2229, %v2372
  %2374 = vmatprep.mubr.f32.mxu0 0.0
  %2375 = vmatmul.mubr.f32.gmra.mxu0 %v2169
  %v2376 = vpop.f32.mrf.mxu0
  %v2377 = vadd.f32 %v2225, %v2376
  %v2378 = vpop.f32.mrf.mxu0
  %v2379 = vadd.f32 %v2229, %v2378
  %2380 = vmatprep.mubr.f32.mxu0 0.0
  %2381 = vmatmul.mubr.f32.gmra.mxu0 %v2170
  %v2382 = vpop.f32.mrf.mxu0
  %v2383 = vadd.f32 %v2225, %v2382
  %v2384 = vpop.f32.mrf.mxu0
  %v2385 = vadd.f32 %v2229, %v2384
  %2386 = vmatprep.mubr.f32.mxu0 0.0
  %2387 = vmatmul.mubr.f32.gmra.mxu0 %v2171
  %v2388 = vpop.f32.mrf.mxu0
  %v2389 = vadd.f32 %v2225, %v2388
  %v2390 = vpop.f32.mrf.mxu0
  %v2391 = vadd.f32 %v2229, %v2390
  %2392 = vdwg.mxu0
  %2393 = vst [vmem:[#allocation2] sm:$0xff] %v2299
  %2394 = vst [vmem:[#allocation2 + $0x8] sm:$0xff] %v2301
  %2395 = vst [vmem:[#allocation2 + $0x10] sm:$0xff] %v2305
  %2396 = vst [vmem:[#allocation2 + $0x18] sm:$0xff] %v2307
  %2397 = vst [vmem:[#allocation2 + $0x20] sm:$0xff] %v2311
  %2398 = vst [vmem:[#allocation2 + $0x28] sm:$0xff] %v2313
  %2399 = vst [vmem:[#allocation2 + $0x30] sm:$0xff] %v2317
  %2400 = vst [vmem:[#allocation2 + $0x38] sm:$0xff] %v2319
  %2401 = vst [vmem:[#allocation2 + $0x40] sm:$0xff] %v2323
  %2402 = vst [vmem:[#allocation2 + $0x48] sm:$0xff] %v2325
  %2403 = vst [vmem:[#allocation2 + $0x50] sm:$0xff] %v2329
  %2404 = vst [vmem:[#allocation2 + $0x58] sm:$0xff] %v2331
  %2405 = vst [vmem:[#allocation2 + $0x60] sm:$0xff] %v2335
  %2406 = vst [vmem:[#allocation2 + $0x68] sm:$0xff] %v2337
  %2407 = vst [vmem:[#allocation2 + $0x70] sm:$0xff] %v2341
  %2408 = vst [vmem:[#allocation2 + $0x78] sm:$0xff] %v2343
  %2409 = vst [vmem:[#allocation2 + $0x80] sm:$0xff] %v2347
  %2410 = vst [vmem:[#allocation2 + $0x88] sm:$0xff] %v2349
  %2411 = vst [vmem:[#allocation2 + $0x90] sm:$0xff] %v2353
  %2412 = vst [vmem:[#allocation2 + $0x98] sm:$0xff] %v2355
  %2413 = vst [vmem:[#allocation2 + $0xa0] sm:$0xff] %v2359
  %2414 = vst [vmem:[#allocation2 + $0xa8] sm:$0xff] %v2361
  %2415 = vst [vmem:[#allocation2 + $0xb0] sm:$0xff] %v2365
  %2416 = vst [vmem:[#allocation2 + $0xb8] sm:$0xff] %v2367
  %2417 = vst [vmem:[#allocation2 + $0xc0] sm:$0xff] %v2371
  %2418 = vst [vmem:[#allocation2 + $0xc8] sm:$0xff] %v2373
  %2419 = vst [vmem:[#allocation2 + $0xd0] sm:$0xff] %v2377
  %2420 = vst [vmem:[#allocation2 + $0xd8] sm:$0xff] %v2379
  %2421 = vst [vmem:[#allocation2 + $0xe0] sm:$0xff] %v2383
  %2422 = vst [vmem:[#allocation2 + $0xe8] sm:$0xff] %v2385
  %2423 = vst [vmem:[#allocation2 + $0xf0] sm:$0xff] %v2389
  %2424 = vst [vmem:[#allocation2 + $0xf8] sm:$0xff] %v2391
  %v2425 = vld [vmem:[#allocation2] sm:$0xff]
  %v2426 = vld [vmem:[#allocation2 + $0x8] sm:$0xff]
  %2427 = vmatprep.subr.mxu0 0.0
  %2428 = vmatpush1.msra.mxu0 0.0
  %2429 = vmatprep.subr.mxu0 0.0
  %2430 = vmatpush1.msra.mxu0 0.0
  %2431 = vmatprep.subr.mxu0 0.0
  %2432 = vmatpush1.msra.mxu0 0.0
  %2433 = vmatprep.subr.mxu0 0.0
  %2434 = vmatpush1.msra.mxu0 0.0
  %2435 = vmatprep.subr.mxu0 0.0
  %2436 = vmatpush1.msra.mxu0 0.0
  %2437 = vmatprep.subr.mxu0 0.0
  %2438 = vmatpush1.msra.mxu0 0.0
  %2439 = vmatprep.subr.mxu0 0.0
  %2440 = vmatpush1.msra.mxu0 0.0
  %2441 = vmatprep.subr.mxu0 0.0
  %2442 = vmatpush1.msra.mxu0 0.0
  %2443 = vmatprep.subr.mxu0 %v2219
  %2444 = vmatpush1.msra.mxu0 %v2218
  %2445 = vmatprep.subr.mxu0 %v2217
  %2446 = vmatpush1.msra.mxu0 %v2216
  %2447 = vmatprep.subr.mxu0 %v2215
  %2448 = vmatpush1.msra.mxu0 %v2214
  %2449 = vmatprep.subr.mxu0 %v2213
  %2450 = vmatpush1.msra.mxu0 %v2212
  %2451 = vmatprep.subr.mxu0 %v2211
  %2452 = vmatpush1.msra.mxu0 %v2210
  %2453 = vmatprep.subr.mxu0 %v2209
  %2454 = vmatpush1.msra.mxu0 %v2208
  %2455 = vmatprep.subr.mxu0 %v2207
  %2456 = vmatpush1.msra.mxu0 %v2206
  %2457 = vmatprep.subr.mxu0 %v2205
  %2458 = vmatpush1.msra.mxu0 %v2204
  %2459 = vmatprep.subr.mxu0 0.0
  %2460 = vmatpush2.msra.mxu0 0.0
  %2461 = vmatprep.subr.mxu0 0.0
  %2462 = vmatpush2.msra.mxu0 0.0
  %2463 = vmatprep.subr.mxu0 0.0
  %2464 = vmatpush2.msra.mxu0 0.0
  %2465 = vmatprep.subr.mxu0 0.0
  %2466 = vmatpush2.msra.mxu0 0.0
  %2467 = vmatprep.subr.mxu0 0.0
  %2468 = vmatpush2.msra.mxu0 0.0
  %2469 = vmatprep.subr.mxu0 0.0
  %2470 = vmatpush2.msra.mxu0 0.0
  %2471 = vmatprep.subr.mxu0 0.0
  %2472 = vmatpush2.msra.mxu0 0.0
  %2473 = vmatprep.subr.mxu0 0.0
  %2474 = vmatpush2.msra.mxu0 0.0
  %2475 = vmatprep.subr.mxu0 0.0
  %2476 = vmatpush2.msra.mxu0 0.0
  %2477 = vmatprep.subr.mxu0 0.0
  %2478 = vmatpush2.msra.mxu0 0.0
  %2479 = vmatprep.subr.mxu0 0.0
  %2480 = vmatpush2.msra.mxu0 0.0
  %2481 = vmatprep.subr.mxu0 0.0
  %2482 = vmatpush2.msra.mxu0 0.0
  %2483 = vmatprep.subr.mxu0 0.0
  %2484 = vmatpush2.msra.mxu0 0.0
  %2485 = vmatprep.subr.mxu0 0.0
  %2486 = vmatpush2.msra.mxu0 0.0
  %2487 = vmatprep.subr.mxu0 0.0
  %2488 = vmatpush2.msra.mxu0 0.0
  %2489 = vmatprep.subr.mxu0 0.0
  %2490 = vmatpush2.msra.mxu0 0.0
  %2491 = vmatprep.mubr.f32.mxu0 0.0
  %2492 = vmatmul.mubr.f32.gmra.mxu0 %v333
  %v2493 = vpop.f32.mrf.mxu0
  %v2494 = vadd.f32 0.0, %v2493
  %v2495 = vpop.f32.mrf.mxu0
  %v2496 = vadd.f32 0.0, %v2495
  %2497 = vdwg.mxu0
  %v2498 = vadd.f32 %v2425, %v2494
  %v2499 = vadd.f32 %v2426, %v2496
  %v2500 = vxor.u32 %v2498, 2147483648
  %v2501 = vxor.u32 %v2499, 2147483648
  %v2502 = vmul.f32 %v2500, 1.442695
  %v2503 = vpow.pop %v2502
  %v2504 = vmul.f32 %v2501, 1.442695
  %v2505 = vpow.pop %v2504
  %v2506 = vadd.f32 %v2503, 1.0
  %v2507 = vadd.f32 %v2505, 1.0
  %v2508 = vrcp.pop %v2506
  %v2509 = vmul.f32 1.0, %v2508
  %v2510 = vrcp.pop %v2507
  %v2511 = vmul.f32 1.0, %v2510
  %v2512 = vtanh.pop %v2499
  %v2513 = vmul.f32 %v2509, 0.0
  %2515 = vrot.lane.b32.xlu0 %v2512, 64
  %v2516 = vpop.permute.xlu0 %2515
  %v2518 = vmul.f32 %v2509, %v2516
  %2520 = vrot.lane.b32.xlu0 %v2518, 64
  %v2521 = vpop.permute.xlu0 %2520
  %v2523 = vadd.f32 %v2513, %v2521
  %v2524 = vtanh.pop %v2523
  %2526 = vrot.lane.b32.xlu0 %v2524, 64
  %v2527 = vpop.permute.xlu0 %2526
  %v2529 = vmul.f32 %v2511, %v2527
  %v2530 = vtanh.pop %v2529
  %v2531 = vld [vmem:[#allocation2 + $0x10] sm:$0xff]
  %v2532 = vld [vmem:[#allocation2 + $0x18] sm:$0xff]
  %v2534 = vsel %vm331, %v2529, 0
  %2536 = vmatprep.subr.mxu0 0.0
  %2537 = vmatpush1.msra.mxu0 0.0
  %2538 = vmatprep.subr.mxu0 0.0
  %2539 = vmatpush1.msra.mxu0 0.0
  %2540 = vmatprep.subr.mxu0 0.0
  %2541 = vmatpush1.msra.mxu0 0.0
  %2542 = vmatprep.subr.mxu0 0.0
  %2543 = vmatpush1.msra.mxu0 0.0
  %2544 = vmatprep.subr.mxu0 0.0
  %2545 = vmatpush1.msra.mxu0 0.0
  %2546 = vmatprep.subr.mxu0 0.0
  %2547 = vmatpush1.msra.mxu0 0.0
  %2548 = vmatprep.subr.mxu0 0.0
  %2549 = vmatpush1.msra.mxu0 0.0
  %2550 = vmatprep.subr.mxu0 0.0
  %2551 = vmatpush1.msra.mxu0 0.0
  %2552 = vmatprep.subr.mxu0 %v2219
  %2553 = vmatpush1.msra.mxu0 %v2218
  %2554 = vmatprep.subr.mxu0 %v2217
  %2555 = vmatpush1.msra.mxu0 %v2216
  %2556 = vmatprep.subr.mxu0 %v2215
  %2557 = vmatpush1.msra.mxu0 %v2214
  %2558 = vmatprep.subr.mxu0 %v2213
  %2559 = vmatpush1.msra.mxu0 %v2212
  %2560 = vmatprep.subr.mxu0 %v2211
  %2561 = vmatpush1.msra.mxu0 %v2210
  %2562 = vmatprep.subr.mxu0 %v2209
  %2563 = vmatpush1.msra.mxu0 %v2208
  %2564 = vmatprep.subr.mxu0 %v2207
  %2565 = vmatpush1.msra.mxu0 %v2206
  %2566 = vmatprep.subr.mxu0 %v2205
  %2567 = vmatpush1.msra.mxu0 %v2204
  %2568 = vmatprep.subr.mxu0 0.0
  %2569 = vmatpush2.msra.mxu0 0.0
  %2570 = vmatprep.subr.mxu0 0.0
  %2571 = vmatpush2.msra.mxu0 0.0
  %2572 = vmatprep.subr.mxu0 0.0
  %2573 = vmatpush2.msra.mxu0 0.0
  %2574 = vmatprep.subr.mxu0 0.0
  %2575 = vmatpush2.msra.mxu0 0.0
  %2576 = vmatprep.subr.mxu0 0.0
  %2577 = vmatpush2.msra.mxu0 0.0
  %2578 = vmatprep.subr.mxu0 0.0
  %2579 = vmatpush2.msra.mxu0 0.0
  %2580 = vmatprep.subr.mxu0 0.0
  %2581 = vmatpush2.msra.mxu0 0.0
  %2582 = vmatprep.subr.mxu0 0.0
  %2583 = vmatpush2.msra.mxu0 0.0
  %2584 = vmatprep.subr.mxu0 0.0
  %2585 = vmatpush2.msra.mxu0 0.0
  %2586 = vmatprep.subr.mxu0 0.0
  %2587 = vmatpush2.msra.mxu0 0.0
  %2588 = vmatprep.subr.mxu0 0.0
  %2589 = vmatpush2.msra.mxu0 0.0
  %2590 = vmatprep.subr.mxu0 0.0
  %2591 = vmatpush2.msra.mxu0 0.0
  %2592 = vmatprep.subr.mxu0 0.0
  %2593 = vmatpush2.msra.mxu0 0.0
  %2594 = vmatprep.subr.mxu0 0.0
  %2595 = vmatpush2.msra.mxu0 0.0
  %2596 = vmatprep.subr.mxu0 0.0
  %2597 = vmatpush2.msra.mxu0 0.0
  %2598 = vmatprep.subr.mxu0 0.0
  %2599 = vmatpush2.msra.mxu0 0.0
  %2600 = vmatprep.mubr.f32.mxu0 0.0
  %2601 = vmatmul.mubr.f32.gmra.mxu0 %v2534
  %v2602 = vpop.f32.mrf.mxu0
  %v2603 = vadd.f32 0.0, %v2602
  %v2604 = vpop.f32.mrf.mxu0
  %v2605 = vadd.f32 0.0, %v2604
  %2606 = vdwg.mxu0
  %v2607 = vadd.f32 %v2531, %v2603
  %v2608 = vadd.f32 %v2532, %v2605
  %v2609 = vxor.u32 %v2607, 2147483648
  %v2610 = vxor.u32 %v2608, 2147483648
  %v2611 = vmul.f32 %v2609, 1.442695
  %v2612 = vpow.pop %v2611
  %v2613 = vmul.f32 %v2610, 1.442695
  %v2614 = vpow.pop %v2613
  %v2615 = vadd.f32 %v2612, 1.0
  %v2616 = vadd.f32 %v2614, 1.0
  %v2617 = vrcp.pop %v2615
  %v2618 = vmul.f32 1.0, %v2617
  %v2619 = vrcp.pop %v2616
  %v2620 = vmul.f32 1.0, %v2619
  %v2621 = vtanh.pop %v2608
  %v2622 = vmul.f32 %v2618, %v2523
  %2624 = vrot.lane.b32.xlu0 %v2621, 64
  %v2625 = vpop.permute.xlu0 %2624
  %v2627 = vmul.f32 %v2618, %v2625
  %2629 = vrot.lane.b32.xlu0 %v2627, 64
  %v2630 = vpop.permute.xlu0 %2629
  %v2632 = vadd.f32 %v2622, %v2630
  %v2633 = vtanh.pop %v2632
  %2635 = vrot.lane.b32.xlu0 %v2633, 64
  %v2636 = vpop.permute.xlu0 %2635
  %v2638 = vmul.f32 %v2620, %v2636
  %v2639 = vtanh.pop %v2638
  %v2640 = vmax.f32 %v2530, %v2639
  %v2641 = vld [vmem:[#allocation2 + $0x20] sm:$0xff]
  %v2642 = vld [vmem:[#allocation2 + $0x28] sm:$0xff]
  %v2644 = vsel %vm331, %v2638, 0
  %2646 = vmatprep.subr.mxu0 0.0
  %2647 = vmatpush1.msra.mxu0 0.0
  %2648 = vmatprep.subr.mxu0 0.0
  %2649 = vmatpush1.msra.mxu0 0.0
  %2650 = vmatprep.subr.mxu0 0.0
  %2651 = vmatpush1.msra.mxu0 0.0
  %2652 = vmatprep.subr.mxu0 0.0
  %2653 = vmatpush1.msra.mxu0 0.0
  %2654 = vmatprep.subr.mxu0 0.0
  %2655 = vmatpush1.msra.mxu0 0.0
  %2656 = vmatprep.subr.mxu0 0.0
  %2657 = vmatpush1.msra.mxu0 0.0
  %2658 = vmatprep.subr.mxu0 0.0
  %2659 = vmatpush1.msra.mxu0 0.0
  %2660 = vmatprep.subr.mxu0 0.0
  %2661 = vmatpush1.msra.mxu0 0.0
  %2662 = vmatprep.subr.mxu0 %v2219
  %2663 = vmatpush1.msra.mxu0 %v2218
  %2664 = vmatprep.subr.mxu0 %v2217
  %2665 = vmatpush1.msra.mxu0 %v2216
  %2666 = vmatprep.subr.mxu0 %v2215
  %2667 = vmatpush1.msra.mxu0 %v2214
  %2668 = vmatprep.subr.mxu0 %v2213
  %2669 = vmatpush1.msra.mxu0 %v2212
  %2670 = vmatprep.subr.mxu0 %v2211
  %2671 = vmatpush1.msra.mxu0 %v2210
  %2672 = vmatprep.subr.mxu0 %v2209
  %2673 = vmatpush1.msra.mxu0 %v2208
  %2674 = vmatprep.subr.mxu0 %v2207
  %2675 = vmatpush1.msra.mxu0 %v2206
  %2676 = vmatprep.subr.mxu0 %v2205
  %2677 = vmatpush1.msra.mxu0 %v2204
  %2678 = vmatprep.subr.mxu0 0.0
  %2679 = vmatpush2.msra.mxu0 0.0
  %2680 = vmatprep.subr.mxu0 0.0
  %2681 = vmatpush2.msra.mxu0 0.0
  %2682 = vmatprep.subr.mxu0 0.0
  %2683 = vmatpush2.msra.mxu0 0.0
  %2684 = vmatprep.subr.mxu0 0.0
  %2685 = vmatpush2.msra.mxu0 0.0
  %2686 = vmatprep.subr.mxu0 0.0
  %2687 = vmatpush2.msra.mxu0 0.0
  %2688 = vmatprep.subr.mxu0 0.0
  %2689 = vmatpush2.msra.mxu0 0.0
  %2690 = vmatprep.subr.mxu0 0.0
  %2691 = vmatpush2.msra.mxu0 0.0
  %2692 = vmatprep.subr.mxu0 0.0
  %2693 = vmatpush2.msra.mxu0 0.0
  %2694 = vmatprep.subr.mxu0 0.0
  %2695 = vmatpush2.msra.mxu0 0.0
  %2696 = vmatprep.subr.mxu0 0.0
  %2697 = vmatpush2.msra.mxu0 0.0
  %2698 = vmatprep.subr.mxu0 0.0
  %2699 = vmatpush2.msra.mxu0 0.0
  %2700 = vmatprep.subr.mxu0 0.0
  %2701 = vmatpush2.msra.mxu0 0.0
  %2702 = vmatprep.subr.mxu0 0.0
  %2703 = vmatpush2.msra.mxu0 0.0
  %2704 = vmatprep.subr.mxu0 0.0
  %2705 = vmatpush2.msra.mxu0 0.0
  %2706 = vmatprep.subr.mxu0 0.0
  %2707 = vmatpush2.msra.mxu0 0.0
  %2708 = vmatprep.subr.mxu0 0.0
  %2709 = vmatpush2.msra.mxu0 0.0
  %2710 = vmatprep.mubr.f32.mxu0 0.0
  %2711 = vmatmul.mubr.f32.gmra.mxu0 %v2644
  %v2712 = vpop.f32.mrf.mxu0
  %v2713 = vadd.f32 0.0, %v2712
  %v2714 = vpop.f32.mrf.mxu0
  %v2715 = vadd.f32 0.0, %v2714
  %2716 = vdwg.mxu0
  %v2717 = vadd.f32 %v2641, %v2713
  %v2718 = vadd.f32 %v2642, %v2715
  %v2719 = vxor.u32 %v2717, 2147483648
  %v2720 = vxor.u32 %v2718, 2147483648
  %v2721 = vmul.f32 %v2719, 1.442695
  %v2722 = vpow.pop %v2721
  %v2723 = vmul.f32 %v2720, 1.442695
  %v2724 = vpow.pop %v2723
  %v2725 = vadd.f32 %v2722, 1.0
  %v2726 = vadd.f32 %v2724, 1.0
  %v2727 = vrcp.pop %v2725
  %v2728 = vmul.f32 1.0, %v2727
  %v2729 = vrcp.pop %v2726
  %v2730 = vmul.f32 1.0, %v2729
  %v2731 = vtanh.pop %v2718
  %v2732 = vmul.f32 %v2728, %v2632
  %2734 = vrot.lane.b32.xlu0 %v2731, 64
  %v2735 = vpop.permute.xlu0 %2734
  %v2737 = vmul.f32 %v2728, %v2735
  %2739 = vrot.lane.b32.xlu0 %v2737, 64
  %v2740 = vpop.permute.xlu0 %2739
  %v2742 = vadd.f32 %v2732, %v2740
  %v2743 = vtanh.pop %v2742
  %2745 = vrot.lane.b32.xlu0 %v2743, 64
  %v2746 = vpop.permute.xlu0 %2745
  %v2748 = vmul.f32 %v2730, %v2746
  %v2749 = vtanh.pop %v2748
  %v2750 = vmax.f32 %v2640, %v2749
  %v2751 = vld [vmem:[#allocation2 + $0x30] sm:$0xff]
  %v2752 = vld [vmem:[#allocation2 + $0x38] sm:$0xff]
  %v2754 = vsel %vm331, %v2748, 0
  %2756 = vmatprep.subr.mxu0 0.0
  %2757 = vmatpush1.msra.mxu0 0.0
  %2758 = vmatprep.subr.mxu0 0.0
  %2759 = vmatpush1.msra.mxu0 0.0
  %2760 = vmatprep.subr.mxu0 0.0
  %2761 = vmatpush1.msra.mxu0 0.0
  %2762 = vmatprep.subr.mxu0 0.0
  %2763 = vmatpush1.msra.mxu0 0.0
  %2764 = vmatprep.subr.mxu0 0.0
  %2765 = vmatpush1.msra.mxu0 0.0
  %2766 = vmatprep.subr.mxu0 0.0
  %2767 = vmatpush1.msra.mxu0 0.0
  %2768 = vmatprep.subr.mxu0 0.0
  %2769 = vmatpush1.msra.mxu0 0.0
  %2770 = vmatprep.subr.mxu0 0.0
  %2771 = vmatpush1.msra.mxu0 0.0
  %2772 = vmatprep.subr.mxu0 %v2219
  %2773 = vmatpush1.msra.mxu0 %v2218
  %2774 = vmatprep.subr.mxu0 %v2217
  %2775 = vmatpush1.msra.mxu0 %v2216
  %2776 = vmatprep.subr.mxu0 %v2215
  %2777 = vmatpush1.msra.mxu0 %v2214
  %2778 = vmatprep.subr.mxu0 %v2213
  %2779 = vmatpush1.msra.mxu0 %v2212
  %2780 = vmatprep.subr.mxu0 %v2211
  %2781 = vmatpush1.msra.mxu0 %v2210
  %2782 = vmatprep.subr.mxu0 %v2209
  %2783 = vmatpush1.msra.mxu0 %v2208
  %2784 = vmatprep.subr.mxu0 %v2207
  %2785 = vmatpush1.msra.mxu0 %v2206
  %2786 = vmatprep.subr.mxu0 %v2205
  %2787 = vmatpush1.msra.mxu0 %v2204
  %2788 = vmatprep.subr.mxu0 0.0
  %2789 = vmatpush2.msra.mxu0 0.0
  %2790 = vmatprep.subr.mxu0 0.0
  %2791 = vmatpush2.msra.mxu0 0.0
  %2792 = vmatprep.subr.mxu0 0.0
  %2793 = vmatpush2.msra.mxu0 0.0
  %2794 = vmatprep.subr.mxu0 0.0
  %2795 = vmatpush2.msra.mxu0 0.0
  %2796 = vmatprep.subr.mxu0 0.0
  %2797 = vmatpush2.msra.mxu0 0.0
  %2798 = vmatprep.subr.mxu0 0.0
  %2799 = vmatpush2.msra.mxu0 0.0
  %2800 = vmatprep.subr.mxu0 0.0
  %2801 = vmatpush2.msra.mxu0 0.0
  %2802 = vmatprep.subr.mxu0 0.0
  %2803 = vmatpush2.msra.mxu0 0.0
  %2804 = vmatprep.subr.mxu0 0.0
  %2805 = vmatpush2.msra.mxu0 0.0
  %2806 = vmatprep.subr.mxu0 0.0
  %2807 = vmatpush2.msra.mxu0 0.0
  %2808 = vmatprep.subr.mxu0 0.0
  %2809 = vmatpush2.msra.mxu0 0.0
  %2810 = vmatprep.subr.mxu0 0.0
  %2811 = vmatpush2.msra.mxu0 0.0
  %2812 = vmatprep.subr.mxu0 0.0
  %2813 = vmatpush2.msra.mxu0 0.0
  %2814 = vmatprep.subr.mxu0 0.0
  %2815 = vmatpush2.msra.mxu0 0.0
  %2816 = vmatprep.subr.mxu0 0.0
  %2817 = vmatpush2.msra.mxu0 0.0
  %2818 = vmatprep.subr.mxu0 0.0
  %2819 = vmatpush2.msra.mxu0 0.0
  %2820 = vmatprep.mubr.f32.mxu0 0.0
  %2821 = vmatmul.mubr.f32.gmra.mxu0 %v2754
  %v2822 = vpop.f32.mrf.mxu0
  %v2823 = vadd.f32 0.0, %v2822
  %v2824 = vpop.f32.mrf.mxu0
  %v2825 = vadd.f32 0.0, %v2824
  %2826 = vdwg.mxu0
  %v2827 = vadd.f32 %v2751, %v2823
  %v2828 = vadd.f32 %v2752, %v2825
  %v2829 = vxor.u32 %v2827, 2147483648
  %v2830 = vxor.u32 %v2828, 2147483648
  %v2831 = vmul.f32 %v2829, 1.442695
  %v2832 = vpow.pop %v2831
  %v2833 = vmul.f32 %v2830, 1.442695
  %v2834 = vpow.pop %v2833
  %v2835 = vadd.f32 %v2832, 1.0
  %v2836 = vadd.f32 %v2834, 1.0
  %v2837 = vrcp.pop %v2835
  %v2838 = vmul.f32 1.0, %v2837
  %v2839 = vrcp.pop %v2836
  %v2840 = vmul.f32 1.0, %v2839
  %v2841 = vtanh.pop %v2828
  %v2842 = vmul.f32 %v2838, %v2742
  %2844 = vrot.lane.b32.xlu0 %v2841, 64
  %v2845 = vpop.permute.xlu0 %2844
  %v2847 = vmul.f32 %v2838, %v2845
  %2849 = vrot.lane.b32.xlu0 %v2847, 64
  %v2850 = vpop.permute.xlu0 %2849
  %v2852 = vadd.f32 %v2842, %v2850
  %v2853 = vtanh.pop %v2852
  %2855 = vrot.lane.b32.xlu0 %v2853, 64
  %v2856 = vpop.permute.xlu0 %2855
  %v2858 = vmul.f32 %v2840, %v2856
  %v2859 = vtanh.pop %v2858
  %v2860 = vmax.f32 %v2750, %v2859
  %v2861 = vld [vmem:[#allocation2 + $0x40] sm:$0xff]
  %v2862 = vld [vmem:[#allocation2 + $0x48] sm:$0xff]
  %v2864 = vsel %vm331, %v2858, 0
  %2866 = vmatprep.subr.mxu0 0.0
  %2867 = vmatpush1.msra.mxu0 0.0
  %2868 = vmatprep.subr.mxu0 0.0
  %2869 = vmatpush1.msra.mxu0 0.0
  %2870 = vmatprep.subr.mxu0 0.0
  %2871 = vmatpush1.msra.mxu0 0.0
  %2872 = vmatprep.subr.mxu0 0.0
  %2873 = vmatpush1.msra.mxu0 0.0
  %2874 = vmatprep.subr.mxu0 0.0
  %2875 = vmatpush1.msra.mxu0 0.0
  %2876 = vmatprep.subr.mxu0 0.0
  %2877 = vmatpush1.msra.mxu0 0.0
  %2878 = vmatprep.subr.mxu0 0.0
  %2879 = vmatpush1.msra.mxu0 0.0
  %2880 = vmatprep.subr.mxu0 0.0
  %2881 = vmatpush1.msra.mxu0 0.0
  %2882 = vmatprep.subr.mxu0 %v2219
  %2883 = vmatpush1.msra.mxu0 %v2218
  %2884 = vmatprep.subr.mxu0 %v2217
  %2885 = vmatpush1.msra.mxu0 %v2216
  %2886 = vmatprep.subr.mxu0 %v2215
  %2887 = vmatpush1.msra.mxu0 %v2214
  %2888 = vmatprep.subr.mxu0 %v2213
  %2889 = vmatpush1.msra.mxu0 %v2212
  %2890 = vmatprep.subr.mxu0 %v2211
  %2891 = vmatpush1.msra.mxu0 %v2210
  %2892 = vmatprep.subr.mxu0 %v2209
  %2893 = vmatpush1.msra.mxu0 %v2208
  %2894 = vmatprep.subr.mxu0 %v2207
  %2895 = vmatpush1.msra.mxu0 %v2206
  %2896 = vmatprep.subr.mxu0 %v2205
  %2897 = vmatpush1.msra.mxu0 %v2204
  %2898 = vmatprep.subr.mxu0 0.0
  %2899 = vmatpush2.msra.mxu0 0.0
  %2900 = vmatprep.subr.mxu0 0.0
  %2901 = vmatpush2.msra.mxu0 0.0
  %2902 = vmatprep.subr.mxu0 0.0
  %2903 = vmatpush2.msra.mxu0 0.0
  %2904 = vmatprep.subr.mxu0 0.0
  %2905 = vmatpush2.msra.mxu0 0.0
  %2906 = vmatprep.subr.mxu0 0.0
  %2907 = vmatpush2.msra.mxu0 0.0
  %2908 = vmatprep.subr.mxu0 0.0
  %2909 = vmatpush2.msra.mxu0 0.0
  %2910 = vmatprep.subr.mxu0 0.0
  %2911 = vmatpush2.msra.mxu0 0.0
  %2912 = vmatprep.subr.mxu0 0.0
  %2913 = vmatpush2.msra.mxu0 0.0
  %2914 = vmatprep.subr.mxu0 0.0
  %2915 = vmatpush2.msra.mxu0 0.0
  %2916 = vmatprep.subr.mxu0 0.0
  %2917 = vmatpush2.msra.mxu0 0.0
  %2918 = vmatprep.subr.mxu0 0.0
  %2919 = vmatpush2.msra.mxu0 0.0
  %2920 = vmatprep.subr.mxu0 0.0
  %2921 = vmatpush2.msra.mxu0 0.0
  %2922 = vmatprep.subr.mxu0 0.0
  %2923 = vmatpush2.msra.mxu0 0.0
  %2924 = vmatprep.subr.mxu0 0.0
  %2925 = vmatpush2.msra.mxu0 0.0
  %2926 = vmatprep.subr.mxu0 0.0
  %2927 = vmatpush2.msra.mxu0 0.0
  %2928 = vmatprep.subr.mxu0 0.0
  %2929 = vmatpush2.msra.mxu0 0.0
  %2930 = vmatprep.mubr.f32.mxu0 0.0
  %2931 = vmatmul.mubr.f32.gmra.mxu0 %v2864
  %v2932 = vpop.f32.mrf.mxu0
  %v2933 = vadd.f32 0.0, %v2932
  %v2934 = vpop.f32.mrf.mxu0
  %v2935 = vadd.f32 0.0, %v2934
  %2936 = vdwg.mxu0
  %v2937 = vadd.f32 %v2861, %v2933
  %v2938 = vadd.f32 %v2862, %v2935
  %v2939 = vxor.u32 %v2937, 2147483648
  %v2940 = vxor.u32 %v2938, 2147483648
  %v2941 = vmul.f32 %v2939, 1.442695
  %v2942 = vpow.pop %v2941
  %v2943 = vmul.f32 %v2940, 1.442695
  %v2944 = vpow.pop %v2943
  %v2945 = vadd.f32 %v2942, 1.0
  %v2946 = vadd.f32 %v2944, 1.0
  %v2947 = vrcp.pop %v2945
  %v2948 = vmul.f32 1.0, %v2947
  %v2949 = vrcp.pop %v2946
  %v2950 = vmul.f32 1.0, %v2949
  %v2951 = vtanh.pop %v2938
  %v2952 = vmul.f32 %v2948, %v2852
  %2954 = vrot.lane.b32.xlu0 %v2951, 64
  %v2955 = vpop.permute.xlu0 %2954
  %v2957 = vmul.f32 %v2948, %v2955
  %2959 = vrot.lane.b32.xlu0 %v2957, 64
  %v2960 = vpop.permute.xlu0 %2959
  %v2962 = vadd.f32 %v2952, %v2960
  %v2963 = vtanh.pop %v2962
  %2965 = vrot.lane.b32.xlu0 %v2963, 64
  %v2966 = vpop.permute.xlu0 %2965
  %v2968 = vmul.f32 %v2950, %v2966
  %v2969 = vtanh.pop %v2968
  %v2970 = vmax.f32 %v2860, %v2969
  %v2971 = vld [vmem:[#allocation2 + $0x50] sm:$0xff]
  %v2972 = vld [vmem:[#allocation2 + $0x58] sm:$0xff]
  %v2974 = vsel %vm331, %v2968, 0
  %2976 = vmatprep.subr.mxu0 0.0
  %2977 = vmatpush1.msra.mxu0 0.0
  %2978 = vmatprep.subr.mxu0 0.0
  %2979 = vmatpush1.msra.mxu0 0.0
  %2980 = vmatprep.subr.mxu0 0.0
  %2981 = vmatpush1.msra.mxu0 0.0
  %2982 = vmatprep.subr.mxu0 0.0
  %2983 = vmatpush1.msra.mxu0 0.0
  %2984 = vmatprep.subr.mxu0 0.0
  %2985 = vmatpush1.msra.mxu0 0.0
  %2986 = vmatprep.subr.mxu0 0.0
  %2987 = vmatpush1.msra.mxu0 0.0
  %2988 = vmatprep.subr.mxu0 0.0
  %2989 = vmatpush1.msra.mxu0 0.0
  %2990 = vmatprep.subr.mxu0 0.0
  %2991 = vmatpush1.msra.mxu0 0.0
  %2992 = vmatprep.subr.mxu0 %v2219
  %2993 = vmatpush1.msra.mxu0 %v2218
  %2994 = vmatprep.subr.mxu0 %v2217
  %2995 = vmatpush1.msra.mxu0 %v2216
  %2996 = vmatprep.subr.mxu0 %v2215
  %2997 = vmatpush1.msra.mxu0 %v2214
  %2998 = vmatprep.subr.mxu0 %v2213
  %2999 = vmatpush1.msra.mxu0 %v2212
  %3000 = vmatprep.subr.mxu0 %v2211
  %3001 = vmatpush1.msra.mxu0 %v2210
  %3002 = vmatprep.subr.mxu0 %v2209
  %3003 = vmatpush1.msra.mxu0 %v2208
  %3004 = vmatprep.subr.mxu0 %v2207
  %3005 = vmatpush1.msra.mxu0 %v2206
  %3006 = vmatprep.subr.mxu0 %v2205
  %3007 = vmatpush1.msra.mxu0 %v2204
  %3008 = vmatprep.subr.mxu0 0.0
  %3009 = vmatpush2.msra.mxu0 0.0
  %3010 = vmatprep.subr.mxu0 0.0
  %3011 = vmatpush2.msra.mxu0 0.0
  %3012 = vmatprep.subr.mxu0 0.0
  %3013 = vmatpush2.msra.mxu0 0.0
  %3014 = vmatprep.subr.mxu0 0.0
  %3015 = vmatpush2.msra.mxu0 0.0
  %3016 = vmatprep.subr.mxu0 0.0
  %3017 = vmatpush2.msra.mxu0 0.0
  %3018 = vmatprep.subr.mxu0 0.0
  %3019 = vmatpush2.msra.mxu0 0.0
  %3020 = vmatprep.subr.mxu0 0.0
  %3021 = vmatpush2.msra.mxu0 0.0
  %3022 = vmatprep.subr.mxu0 0.0
  %3023 = vmatpush2.msra.mxu0 0.0
  %3024 = vmatprep.subr.mxu0 0.0
  %3025 = vmatpush2.msra.mxu0 0.0
  %3026 = vmatprep.subr.mxu0 0.0
  %3027 = vmatpush2.msra.mxu0 0.0
  %3028 = vmatprep.subr.mxu0 0.0
  %3029 = vmatpush2.msra.mxu0 0.0
  %3030 = vmatprep.subr.mxu0 0.0
  %3031 = vmatpush2.msra.mxu0 0.0
  %3032 = vmatprep.subr.mxu0 0.0
  %3033 = vmatpush2.msra.mxu0 0.0
  %3034 = vmatprep.subr.mxu0 0.0
  %3035 = vmatpush2.msra.mxu0 0.0
  %3036 = vmatprep.subr.mxu0 0.0
  %3037 = vmatpush2.msra.mxu0 0.0
  %3038 = vmatprep.subr.mxu0 0.0
  %3039 = vmatpush2.msra.mxu0 0.0
  %3040 = vmatprep.mubr.f32.mxu0 0.0
  %3041 = vmatmul.mubr.f32.gmra.mxu0 %v2974
  %v3042 = vpop.f32.mrf.mxu0
  %v3043 = vadd.f32 0.0, %v3042
  %v3044 = vpop.f32.mrf.mxu0
  %v3045 = vadd.f32 0.0, %v3044
  %3046 = vdwg.mxu0
  %v3047 = vadd.f32 %v2971, %v3043
  %v3048 = vadd.f32 %v2972, %v3045
  %v3049 = vxor.u32 %v3047, 2147483648
  %v3050 = vxor.u32 %v3048, 2147483648
  %v3051 = vmul.f32 %v3049, 1.442695
  %v3052 = vpow.pop %v3051
  %v3053 = vmul.f32 %v3050, 1.442695
  %v3054 = vpow.pop %v3053
  %v3055 = vadd.f32 %v3052, 1.0
  %v3056 = vadd.f32 %v3054, 1.0
  %v3057 = vrcp.pop %v3055
  %v3058 = vmul.f32 1.0, %v3057
  %v3059 = vrcp.pop %v3056
  %v3060 = vmul.f32 1.0, %v3059
  %v3061 = vtanh.pop %v3048
  %v3062 = vmul.f32 %v3058, %v2962
  %3064 = vrot.lane.b32.xlu0 %v3061, 64
  %v3065 = vpop.permute.xlu0 %3064
  %v3067 = vmul.f32 %v3058, %v3065
  %3069 = vrot.lane.b32.xlu0 %v3067, 64
  %v3070 = vpop.permute.xlu0 %3069
  %v3072 = vadd.f32 %v3062, %v3070
  %v3073 = vtanh.pop %v3072
  %3075 = vrot.lane.b32.xlu0 %v3073, 64
  %v3076 = vpop.permute.xlu0 %3075
  %v3078 = vmul.f32 %v3060, %v3076
  %v3079 = vtanh.pop %v3078
  %v3080 = vmax.f32 %v2970, %v3079
  %v3081 = vld [vmem:[#allocation2 + $0x60] sm:$0xff]
  %v3082 = vld [vmem:[#allocation2 + $0x68] sm:$0xff]
  %v3084 = vsel %vm331, %v3078, 0
  %3086 = vmatprep.subr.mxu0 0.0
  %3087 = vmatpush1.msra.mxu0 0.0
  %3088 = vmatprep.subr.mxu0 0.0
  %3089 = vmatpush1.msra.mxu0 0.0
  %3090 = vmatprep.subr.mxu0 0.0
  %3091 = vmatpush1.msra.mxu0 0.0
  %3092 = vmatprep.subr.mxu0 0.0
  %3093 = vmatpush1.msra.mxu0 0.0
  %3094 = vmatprep.subr.mxu0 0.0
  %3095 = vmatpush1.msra.mxu0 0.0
  %3096 = vmatprep.subr.mxu0 0.0
  %3097 = vmatpush1.msra.mxu0 0.0
  %3098 = vmatprep.subr.mxu0 0.0
  %3099 = vmatpush1.msra.mxu0 0.0
  %3100 = vmatprep.subr.mxu0 0.0
  %3101 = vmatpush1.msra.mxu0 0.0
  %3102 = vmatprep.subr.mxu0 %v2219
  %3103 = vmatpush1.msra.mxu0 %v2218
  %3104 = vmatprep.subr.mxu0 %v2217
  %3105 = vmatpush1.msra.mxu0 %v2216
  %3106 = vmatprep.subr.mxu0 %v2215
  %3107 = vmatpush1.msra.mxu0 %v2214
  %3108 = vmatprep.subr.mxu0 %v2213
  %3109 = vmatpush1.msra.mxu0 %v2212
  %3110 = vmatprep.subr.mxu0 %v2211
  %3111 = vmatpush1.msra.mxu0 %v2210
  %3112 = vmatprep.subr.mxu0 %v2209
  %3113 = vmatpush1.msra.mxu0 %v2208
  %3114 = vmatprep.subr.mxu0 %v2207
  %3115 = vmatpush1.msra.mxu0 %v2206
  %3116 = vmatprep.subr.mxu0 %v2205
  %3117 = vmatpush1.msra.mxu0 %v2204
  %3118 = vmatprep.subr.mxu0 0.0
  %3119 = vmatpush2.msra.mxu0 0.0
  %3120 = vmatprep.subr.mxu0 0.0
  %3121 = vmatpush2.msra.mxu0 0.0
  %3122 = vmatprep.subr.mxu0 0.0
  %3123 = vmatpush2.msra.mxu0 0.0
  %3124 = vmatprep.subr.mxu0 0.0
  %3125 = vmatpush2.msra.mxu0 0.0
  %3126 = vmatprep.subr.mxu0 0.0
  %3127 = vmatpush2.msra.mxu0 0.0
  %3128 = vmatprep.subr.mxu0 0.0
  %3129 = vmatpush2.msra.mxu0 0.0
  %3130 = vmatprep.subr.mxu0 0.0
  %3131 = vmatpush2.msra.mxu0 0.0
  %3132 = vmatprep.subr.mxu0 0.0
  %3133 = vmatpush2.msra.mxu0 0.0
  %3134 = vmatprep.subr.mxu0 0.0
  %3135 = vmatpush2.msra.mxu0 0.0
  %3136 = vmatprep.subr.mxu0 0.0
  %3137 = vmatpush2.msra.mxu0 0.0
  %3138 = vmatprep.subr.mxu0 0.0
  %3139 = vmatpush2.msra.mxu0 0.0
  %3140 = vmatprep.subr.mxu0 0.0
  %3141 = vmatpush2.msra.mxu0 0.0
  %3142 = vmatprep.subr.mxu0 0.0
  %3143 = vmatpush2.msra.mxu0 0.0
  %3144 = vmatprep.subr.mxu0 0.0
  %3145 = vmatpush2.msra.mxu0 0.0
  %3146 = vmatprep.subr.mxu0 0.0
  %3147 = vmatpush2.msra.mxu0 0.0
  %3148 = vmatprep.subr.mxu0 0.0
  %3149 = vmatpush2.msra.mxu0 0.0
  %3150 = vmatprep.mubr.f32.mxu0 0.0
  %3151 = vmatmul.mubr.f32.gmra.mxu0 %v3084
  %v3152 = vpop.f32.mrf.mxu0
  %v3153 = vadd.f32 0.0, %v3152
  %v3154 = vpop.f32.mrf.mxu0
  %v3155 = vadd.f32 0.0, %v3154
  %3156 = vdwg.mxu0
  %v3157 = vadd.f32 %v3081, %v3153
  %v3158 = vadd.f32 %v3082, %v3155
  %v3159 = vxor.u32 %v3157, 2147483648
  %v3160 = vxor.u32 %v3158, 2147483648
  %v3161 = vmul.f32 %v3159, 1.442695
  %v3162 = vpow.pop %v3161
  %v3163 = vmul.f32 %v3160, 1.442695
  %v3164 = vpow.pop %v3163
  %v3165 = vadd.f32 %v3162, 1.0
  %v3166 = vadd.f32 %v3164, 1.0
  %v3167 = vrcp.pop %v3165
  %v3168 = vmul.f32 1.0, %v3167
  %v3169 = vrcp.pop %v3166
  %v3170 = vmul.f32 1.0, %v3169
  %v3171 = vtanh.pop %v3158
  %v3172 = vmul.f32 %v3168, %v3072
  %3174 = vrot.lane.b32.xlu0 %v3171, 64
  %v3175 = vpop.permute.xlu0 %3174
  %v3177 = vmul.f32 %v3168, %v3175
  %3179 = vrot.lane.b32.xlu0 %v3177, 64
  %v3180 = vpop.permute.xlu0 %3179
  %v3182 = vadd.f32 %v3172, %v3180
  %v3183 = vtanh.pop %v3182
  %3185 = vrot.lane.b32.xlu0 %v3183, 64
  %v3186 = vpop.permute.xlu0 %3185
  %v3188 = vmul.f32 %v3170, %v3186
  %v3189 = vtanh.pop %v3188
  %v3190 = vmax.f32 %v3080, %v3189
  %v3191 = vld [vmem:[#allocation2 + $0x70] sm:$0xff]
  %v3192 = vld [vmem:[#allocation2 + $0x78] sm:$0xff]
  %v3194 = vsel %vm331, %v3188, 0
  %3196 = vmatprep.subr.mxu0 0.0
  %3197 = vmatpush1.msra.mxu0 0.0
  %3198 = vmatprep.subr.mxu0 0.0
  %3199 = vmatpush1.msra.mxu0 0.0
  %3200 = vmatprep.subr.mxu0 0.0
  %3201 = vmatpush1.msra.mxu0 0.0
  %3202 = vmatprep.subr.mxu0 0.0
  %3203 = vmatpush1.msra.mxu0 0.0
  %3204 = vmatprep.subr.mxu0 0.0
  %3205 = vmatpush1.msra.mxu0 0.0
  %3206 = vmatprep.subr.mxu0 0.0
  %3207 = vmatpush1.msra.mxu0 0.0
  %3208 = vmatprep.subr.mxu0 0.0
  %3209 = vmatpush1.msra.mxu0 0.0
  %3210 = vmatprep.subr.mxu0 0.0
  %3211 = vmatpush1.msra.mxu0 0.0
  %3212 = vmatprep.subr.mxu0 %v2219
  %3213 = vmatpush1.msra.mxu0 %v2218
  %3214 = vmatprep.subr.mxu0 %v2217
  %3215 = vmatpush1.msra.mxu0 %v2216
  %3216 = vmatprep.subr.mxu0 %v2215
  %3217 = vmatpush1.msra.mxu0 %v2214
  %3218 = vmatprep.subr.mxu0 %v2213
  %3219 = vmatpush1.msra.mxu0 %v2212
  %3220 = vmatprep.subr.mxu0 %v2211
  %3221 = vmatpush1.msra.mxu0 %v2210
  %3222 = vmatprep.subr.mxu0 %v2209
  %3223 = vmatpush1.msra.mxu0 %v2208
  %3224 = vmatprep.subr.mxu0 %v2207
  %3225 = vmatpush1.msra.mxu0 %v2206
  %3226 = vmatprep.subr.mxu0 %v2205
  %3227 = vmatpush1.msra.mxu0 %v2204
  %3228 = vmatprep.subr.mxu0 0.0
  %3229 = vmatpush2.msra.mxu0 0.0
  %3230 = vmatprep.subr.mxu0 0.0
  %3231 = vmatpush2.msra.mxu0 0.0
  %3232 = vmatprep.subr.mxu0 0.0
  %3233 = vmatpush2.msra.mxu0 0.0
  %3234 = vmatprep.subr.mxu0 0.0
  %3235 = vmatpush2.msra.mxu0 0.0
  %3236 = vmatprep.subr.mxu0 0.0
  %3237 = vmatpush2.msra.mxu0 0.0
  %3238 = vmatprep.subr.mxu0 0.0
  %3239 = vmatpush2.msra.mxu0 0.0
  %3240 = vmatprep.subr.mxu0 0.0
  %3241 = vmatpush2.msra.mxu0 0.0
  %3242 = vmatprep.subr.mxu0 0.0
  %3243 = vmatpush2.msra.mxu0 0.0
  %3244 = vmatprep.subr.mxu0 0.0
  %3245 = vmatpush2.msra.mxu0 0.0
  %3246 = vmatprep.subr.mxu0 0.0
  %3247 = vmatpush2.msra.mxu0 0.0
  %3248 = vmatprep.subr.mxu0 0.0
  %3249 = vmatpush2.msra.mxu0 0.0
  %3250 = vmatprep.subr.mxu0 0.0
  %3251 = vmatpush2.msra.mxu0 0.0
  %3252 = vmatprep.subr.mxu0 0.0
  %3253 = vmatpush2.msra.mxu0 0.0
  %3254 = vmatprep.subr.mxu0 0.0
  %3255 = vmatpush2.msra.mxu0 0.0
  %3256 = vmatprep.subr.mxu0 0.0
  %3257 = vmatpush2.msra.mxu0 0.0
  %3258 = vmatprep.subr.mxu0 0.0
  %3259 = vmatpush2.msra.mxu0 0.0
  %3260 = vmatprep.mubr.f32.mxu0 0.0
  %3261 = vmatmul.mubr.f32.gmra.mxu0 %v3194
  %v3262 = vpop.f32.mrf.mxu0
  %v3263 = vadd.f32 0.0, %v3262
  %v3264 = vpop.f32.mrf.mxu0
  %v3265 = vadd.f32 0.0, %v3264
  %3266 = vdwg.mxu0
  %v3267 = vadd.f32 %v3191, %v3263
  %v3268 = vadd.f32 %v3192, %v3265
  %v3269 = vxor.u32 %v3267, 2147483648
  %v3270 = vxor.u32 %v3268, 2147483648
  %v3271 = vmul.f32 %v3269, 1.442695
  %v3272 = vpow.pop %v3271
  %v3273 = vmul.f32 %v3270, 1.442695
  %v3274 = vpow.pop %v3273
  %v3275 = vadd.f32 %v3272, 1.0
  %v3276 = vadd.f32 %v3274, 1.0
  %v3277 = vrcp.pop %v3275
  %v3278 = vmul.f32 1.0, %v3277
  %v3279 = vrcp.pop %v3276
  %v3280 = vmul.f32 1.0, %v3279
  %v3281 = vtanh.pop %v3268
  %v3282 = vmul.f32 %v3278, %v3182
  %3284 = vrot.lane.b32.xlu0 %v3281, 64
  %v3285 = vpop.permute.xlu0 %3284
  %v3287 = vmul.f32 %v3278, %v3285
  %3289 = vrot.lane.b32.xlu0 %v3287, 64
  %v3290 = vpop.permute.xlu0 %3289
  %v3292 = vadd.f32 %v3282, %v3290
  %v3293 = vtanh.pop %v3292
  %3295 = vrot.lane.b32.xlu0 %v3293, 64
  %v3296 = vpop.permute.xlu0 %3295
  %v3298 = vmul.f32 %v3280, %v3296
  %v3299 = vtanh.pop %v3298
  %v3300 = vmax.f32 %v3190, %v3299
  %v3301 = vld [vmem:[#allocation2 + $0x80] sm:$0xff]
  %v3302 = vld [vmem:[#allocation2 + $0x88] sm:$0xff]
  %v3304 = vsel %vm331, %v3298, 0
  %3306 = vmatprep.subr.mxu0 0.0
  %3307 = vmatpush1.msra.mxu0 0.0
  %3308 = vmatprep.subr.mxu0 0.0
  %3309 = vmatpush1.msra.mxu0 0.0
  %3310 = vmatprep.subr.mxu0 0.0
  %3311 = vmatpush1.msra.mxu0 0.0
  %3312 = vmatprep.subr.mxu0 0.0
  %3313 = vmatpush1.msra.mxu0 0.0
  %3314 = vmatprep.subr.mxu0 0.0
  %3315 = vmatpush1.msra.mxu0 0.0
  %3316 = vmatprep.subr.mxu0 0.0
  %3317 = vmatpush1.msra.mxu0 0.0
  %3318 = vmatprep.subr.mxu0 0.0
  %3319 = vmatpush1.msra.mxu0 0.0
  %3320 = vmatprep.subr.mxu0 0.0
  %3321 = vmatpush1.msra.mxu0 0.0
  %3322 = vmatprep.subr.mxu0 %v2219
  %3323 = vmatpush1.msra.mxu0 %v2218
  %3324 = vmatprep.subr.mxu0 %v2217
  %3325 = vmatpush1.msra.mxu0 %v2216
  %3326 = vmatprep.subr.mxu0 %v2215
  %3327 = vmatpush1.msra.mxu0 %v2214
  %3328 = vmatprep.subr.mxu0 %v2213
  %3329 = vmatpush1.msra.mxu0 %v2212
  %3330 = vmatprep.subr.mxu0 %v2211
  %3331 = vmatpush1.msra.mxu0 %v2210
  %3332 = vmatprep.subr.mxu0 %v2209
  %3333 = vmatpush1.msra.mxu0 %v2208
  %3334 = vmatprep.subr.mxu0 %v2207
  %3335 = vmatpush1.msra.mxu0 %v2206
  %3336 = vmatprep.subr.mxu0 %v2205
  %3337 = vmatpush1.msra.mxu0 %v2204
  %3338 = vmatprep.subr.mxu0 0.0
  %3339 = vmatpush2.msra.mxu0 0.0
  %3340 = vmatprep.subr.mxu0 0.0
  %3341 = vmatpush2.msra.mxu0 0.0
  %3342 = vmatprep.subr.mxu0 0.0
  %3343 = vmatpush2.msra.mxu0 0.0
  %3344 = vmatprep.subr.mxu0 0.0
  %3345 = vmatpush2.msra.mxu0 0.0
  %3346 = vmatprep.subr.mxu0 0.0
  %3347 = vmatpush2.msra.mxu0 0.0
  %3348 = vmatprep.subr.mxu0 0.0
  %3349 = vmatpush2.msra.mxu0 0.0
  %3350 = vmatprep.subr.mxu0 0.0
  %3351 = vmatpush2.msra.mxu0 0.0
  %3352 = vmatprep.subr.mxu0 0.0
  %3353 = vmatpush2.msra.mxu0 0.0
  %3354 = vmatprep.subr.mxu0 0.0
  %3355 = vmatpush2.msra.mxu0 0.0
  %3356 = vmatprep.subr.mxu0 0.0
  %3357 = vmatpush2.msra.mxu0 0.0
  %3358 = vmatprep.subr.mxu0 0.0
  %3359 = vmatpush2.msra.mxu0 0.0
  %3360 = vmatprep.subr.mxu0 0.0
  %3361 = vmatpush2.msra.mxu0 0.0
  %3362 = vmatprep.subr.mxu0 0.0
  %3363 = vmatpush2.msra.mxu0 0.0
  %3364 = vmatprep.subr.mxu0 0.0
  %3365 = vmatpush2.msra.mxu0 0.0
  %3366 = vmatprep.subr.mxu0 0.0
  %3367 = vmatpush2.msra.mxu0 0.0
  %3368 = vmatprep.subr.mxu0 0.0
  %3369 = vmatpush2.msra.mxu0 0.0
  %3370 = vmatprep.mubr.f32.mxu0 0.0
  %3371 = vmatmul.mubr.f32.gmra.mxu0 %v3304
  %v3372 = vpop.f32.mrf.mxu0
  %v3373 = vadd.f32 0.0, %v3372
  %v3374 = vpop.f32.mrf.mxu0
  %v3375 = vadd.f32 0.0, %v3374
  %3376 = vdwg.mxu0
  %v3377 = vadd.f32 %v3301, %v3373
  %v3378 = vadd.f32 %v3302, %v3375
  %v3379 = vxor.u32 %v3377, 2147483648
  %v3380 = vxor.u32 %v3378, 2147483648
  %v3381 = vmul.f32 %v3379, 1.442695
  %v3382 = vpow.pop %v3381
  %v3383 = vmul.f32 %v3380, 1.442695
  %v3384 = vpow.pop %v3383
  %v3385 = vadd.f32 %v3382, 1.0
  %v3386 = vadd.f32 %v3384, 1.0
  %v3387 = vrcp.pop %v3385
  %v3388 = vmul.f32 1.0, %v3387
  %v3389 = vrcp.pop %v3386
  %v3390 = vmul.f32 1.0, %v3389
  %v3391 = vtanh.pop %v3378
  %v3392 = vmul.f32 %v3388, %v3292
  %3394 = vrot.lane.b32.xlu0 %v3391, 64
  %v3395 = vpop.permute.xlu0 %3394
  %v3397 = vmul.f32 %v3388, %v3395
  %3399 = vrot.lane.b32.xlu0 %v3397, 64
  %v3400 = vpop.permute.xlu0 %3399
  %v3402 = vadd.f32 %v3392, %v3400
  %v3403 = vtanh.pop %v3402
  %3405 = vrot.lane.b32.xlu0 %v3403, 64
  %v3406 = vpop.permute.xlu0 %3405
  %v3408 = vmul.f32 %v3390, %v3406
  %v3409 = vtanh.pop %v3408
  %v3410 = vmax.f32 %v3300, %v3409
  %v3411 = vld [vmem:[#allocation2 + $0x90] sm:$0xff]
  %v3412 = vld [vmem:[#allocation2 + $0x98] sm:$0xff]
  %v3414 = vsel %vm331, %v3408, 0
  %3416 = vmatprep.subr.mxu0 0.0
  %3417 = vmatpush1.msra.mxu0 0.0
  %3418 = vmatprep.subr.mxu0 0.0
  %3419 = vmatpush1.msra.mxu0 0.0
  %3420 = vmatprep.subr.mxu0 0.0
  %3421 = vmatpush1.msra.mxu0 0.0
  %3422 = vmatprep.subr.mxu0 0.0
  %3423 = vmatpush1.msra.mxu0 0.0
  %3424 = vmatprep.subr.mxu0 0.0
  %3425 = vmatpush1.msra.mxu0 0.0
  %3426 = vmatprep.subr.mxu0 0.0
  %3427 = vmatpush1.msra.mxu0 0.0
  %3428 = vmatprep.subr.mxu0 0.0
  %3429 = vmatpush1.msra.mxu0 0.0
  %3430 = vmatprep.subr.mxu0 0.0
  %3431 = vmatpush1.msra.mxu0 0.0
  %3432 = vmatprep.subr.mxu0 %v2219
  %3433 = vmatpush1.msra.mxu0 %v2218
  %3434 = vmatprep.subr.mxu0 %v2217
  %3435 = vmatpush1.msra.mxu0 %v2216
  %3436 = vmatprep.subr.mxu0 %v2215
  %3437 = vmatpush1.msra.mxu0 %v2214
  %3438 = vmatprep.subr.mxu0 %v2213
  %3439 = vmatpush1.msra.mxu0 %v2212
  %3440 = vmatprep.subr.mxu0 %v2211
  %3441 = vmatpush1.msra.mxu0 %v2210
  %3442 = vmatprep.subr.mxu0 %v2209
  %3443 = vmatpush1.msra.mxu0 %v2208
  %3444 = vmatprep.subr.mxu0 %v2207
  %3445 = vmatpush1.msra.mxu0 %v2206
  %3446 = vmatprep.subr.mxu0 %v2205
  %3447 = vmatpush1.msra.mxu0 %v2204
  %3448 = vmatprep.subr.mxu0 0.0
  %3449 = vmatpush2.msra.mxu0 0.0
  %3450 = vmatprep.subr.mxu0 0.0
  %3451 = vmatpush2.msra.mxu0 0.0
  %3452 = vmatprep.subr.mxu0 0.0
  %3453 = vmatpush2.msra.mxu0 0.0
  %3454 = vmatprep.subr.mxu0 0.0
  %3455 = vmatpush2.msra.mxu0 0.0
  %3456 = vmatprep.subr.mxu0 0.0
  %3457 = vmatpush2.msra.mxu0 0.0
  %3458 = vmatprep.subr.mxu0 0.0
  %3459 = vmatpush2.msra.mxu0 0.0
  %3460 = vmatprep.subr.mxu0 0.0
  %3461 = vmatpush2.msra.mxu0 0.0
  %3462 = vmatprep.subr.mxu0 0.0
  %3463 = vmatpush2.msra.mxu0 0.0
  %3464 = vmatprep.subr.mxu0 0.0
  %3465 = vmatpush2.msra.mxu0 0.0
  %3466 = vmatprep.subr.mxu0 0.0
  %3467 = vmatpush2.msra.mxu0 0.0
  %3468 = vmatprep.subr.mxu0 0.0
  %3469 = vmatpush2.msra.mxu0 0.0
  %3470 = vmatprep.subr.mxu0 0.0
  %3471 = vmatpush2.msra.mxu0 0.0
  %3472 = vmatprep.subr.mxu0 0.0
  %3473 = vmatpush2.msra.mxu0 0.0
  %3474 = vmatprep.subr.mxu0 0.0
  %3475 = vmatpush2.msra.mxu0 0.0
  %3476 = vmatprep.subr.mxu0 0.0
  %3477 = vmatpush2.msra.mxu0 0.0
  %3478 = vmatprep.subr.mxu0 0.0
  %3479 = vmatpush2.msra.mxu0 0.0
  %3480 = vmatprep.mubr.f32.mxu0 0.0
  %3481 = vmatmul.mubr.f32.gmra.mxu0 %v3414
  %v3482 = vpop.f32.mrf.mxu0
  %v3483 = vadd.f32 0.0, %v3482
  %v3484 = vpop.f32.mrf.mxu0
  %v3485 = vadd.f32 0.0, %v3484
  %3486 = vdwg.mxu0
  %v3487 = vadd.f32 %v3411, %v3483
  %v3488 = vadd.f32 %v3412, %v3485
  %v3489 = vxor.u32 %v3487, 2147483648
  %v3490 = vxor.u32 %v3488, 2147483648
  %v3491 = vmul.f32 %v3489, 1.442695
  %v3492 = vpow.pop %v3491
  %v3493 = vmul.f32 %v3490, 1.442695
  %v3494 = vpow.pop %v3493
  %v3495 = vadd.f32 %v3492, 1.0
  %v3496 = vadd.f32 %v3494, 1.0
  %v3497 = vrcp.pop %v3495
  %v3498 = vmul.f32 1.0, %v3497
  %v3499 = vrcp.pop %v3496
  %v3500 = vmul.f32 1.0, %v3499
  %v3501 = vtanh.pop %v3488
  %v3502 = vmul.f32 %v3498, %v3402
  %3504 = vrot.lane.b32.xlu0 %v3501, 64
  %v3505 = vpop.permute.xlu0 %3504
  %v3507 = vmul.f32 %v3498, %v3505
  %3509 = vrot.lane.b32.xlu0 %v3507, 64
  %v3510 = vpop.permute.xlu0 %3509
  %v3512 = vadd.f32 %v3502, %v3510
  %v3513 = vtanh.pop %v3512
  %3515 = vrot.lane.b32.xlu0 %v3513, 64
  %v3516 = vpop.permute.xlu0 %3515
  %v3518 = vmul.f32 %v3500, %v3516
  %v3519 = vtanh.pop %v3518
  %v3520 = vmax.f32 %v3410, %v3519
  %v3521 = vld [vmem:[#allocation2 + $0xa0] sm:$0xff]
  %v3522 = vld [vmem:[#allocation2 + $0xa8] sm:$0xff]
  %v3524 = vsel %vm331, %v3518, 0
  %3526 = vmatprep.subr.mxu0 0.0
  %3527 = vmatpush1.msra.mxu0 0.0
  %3528 = vmatprep.subr.mxu0 0.0
  %3529 = vmatpush1.msra.mxu0 0.0
  %3530 = vmatprep.subr.mxu0 0.0
  %3531 = vmatpush1.msra.mxu0 0.0
  %3532 = vmatprep.subr.mxu0 0.0
  %3533 = vmatpush1.msra.mxu0 0.0
  %3534 = vmatprep.subr.mxu0 0.0
  %3535 = vmatpush1.msra.mxu0 0.0
  %3536 = vmatprep.subr.mxu0 0.0
  %3537 = vmatpush1.msra.mxu0 0.0
  %3538 = vmatprep.subr.mxu0 0.0
  %3539 = vmatpush1.msra.mxu0 0.0
  %3540 = vmatprep.subr.mxu0 0.0
  %3541 = vmatpush1.msra.mxu0 0.0
  %3542 = vmatprep.subr.mxu0 %v2219
  %3543 = vmatpush1.msra.mxu0 %v2218
  %3544 = vmatprep.subr.mxu0 %v2217
  %3545 = vmatpush1.msra.mxu0 %v2216
  %3546 = vmatprep.subr.mxu0 %v2215
  %3547 = vmatpush1.msra.mxu0 %v2214
  %3548 = vmatprep.subr.mxu0 %v2213
  %3549 = vmatpush1.msra.mxu0 %v2212
  %3550 = vmatprep.subr.mxu0 %v2211
  %3551 = vmatpush1.msra.mxu0 %v2210
  %3552 = vmatprep.subr.mxu0 %v2209
  %3553 = vmatpush1.msra.mxu0 %v2208
  %3554 = vmatprep.subr.mxu0 %v2207
  %3555 = vmatpush1.msra.mxu0 %v2206
  %3556 = vmatprep.subr.mxu0 %v2205
  %3557 = vmatpush1.msra.mxu0 %v2204
  %3558 = vmatprep.subr.mxu0 0.0
  %3559 = vmatpush2.msra.mxu0 0.0
  %3560 = vmatprep.subr.mxu0 0.0
  %3561 = vmatpush2.msra.mxu0 0.0
  %3562 = vmatprep.subr.mxu0 0.0
  %3563 = vmatpush2.msra.mxu0 0.0
  %3564 = vmatprep.subr.mxu0 0.0
  %3565 = vmatpush2.msra.mxu0 0.0
  %3566 = vmatprep.subr.mxu0 0.0
  %3567 = vmatpush2.msra.mxu0 0.0
  %3568 = vmatprep.subr.mxu0 0.0
  %3569 = vmatpush2.msra.mxu0 0.0
  %3570 = vmatprep.subr.mxu0 0.0
  %3571 = vmatpush2.msra.mxu0 0.0
  %3572 = vmatprep.subr.mxu0 0.0
  %3573 = vmatpush2.msra.mxu0 0.0
  %3574 = vmatprep.subr.mxu0 0.0
  %3575 = vmatpush2.msra.mxu0 0.0
  %3576 = vmatprep.subr.mxu0 0.0
  %3577 = vmatpush2.msra.mxu0 0.0
  %3578 = vmatprep.subr.mxu0 0.0
  %3579 = vmatpush2.msra.mxu0 0.0
  %3580 = vmatprep.subr.mxu0 0.0
  %3581 = vmatpush2.msra.mxu0 0.0
  %3582 = vmatprep.subr.mxu0 0.0
  %3583 = vmatpush2.msra.mxu0 0.0
  %3584 = vmatprep.subr.mxu0 0.0
  %3585 = vmatpush2.msra.mxu0 0.0
  %3586 = vmatprep.subr.mxu0 0.0
  %3587 = vmatpush2.msra.mxu0 0.0
  %3588 = vmatprep.subr.mxu0 0.0
  %3589 = vmatpush2.msra.mxu0 0.0
  %3590 = vmatprep.mubr.f32.mxu0 0.0
  %3591 = vmatmul.mubr.f32.gmra.mxu0 %v3524
  %v3592 = vpop.f32.mrf.mxu0
  %v3593 = vadd.f32 0.0, %v3592
  %v3594 = vpop.f32.mrf.mxu0
  %v3595 = vadd.f32 0.0, %v3594
  %3596 = vdwg.mxu0
  %v3597 = vadd.f32 %v3521, %v3593
  %v3598 = vadd.f32 %v3522, %v3595
  %v3599 = vxor.u32 %v3597, 2147483648
  %v3600 = vxor.u32 %v3598, 2147483648
  %v3601 = vmul.f32 %v3599, 1.442695
  %v3602 = vpow.pop %v3601
  %v3603 = vmul.f32 %v3600, 1.442695
  %v3604 = vpow.pop %v3603
  %v3605 = vadd.f32 %v3602, 1.0
  %v3606 = vadd.f32 %v3604, 1.0
  %v3607 = vrcp.pop %v3605
  %v3608 = vmul.f32 1.0, %v3607
  %v3609 = vrcp.pop %v3606
  %v3610 = vmul.f32 1.0, %v3609
  %v3611 = vtanh.pop %v3598
  %v3612 = vmul.f32 %v3608, %v3512
  %3614 = vrot.lane.b32.xlu0 %v3611, 64
  %v3615 = vpop.permute.xlu0 %3614
  %v3617 = vmul.f32 %v3608, %v3615
  %3619 = vrot.lane.b32.xlu0 %v3617, 64
  %v3620 = vpop.permute.xlu0 %3619
  %v3622 = vadd.f32 %v3612, %v3620
  %v3623 = vtanh.pop %v3622
  %3625 = vrot.lane.b32.xlu0 %v3623, 64
  %v3626 = vpop.permute.xlu0 %3625
  %v3628 = vmul.f32 %v3610, %v3626
  %v3629 = vtanh.pop %v3628
  %v3630 = vmax.f32 %v3520, %v3629
  %v3631 = vld [vmem:[#allocation2 + $0xb0] sm:$0xff]
  %v3632 = vld [vmem:[#allocation2 + $0xb8] sm:$0xff]
  %v3634 = vsel %vm331, %v3628, 0
  %3636 = vmatprep.subr.mxu0 0.0
  %3637 = vmatpush1.msra.mxu0 0.0
  %3638 = vmatprep.subr.mxu0 0.0
  %3639 = vmatpush1.msra.mxu0 0.0
  %3640 = vmatprep.subr.mxu0 0.0
  %3641 = vmatpush1.msra.mxu0 0.0
  %3642 = vmatprep.subr.mxu0 0.0
  %3643 = vmatpush1.msra.mxu0 0.0
  %3644 = vmatprep.subr.mxu0 0.0
  %3645 = vmatpush1.msra.mxu0 0.0
  %3646 = vmatprep.subr.mxu0 0.0
  %3647 = vmatpush1.msra.mxu0 0.0
  %3648 = vmatprep.subr.mxu0 0.0
  %3649 = vmatpush1.msra.mxu0 0.0
  %3650 = vmatprep.subr.mxu0 0.0
  %3651 = vmatpush1.msra.mxu0 0.0
  %3652 = vmatprep.subr.mxu0 %v2219
  %3653 = vmatpush1.msra.mxu0 %v2218
  %3654 = vmatprep.subr.mxu0 %v2217
  %3655 = vmatpush1.msra.mxu0 %v2216
  %3656 = vmatprep.subr.mxu0 %v2215
  %3657 = vmatpush1.msra.mxu0 %v2214
  %3658 = vmatprep.subr.mxu0 %v2213
  %3659 = vmatpush1.msra.mxu0 %v2212
  %3660 = vmatprep.subr.mxu0 %v2211
  %3661 = vmatpush1.msra.mxu0 %v2210
  %3662 = vmatprep.subr.mxu0 %v2209
  %3663 = vmatpush1.msra.mxu0 %v2208
  %3664 = vmatprep.subr.mxu0 %v2207
  %3665 = vmatpush1.msra.mxu0 %v2206
  %3666 = vmatprep.subr.mxu0 %v2205
  %3667 = vmatpush1.msra.mxu0 %v2204
  %3668 = vmatprep.subr.mxu0 0.0
  %3669 = vmatpush2.msra.mxu0 0.0
  %3670 = vmatprep.subr.mxu0 0.0
  %3671 = vmatpush2.msra.mxu0 0.0
  %3672 = vmatprep.subr.mxu0 0.0
  %3673 = vmatpush2.msra.mxu0 0.0
  %3674 = vmatprep.subr.mxu0 0.0
  %3675 = vmatpush2.msra.mxu0 0.0
  %3676 = vmatprep.subr.mxu0 0.0
  %3677 = vmatpush2.msra.mxu0 0.0
  %3678 = vmatprep.subr.mxu0 0.0
  %3679 = vmatpush2.msra.mxu0 0.0
  %3680 = vmatprep.subr.mxu0 0.0
  %3681 = vmatpush2.msra.mxu0 0.0
  %3682 = vmatprep.subr.mxu0 0.0
  %3683 = vmatpush2.msra.mxu0 0.0
  %3684 = vmatprep.subr.mxu0 0.0
  %3685 = vmatpush2.msra.mxu0 0.0
  %3686 = vmatprep.subr.mxu0 0.0
  %3687 = vmatpush2.msra.mxu0 0.0
  %3688 = vmatprep.subr.mxu0 0.0
  %3689 = vmatpush2.msra.mxu0 0.0
  %3690 = vmatprep.subr.mxu0 0.0
  %3691 = vmatpush2.msra.mxu0 0.0
  %3692 = vmatprep.subr.mxu0 0.0
  %3693 = vmatpush2.msra.mxu0 0.0
  %3694 = vmatprep.subr.mxu0 0.0
  %3695 = vmatpush2.msra.mxu0 0.0
  %3696 = vmatprep.subr.mxu0 0.0
  %3697 = vmatpush2.msra.mxu0 0.0
  %3698 = vmatprep.subr.mxu0 0.0
  %3699 = vmatpush2.msra.mxu0 0.0
  %3700 = vmatprep.mubr.f32.mxu0 0.0
  %3701 = vmatmul.mubr.f32.gmra.mxu0 %v3634
  %v3702 = vpop.f32.mrf.mxu0
  %v3703 = vadd.f32 0.0, %v3702
  %v3704 = vpop.f32.mrf.mxu0
  %v3705 = vadd.f32 0.0, %v3704
  %3706 = vdwg.mxu0
  %v3707 = vadd.f32 %v3631, %v3703
  %v3708 = vadd.f32 %v3632, %v3705
  %v3709 = vxor.u32 %v3707, 2147483648
  %v3710 = vxor.u32 %v3708, 2147483648
  %v3711 = vmul.f32 %v3709, 1.442695
  %v3712 = vpow.pop %v3711
  %v3713 = vmul.f32 %v3710, 1.442695
  %v3714 = vpow.pop %v3713
  %v3715 = vadd.f32 %v3712, 1.0
  %v3716 = vadd.f32 %v3714, 1.0
  %v3717 = vrcp.pop %v3715
  %v3718 = vmul.f32 1.0, %v3717
  %v3719 = vrcp.pop %v3716
  %v3720 = vmul.f32 1.0, %v3719
  %v3721 = vtanh.pop %v3708
  %v3722 = vmul.f32 %v3718, %v3622
  %3724 = vrot.lane.b32.xlu0 %v3721, 64
  %v3725 = vpop.permute.xlu0 %3724
  %v3727 = vmul.f32 %v3718, %v3725
  %3729 = vrot.lane.b32.xlu0 %v3727, 64
  %v3730 = vpop.permute.xlu0 %3729
  %v3732 = vadd.f32 %v3722, %v3730
  %v3733 = vtanh.pop %v3732
  %3735 = vrot.lane.b32.xlu0 %v3733, 64
  %v3736 = vpop.permute.xlu0 %3735
  %v3738 = vmul.f32 %v3720, %v3736
  %v3739 = vtanh.pop %v3738
  %v3740 = vmax.f32 %v3630, %v3739
  %v3741 = vld [vmem:[#allocation2 + $0xc0] sm:$0xff]
  %v3742 = vld [vmem:[#allocation2 + $0xc8] sm:$0xff]
  %v3744 = vsel %vm331, %v3738, 0
  %3746 = vmatprep.subr.mxu0 0.0
  %3747 = vmatpush1.msra.mxu0 0.0
  %3748 = vmatprep.subr.mxu0 0.0
  %3749 = vmatpush1.msra.mxu0 0.0
  %3750 = vmatprep.subr.mxu0 0.0
  %3751 = vmatpush1.msra.mxu0 0.0
  %3752 = vmatprep.subr.mxu0 0.0
  %3753 = vmatpush1.msra.mxu0 0.0
  %3754 = vmatprep.subr.mxu0 0.0
  %3755 = vmatpush1.msra.mxu0 0.0
  %3756 = vmatprep.subr.mxu0 0.0
  %3757 = vmatpush1.msra.mxu0 0.0
  %3758 = vmatprep.subr.mxu0 0.0
  %3759 = vmatpush1.msra.mxu0 0.0
  %3760 = vmatprep.subr.mxu0 0.0
  %3761 = vmatpush1.msra.mxu0 0.0
  %3762 = vmatprep.subr.mxu0 %v2219
  %3763 = vmatpush1.msra.mxu0 %v2218
  %3764 = vmatprep.subr.mxu0 %v2217
  %3765 = vmatpush1.msra.mxu0 %v2216
  %3766 = vmatprep.subr.mxu0 %v2215
  %3767 = vmatpush1.msra.mxu0 %v2214
  %3768 = vmatprep.subr.mxu0 %v2213
  %3769 = vmatpush1.msra.mxu0 %v2212
  %3770 = vmatprep.subr.mxu0 %v2211
  %3771 = vmatpush1.msra.mxu0 %v2210
  %3772 = vmatprep.subr.mxu0 %v2209
  %3773 = vmatpush1.msra.mxu0 %v2208
  %3774 = vmatprep.subr.mxu0 %v2207
  %3775 = vmatpush1.msra.mxu0 %v2206
  %3776 = vmatprep.subr.mxu0 %v2205
  %3777 = vmatpush1.msra.mxu0 %v2204
  %3778 = vmatprep.subr.mxu0 0.0
  %3779 = vmatpush2.msra.mxu0 0.0
  %3780 = vmatprep.subr.mxu0 0.0
  %3781 = vmatpush2.msra.mxu0 0.0
  %3782 = vmatprep.subr.mxu0 0.0
  %3783 = vmatpush2.msra.mxu0 0.0
  %3784 = vmatprep.subr.mxu0 0.0
  %3785 = vmatpush2.msra.mxu0 0.0
  %3786 = vmatprep.subr.mxu0 0.0
  %3787 = vmatpush2.msra.mxu0 0.0
  %3788 = vmatprep.subr.mxu0 0.0
  %3789 = vmatpush2.msra.mxu0 0.0
  %3790 = vmatprep.subr.mxu0 0.0
  %3791 = vmatpush2.msra.mxu0 0.0
  %3792 = vmatprep.subr.mxu0 0.0
  %3793 = vmatpush2.msra.mxu0 0.0
  %3794 = vmatprep.subr.mxu0 0.0
  %3795 = vmatpush2.msra.mxu0 0.0
  %3796 = vmatprep.subr.mxu0 0.0
  %3797 = vmatpush2.msra.mxu0 0.0
  %3798 = vmatprep.subr.mxu0 0.0
  %3799 = vmatpush2.msra.mxu0 0.0
  %3800 = vmatprep.subr.mxu0 0.0
  %3801 = vmatpush2.msra.mxu0 0.0
  %3802 = vmatprep.subr.mxu0 0.0
  %3803 = vmatpush2.msra.mxu0 0.0
  %3804 = vmatprep.subr.mxu0 0.0
  %3805 = vmatpush2.msra.mxu0 0.0
  %3806 = vmatprep.subr.mxu0 0.0
  %3807 = vmatpush2.msra.mxu0 0.0
  %3808 = vmatprep.subr.mxu0 0.0
  %3809 = vmatpush2.msra.mxu0 0.0
  %3810 = vmatprep.mubr.f32.mxu0 0.0
  %3811 = vmatmul.mubr.f32.gmra.mxu0 %v3744
  %v3812 = vpop.f32.mrf.mxu0
  %v3813 = vadd.f32 0.0, %v3812
  %v3814 = vpop.f32.mrf.mxu0
  %v3815 = vadd.f32 0.0, %v3814
  %3816 = vdwg.mxu0
  %v3817 = vadd.f32 %v3741, %v3813
  %v3818 = vadd.f32 %v3742, %v3815
  %v3819 = vxor.u32 %v3817, 2147483648
  %v3820 = vxor.u32 %v3818, 2147483648
  %v3821 = vmul.f32 %v3819, 1.442695
  %v3822 = vpow.pop %v3821
  %v3823 = vmul.f32 %v3820, 1.442695
  %v3824 = vpow.pop %v3823
  %v3825 = vadd.f32 %v3822, 1.0
  %v3826 = vadd.f32 %v3824, 1.0
  %v3827 = vrcp.pop %v3825
  %v3828 = vmul.f32 1.0, %v3827
  %v3829 = vrcp.pop %v3826
  %v3830 = vmul.f32 1.0, %v3829
  %v3831 = vtanh.pop %v3818
  %v3832 = vmul.f32 %v3828, %v3732
  %3834 = vrot.lane.b32.xlu0 %v3831, 64
  %v3835 = vpop.permute.xlu0 %3834
  %v3837 = vmul.f32 %v3828, %v3835
  %3839 = vrot.lane.b32.xlu0 %v3837, 64
  %v3840 = vpop.permute.xlu0 %3839
  %v3842 = vadd.f32 %v3832, %v3840
  %v3843 = vtanh.pop %v3842
  %3845 = vrot.lane.b32.xlu0 %v3843, 64
  %v3846 = vpop.permute.xlu0 %3845
  %v3848 = vmul.f32 %v3830, %v3846
  %v3849 = vtanh.pop %v3848
  %v3850 = vmax.f32 %v3740, %v3849
  %v3851 = vld [vmem:[#allocation2 + $0xd0] sm:$0xff]
  %v3852 = vld [vmem:[#allocation2 + $0xd8] sm:$0xff]
  %v3854 = vsel %vm331, %v3848, 0
  %3856 = vmatprep.subr.mxu0 0.0
  %3857 = vmatpush1.msra.mxu0 0.0
  %3858 = vmatprep.subr.mxu0 0.0
  %3859 = vmatpush1.msra.mxu0 0.0
  %3860 = vmatprep.subr.mxu0 0.0
  %3861 = vmatpush1.msra.mxu0 0.0
  %3862 = vmatprep.subr.mxu0 0.0
  %3863 = vmatpush1.msra.mxu0 0.0
  %3864 = vmatprep.subr.mxu0 0.0
  %3865 = vmatpush1.msra.mxu0 0.0
  %3866 = vmatprep.subr.mxu0 0.0
  %3867 = vmatpush1.msra.mxu0 0.0
  %3868 = vmatprep.subr.mxu0 0.0
  %3869 = vmatpush1.msra.mxu0 0.0
  %3870 = vmatprep.subr.mxu0 0.0
  %3871 = vmatpush1.msra.mxu0 0.0
  %3872 = vmatprep.subr.mxu0 %v2219
  %3873 = vmatpush1.msra.mxu0 %v2218
  %3874 = vmatprep.subr.mxu0 %v2217
  %3875 = vmatpush1.msra.mxu0 %v2216
  %3876 = vmatprep.subr.mxu0 %v2215
  %3877 = vmatpush1.msra.mxu0 %v2214
  %3878 = vmatprep.subr.mxu0 %v2213
  %3879 = vmatpush1.msra.mxu0 %v2212
  %3880 = vmatprep.subr.mxu0 %v2211
  %3881 = vmatpush1.msra.mxu0 %v2210
  %3882 = vmatprep.subr.mxu0 %v2209
  %3883 = vmatpush1.msra.mxu0 %v2208
  %3884 = vmatprep.subr.mxu0 %v2207
  %3885 = vmatpush1.msra.mxu0 %v2206
  %3886 = vmatprep.subr.mxu0 %v2205
  %3887 = vmatpush1.msra.mxu0 %v2204
  %3888 = vmatprep.subr.mxu0 0.0
  %3889 = vmatpush2.msra.mxu0 0.0
  %3890 = vmatprep.subr.mxu0 0.0
  %3891 = vmatpush2.msra.mxu0 0.0
  %3892 = vmatprep.subr.mxu0 0.0
  %3893 = vmatpush2.msra.mxu0 0.0
  %3894 = vmatprep.subr.mxu0 0.0
  %3895 = vmatpush2.msra.mxu0 0.0
  %3896 = vmatprep.subr.mxu0 0.0
  %3897 = vmatpush2.msra.mxu0 0.0
  %3898 = vmatprep.subr.mxu0 0.0
  %3899 = vmatpush2.msra.mxu0 0.0
  %3900 = vmatprep.subr.mxu0 0.0
  %3901 = vmatpush2.msra.mxu0 0.0
  %3902 = vmatprep.subr.mxu0 0.0
  %3903 = vmatpush2.msra.mxu0 0.0
  %3904 = vmatprep.subr.mxu0 0.0
  %3905 = vmatpush2.msra.mxu0 0.0
  %3906 = vmatprep.subr.mxu0 0.0
  %3907 = vmatpush2.msra.mxu0 0.0
  %3908 = vmatprep.subr.mxu0 0.0
  %3909 = vmatpush2.msra.mxu0 0.0
  %3910 = vmatprep.subr.mxu0 0.0
  %3911 = vmatpush2.msra.mxu0 0.0
  %3912 = vmatprep.subr.mxu0 0.0
  %3913 = vmatpush2.msra.mxu0 0.0
  %3914 = vmatprep.subr.mxu0 0.0
  %3915 = vmatpush2.msra.mxu0 0.0
  %3916 = vmatprep.subr.mxu0 0.0
  %3917 = vmatpush2.msra.mxu0 0.0
  %3918 = vmatprep.subr.mxu0 0.0
  %3919 = vmatpush2.msra.mxu0 0.0
  %3920 = vmatprep.mubr.f32.mxu0 0.0
  %3921 = vmatmul.mubr.f32.gmra.mxu0 %v3854
  %v3922 = vpop.f32.mrf.mxu0
  %v3923 = vadd.f32 0.0, %v3922
  %v3924 = vpop.f32.mrf.mxu0
  %v3925 = vadd.f32 0.0, %v3924
  %3926 = vdwg.mxu0
  %v3927 = vadd.f32 %v3851, %v3923
  %v3928 = vadd.f32 %v3852, %v3925
  %v3929 = vxor.u32 %v3927, 2147483648
  %v3930 = vxor.u32 %v3928, 2147483648
  %v3931 = vmul.f32 %v3929, 1.442695
  %v3932 = vpow.pop %v3931
  %v3933 = vmul.f32 %v3930, 1.442695
  %v3934 = vpow.pop %v3933
  %v3935 = vadd.f32 %v3932, 1.0
  %v3936 = vadd.f32 %v3934, 1.0
  %v3937 = vrcp.pop %v3935
  %v3938 = vmul.f32 1.0, %v3937
  %v3939 = vrcp.pop %v3936
  %v3940 = vmul.f32 1.0, %v3939
  %v3941 = vtanh.pop %v3928
  %v3942 = vmul.f32 %v3938, %v3842
  %3944 = vrot.lane.b32.xlu0 %v3941, 64
  %v3945 = vpop.permute.xlu0 %3944
  %v3947 = vmul.f32 %v3938, %v3945
  %3949 = vrot.lane.b32.xlu0 %v3947, 64
  %v3950 = vpop.permute.xlu0 %3949
  %v3952 = vadd.f32 %v3942, %v3950
  %v3953 = vtanh.pop %v3952
  %3955 = vrot.lane.b32.xlu0 %v3953, 64
  %v3956 = vpop.permute.xlu0 %3955
  %v3958 = vmul.f32 %v3940, %v3956
  %v3959 = vtanh.pop %v3958
  %v3960 = vmax.f32 %v3850, %v3959
  %v3961 = vld [vmem:[#allocation2 + $0xe0] sm:$0xff]
  %v3962 = vld [vmem:[#allocation2 + $0xe8] sm:$0xff]
  %v3964 = vsel %vm331, %v3958, 0
  %3966 = vmatprep.subr.mxu0 0.0
  %3967 = vmatpush1.msra.mxu0 0.0
  %3968 = vmatprep.subr.mxu0 0.0
  %3969 = vmatpush1.msra.mxu0 0.0
  %3970 = vmatprep.subr.mxu0 0.0
  %3971 = vmatpush1.msra.mxu0 0.0
  %3972 = vmatprep.subr.mxu0 0.0
  %3973 = vmatpush1.msra.mxu0 0.0
  %3974 = vmatprep.subr.mxu0 0.0
  %3975 = vmatpush1.msra.mxu0 0.0
  %3976 = vmatprep.subr.mxu0 0.0
  %3977 = vmatpush1.msra.mxu0 0.0
  %3978 = vmatprep.subr.mxu0 0.0
  %3979 = vmatpush1.msra.mxu0 0.0
  %3980 = vmatprep.subr.mxu0 0.0
  %3981 = vmatpush1.msra.mxu0 0.0
  %3982 = vmatprep.subr.mxu0 %v2219
  %3983 = vmatpush1.msra.mxu0 %v2218
  %3984 = vmatprep.subr.mxu0 %v2217
  %3985 = vmatpush1.msra.mxu0 %v2216
  %3986 = vmatprep.subr.mxu0 %v2215
  %3987 = vmatpush1.msra.mxu0 %v2214
  %3988 = vmatprep.subr.mxu0 %v2213
  %3989 = vmatpush1.msra.mxu0 %v2212
  %3990 = vmatprep.subr.mxu0 %v2211
  %3991 = vmatpush1.msra.mxu0 %v2210
  %3992 = vmatprep.subr.mxu0 %v2209
  %3993 = vmatpush1.msra.mxu0 %v2208
  %3994 = vmatprep.subr.mxu0 %v2207
  %3995 = vmatpush1.msra.mxu0 %v2206
  %3996 = vmatprep.subr.mxu0 %v2205
  %3997 = vmatpush1.msra.mxu0 %v2204
  %3998 = vmatprep.subr.mxu0 0.0
  %3999 = vmatpush2.msra.mxu0 0.0
  %4000 = vmatprep.subr.mxu0 0.0
  %4001 = vmatpush2.msra.mxu0 0.0
  %4002 = vmatprep.subr.mxu0 0.0
  %4003 = vmatpush2.msra.mxu0 0.0
  %4004 = vmatprep.subr.mxu0 0.0
  %4005 = vmatpush2.msra.mxu0 0.0
  %4006 = vmatprep.subr.mxu0 0.0
  %4007 = vmatpush2.msra.mxu0 0.0
  %4008 = vmatprep.subr.mxu0 0.0
  %4009 = vmatpush2.msra.mxu0 0.0
  %4010 = vmatprep.subr.mxu0 0.0
  %4011 = vmatpush2.msra.mxu0 0.0
  %4012 = vmatprep.subr.mxu0 0.0
  %4013 = vmatpush2.msra.mxu0 0.0
  %4014 = vmatprep.subr.mxu0 0.0
  %4015 = vmatpush2.msra.mxu0 0.0
  %4016 = vmatprep.subr.mxu0 0.0
  %4017 = vmatpush2.msra.mxu0 0.0
  %4018 = vmatprep.subr.mxu0 0.0
  %4019 = vmatpush2.msra.mxu0 0.0
  %4020 = vmatprep.subr.mxu0 0.0
  %4021 = vmatpush2.msra.mxu0 0.0
  %4022 = vmatprep.subr.mxu0 0.0
  %4023 = vmatpush2.msra.mxu0 0.0
  %4024 = vmatprep.subr.mxu0 0.0
  %4025 = vmatpush2.msra.mxu0 0.0
  %4026 = vmatprep.subr.mxu0 0.0
  %4027 = vmatpush2.msra.mxu0 0.0
  %4028 = vmatprep.subr.mxu0 0.0
  %4029 = vmatpush2.msra.mxu0 0.0
  %4030 = vmatprep.mubr.f32.mxu0 0.0
  %4031 = vmatmul.mubr.f32.gmra.mxu0 %v3964
  %v4032 = vpop.f32.mrf.mxu0
  %v4033 = vadd.f32 0.0, %v4032
  %v4034 = vpop.f32.mrf.mxu0
  %v4035 = vadd.f32 0.0, %v4034
  %4036 = vdwg.mxu0
  %v4037 = vadd.f32 %v3961, %v4033
  %v4038 = vadd.f32 %v3962, %v4035
  %v4039 = vxor.u32 %v4037, 2147483648
  %v4040 = vxor.u32 %v4038, 2147483648
  %v4041 = vmul.f32 %v4039, 1.442695
  %v4042 = vpow.pop %v4041
  %v4043 = vmul.f32 %v4040, 1.442695
  %v4044 = vpow.pop %v4043
  %v4045 = vadd.f32 %v4042, 1.0
  %v4046 = vadd.f32 %v4044, 1.0
  %v4047 = vrcp.pop %v4045
  %v4048 = vmul.f32 1.0, %v4047
  %v4049 = vrcp.pop %v4046
  %v4050 = vmul.f32 1.0, %v4049
  %v4051 = vtanh.pop %v4038
  %v4052 = vmul.f32 %v4048, %v3952
  %4054 = vrot.lane.b32.xlu0 %v4051, 64
  %v4055 = vpop.permute.xlu0 %4054
  %v4057 = vmul.f32 %v4048, %v4055
  %4059 = vrot.lane.b32.xlu0 %v4057, 64
  %v4060 = vpop.permute.xlu0 %4059
  %v4062 = vadd.f32 %v4052, %v4060
  %v4063 = vtanh.pop %v4062
  %4065 = vrot.lane.b32.xlu0 %v4063, 64
  %v4066 = vpop.permute.xlu0 %4065
  %v4068 = vmul.f32 %v4050, %v4066
  %v4069 = vtanh.pop %v4068
  %v4070 = vmax.f32 %v3960, %v4069
  %v4071 = vld [vmem:[#allocation2 + $0xf0] sm:$0xff]
  %v4072 = vld [vmem:[#allocation2 + $0xf8] sm:$0xff]
  %v4074 = vsel %vm331, %v4068, 0
  %4076 = vmatprep.subr.mxu0 0.0
  %4077 = vmatpush1.msra.mxu0 0.0
  %4078 = vmatprep.subr.mxu0 0.0
  %4079 = vmatpush1.msra.mxu0 0.0
  %4080 = vmatprep.subr.mxu0 0.0
  %4081 = vmatpush1.msra.mxu0 0.0
  %4082 = vmatprep.subr.mxu0 0.0
  %4083 = vmatpush1.msra.mxu0 0.0
  %4084 = vmatprep.subr.mxu0 0.0
  %4085 = vmatpush1.msra.mxu0 0.0
  %4086 = vmatprep.subr.mxu0 0.0
  %4087 = vmatpush1.msra.mxu0 0.0
  %4088 = vmatprep.subr.mxu0 0.0
  %4089 = vmatpush1.msra.mxu0 0.0
  %4090 = vmatprep.subr.mxu0 0.0
  %4091 = vmatpush1.msra.mxu0 0.0
  %4092 = vmatprep.subr.mxu0 %v2219
  %4093 = vmatpush1.msra.mxu0 %v2218
  %4094 = vmatprep.subr.mxu0 %v2217
  %4095 = vmatpush1.msra.mxu0 %v2216
  %4096 = vmatprep.subr.mxu0 %v2215
  %4097 = vmatpush1.msra.mxu0 %v2214
  %4098 = vmatprep.subr.mxu0 %v2213
  %4099 = vmatpush1.msra.mxu0 %v2212
  %4100 = vmatprep.subr.mxu0 %v2211
  %4101 = vmatpush1.msra.mxu0 %v2210
  %4102 = vmatprep.subr.mxu0 %v2209
  %4103 = vmatpush1.msra.mxu0 %v2208
  %4104 = vmatprep.subr.mxu0 %v2207
  %4105 = vmatpush1.msra.mxu0 %v2206
  %4106 = vmatprep.subr.mxu0 %v2205
  %4107 = vmatpush1.msra.mxu0 %v2204
  %4108 = vmatprep.subr.mxu0 0.0
  %4109 = vmatpush2.msra.mxu0 0.0
  %4110 = vmatprep.subr.mxu0 0.0
  %4111 = vmatpush2.msra.mxu0 0.0
  %4112 = vmatprep.subr.mxu0 0.0
  %4113 = vmatpush2.msra.mxu0 0.0
  %4114 = vmatprep.subr.mxu0 0.0
  %4115 = vmatpush2.msra.mxu0 0.0
  %4116 = vmatprep.subr.mxu0 0.0
  %4117 = vmatpush2.msra.mxu0 0.0
  %4118 = vmatprep.subr.mxu0 0.0
  %4119 = vmatpush2.msra.mxu0 0.0
  %4120 = vmatprep.subr.mxu0 0.0
  %4121 = vmatpush2.msra.mxu0 0.0
  %4122 = vmatprep.subr.mxu0 0.0
  %4123 = vmatpush2.msra.mxu0 0.0
  %4124 = vmatprep.subr.mxu0 0.0
  %4125 = vmatpush2.msra.mxu0 0.0
  %4126 = vmatprep.subr.mxu0 0.0
  %4127 = vmatpush2.msra.mxu0 0.0
  %4128 = vmatprep.subr.mxu0 0.0
  %4129 = vmatpush2.msra.mxu0 0.0
  %4130 = vmatprep.subr.mxu0 0.0
  %4131 = vmatpush2.msra.mxu0 0.0
  %4132 = vmatprep.subr.mxu0 0.0
  %4133 = vmatpush2.msra.mxu0 0.0
  %4134 = vmatprep.subr.mxu0 0.0
  %4135 = vmatpush2.msra.mxu0 0.0
  %4136 = vmatprep.subr.mxu0 0.0
  %4137 = vmatpush2.msra.mxu0 0.0
  %4138 = vmatprep.subr.mxu0 0.0
  %4139 = vmatpush2.msra.mxu0 0.0
  %4140 = vmatprep.mubr.f32.mxu0 0.0
  %4141 = vmatmul.mubr.f32.gmra.mxu0 %v4074
  %v4142 = vpop.f32.mrf.mxu0
  %v4143 = vadd.f32 0.0, %v4142
  %v4144 = vpop.f32.mrf.mxu0
  %v4145 = vadd.f32 0.0, %v4144
  %4146 = vdwg.mxu0
  %v4147 = vadd.f32 %v4071, %v4143
  %v4148 = vadd.f32 %v4072, %v4145
  %v4149 = vxor.u32 %v4147, 2147483648
  %v4150 = vxor.u32 %v4148, 2147483648
  %v4151 = vmul.f32 %v4149, 1.442695
  %v4152 = vpow.pop %v4151
  %v4153 = vmul.f32 %v4150, 1.442695
  %v4154 = vpow.pop %v4153
  %v4155 = vadd.f32 %v4152, 1.0
  %v4156 = vadd.f32 %v4154, 1.0
  %v4157 = vrcp.pop %v4155
  %v4158 = vmul.f32 1.0, %v4157
  %v4159 = vrcp.pop %v4156
  %v4160 = vmul.f32 1.0, %v4159
  %v4161 = vtanh.pop %v4148
  %v4162 = vmul.f32 %v4158, %v4062
  %4164 = vrot.lane.b32.xlu0 %v4161, 64
  %v4165 = vpop.permute.xlu0 %4164
  %v4167 = vmul.f32 %v4158, %v4165
  %4169 = vrot.lane.b32.xlu0 %v4167, 64
  %v4170 = vpop.permute.xlu0 %4169
  %v4172 = vadd.f32 %v4162, %v4170
  %v4173 = vtanh.pop %v4172
  %4175 = vrot.lane.b32.xlu0 %v4173, 64
  %v4176 = vpop.permute.xlu0 %4175
  %v4178 = vmul.f32 %v4160, %v4176
  %v4179 = vtanh.pop %v4178
  %v4180 = vmax.f32 %v4070, %v4179
  %s4181 = scalar_lea.vmem %s10, 16
  %4182 = vst.msk [vmem:[%s4181] sm:$0xff] %vm87, %v4178
  %4184 = vrot.lane.b32.xlu0 %v4178, 96
  %v4185 = vpop.permute.xlu0 %4184
  %s4187 = scalar_lea.vmem %s10, 24
  %4188 = vst.msk [vmem:[%s4187] sm:$0xff] %vm87, %v4185
  %4190 = vrot.lane.b32.xlu0 %v4172, 64
  %v4191 = vpop.permute.xlu0 %4190
  %s4193 = scalar_lea.vmem %s11, 16
  %4194 = vst.msk [vmem:[%s4193] sm:$0xff] %vm87, %v4191
  %4195 = vrot.lane.b32.xlu0 %v4172, 32
  %v4196 = vpop.permute.xlu0 %4195
  %s4198 = scalar_lea.vmem %s11, 24
  %4199 = vst.msk [vmem:[%s4198] sm:$0xff] %vm87, %v4196
  %v4200 = vtanh.pop %v4180
  %v4201 = vld [vmem:[%s7] sm:$0xff]
  %v4202 = vld [vmem:[%s7 + $0x8] sm:$0xff]
  %v4203 = vld [vmem:[%s7 + $0x10] sm:$0xff]
  %v4204 = vld [vmem:[%s7 + $0x18] sm:$0xff]
  %v4205 = vld [vmem:[%s7 + $0x20] sm:$0xff]
  %v4206 = vld [vmem:[%s7 + $0x28] sm:$0xff]
  %v4207 = vld [vmem:[%s7 + $0x30] sm:$0xff]
  %v4208 = vld [vmem:[%s7 + $0x38] sm:$0xff]
  %v4209 = vld [vmem:[%s8] sm:$0x1]
  %v4211 = vlaneseq
  %v4212 = vshrl.u32 %v4211, 7
  %v4213 = vsub.s32 0, %v4212
  %v4214 = vrot.slane %v4209, %v4213
  %v4217 = vsel %vm331, %v4200, 0
  %4219 = vmatprep.subr.mxu0 0.0
  %4220 = vmatpush1.msra.mxu0 0.0
  %4221 = vmatprep.subr.mxu0 0.0
  %4222 = vmatpush1.msra.mxu0 0.0
  %4223 = vmatprep.subr.mxu0 0.0
  %4224 = vmatpush1.msra.mxu0 0.0
  %4225 = vmatprep.subr.mxu0 0.0
  %4226 = vmatpush1.msra.mxu0 0.0
  %4227 = vmatprep.subr.mxu0 0.0
  %4228 = vmatpush1.msra.mxu0 0.0
  %4229 = vmatprep.subr.mxu0 0.0
  %4230 = vmatpush1.msra.mxu0 0.0
  %4231 = vmatprep.subr.mxu0 0.0
  %4232 = vmatpush1.msra.mxu0 0.0
  %4233 = vmatprep.subr.mxu0 0.0
  %4234 = vmatpush1.msra.mxu0 0.0
  %4235 = vmatprep.subr.mxu0 0.0
  %4236 = vmatpush1.msra.mxu0 %v4208
  %4237 = vmatprep.subr.mxu0 0.0
  %4238 = vmatpush1.msra.mxu0 %v4207
  %4239 = vmatprep.subr.mxu0 0.0
  %4240 = vmatpush1.msra.mxu0 %v4206
  %4241 = vmatprep.subr.mxu0 0.0
  %4242 = vmatpush1.msra.mxu0 %v4205
  %4243 = vmatprep.subr.mxu0 0.0
  %4244 = vmatpush1.msra.mxu0 %v4204
  %4245 = vmatprep.subr.mxu0 0.0
  %4246 = vmatpush1.msra.mxu0 %v4203
  %4247 = vmatprep.subr.mxu0 0.0
  %4248 = vmatpush1.msra.mxu0 %v4202
  %4249 = vmatprep.subr.mxu0 0.0
  %4250 = vmatpush1.msra.mxu0 %v4201
  %4251 = vmatprep.subr.mxu0 0.0
  %4252 = vmatpush2.msra.mxu0 0.0
  %4253 = vmatprep.subr.mxu0 0.0
  %4254 = vmatpush2.msra.mxu0 0.0
  %4255 = vmatprep.subr.mxu0 0.0
  %4256 = vmatpush2.msra.mxu0 0.0
  %4257 = vmatprep.subr.mxu0 0.0
  %4258 = vmatpush2.msra.mxu0 0.0
  %4259 = vmatprep.subr.mxu0 0.0
  %4260 = vmatpush2.msra.mxu0 0.0
  %4261 = vmatprep.subr.mxu0 0.0
  %4262 = vmatpush2.msra.mxu0 0.0
  %4263 = vmatprep.subr.mxu0 0.0
  %4264 = vmatpush2.msra.mxu0 0.0
  %4265 = vmatprep.subr.mxu0 0.0
  %4266 = vmatpush2.msra.mxu0 0.0
  %4267 = vmatprep.subr.mxu0 0.0
  %4268 = vmatpush2.msra.mxu0 0.0
  %4269 = vmatprep.subr.mxu0 0.0
  %4270 = vmatpush2.msra.mxu0 0.0
  %4271 = vmatprep.subr.mxu0 0.0
  %4272 = vmatpush2.msra.mxu0 0.0
  %4273 = vmatprep.subr.mxu0 0.0
  %4274 = vmatpush2.msra.mxu0 0.0
  %4275 = vmatprep.subr.mxu0 0.0
  %4276 = vmatpush2.msra.mxu0 0.0
  %4277 = vmatprep.subr.mxu0 0.0
  %4278 = vmatpush2.msra.mxu0 0.0
  %4279 = vmatprep.subr.mxu0 0.0
  %4280 = vmatpush2.msra.mxu0 0.0
  %4281 = vmatprep.subr.mxu0 0.0
  %4282 = vmatpush2.msra.mxu0 0.0
  %4283 = vmatprep.mubr.f32.mxu0 0.0
  %4284 = vmatmul.mubr.f32.gmra.mxu0 %v4217
  %v4285 = vpop.f32.mrf.mxu0
  %v4286 = vadd.f32 %v4214, %v4285
  %v4287 = vpop.f32.mrf.mxu0
  %4288 = vdwg.mxu0
  %vm4289 = vcmask 80896
  %v4290 = vsel %vm4289, %v4286, -inf
  %4291 = vmax.xlane.f32.xlu0 %v4290
  %v4292 = vpop.xlane.xlu0 %4291
  %v4293 = vsub.f32 %v4286, %v4292
  %v4294 = vmul.f32 %v4293, 1.442695
  %v4295 = vpow.pop %v4294
  %v4296 = vsel %vm4289, %v4295, 0.0
  %4297 = vadd.xlane.f32.xlu0 %v4296
  %v4298 = vpop.xlane.xlu0 %4297
  %v4299 = vlog2.pop %v4298
  %v4300 = vmul.f32 %v4299, 0.6931472
  %v4301 = vadd.f32 %v4300, %v4292
  %v4302 = vsub.f32 %v4286, %v4301
  %4303 = vst.msk [vmem:[%s9] sm:$0xff] %vm4289, %v4302
  // Predicated region
  $region38: #{char_lstm_forward.1} parent=0 // pred_check
    _
  $region39: #{char_lstm_forward.1} parent=0 // pred_check_branch
    %4305 = sbr.rel (0) target = $region41
  $region40: #{char_lstm_forward.1} parent=0 // pred_region
    _
  $region41: #{char_lstm_forward.1} parent=0 // pred_fallthru
    _
  // Predicated region
  $region42: #{char_lstm_forward.1} parent=0 // pred_check
    _
  $region43: #{char_lstm_forward.1} parent=0 // pred_check_branch
    %4307 = sbr.rel (0) target = $region45
  $region44: #{char_lstm_forward.1} parent=0 // pred_region
    _
  $region45: #{char_lstm_forward.1} parent=0 // pred_fallthru
    _
  // Predicated region
  $region46: #{char_lstm_forward.1} parent=0 // pred_check
    _
  $region47: #{char_lstm_forward.1} parent=0 // pred_check_branch
    %4309 = sbr.rel (0) target = $region49
  $region48: #{char_lstm_forward.1} parent=0 // pred_region
    _
  $region49: #{char_lstm_forward.1} parent=0 // pred_fallthru
    _
  // Predicated region
  $region50: #{char_lstm_forward.1} parent=0 // pred_check
    _
  $region51: #{char_lstm_forward.1} parent=0 // pred_check_branch
    %4311 = sbr.rel (0) target = $region53
  $region52: #{char_lstm_forward.1} parent=0 // pred_region
    _
  $region53: #{char_lstm_forward.1} parent=0 // pred_fallthru
    _
  // Predicated region
  $region54: #{char_lstm_forward.1} parent=0 // pred_check
    _
  $region55: #{char_lstm_forward.1} parent=0 // pred_check_branch
    %4313 = sbr.rel (0) target = $region57
  $region56: #{char_lstm_forward.1} parent=0 // pred_region
    _
  $region57: #{char_lstm_forward.1} parent=0 // pred_fallthru
    _
  // Predicated region
  $region58: #{char_lstm_forward.1} parent=0 // pred_check
    _
  $region59: #{char_lstm_forward.1} parent=0 // pred_check_branch
    %4315 = sbr.rel (0) target = $region61
  $region60: #{char_lstm_forward.1} parent=0 // pred_region
    _
  $region61: #{char_lstm_forward.1} parent=0 // pred_fallthru
    _

</llo_original>
